<compile_context>
chip_gen: v7x
topology: tpu7x:2x2x1
jax: 0.10.0
libtpu: 0.0.40
codegen_flags: <defaults>
</compile_context>

<pallas_src>
import functools

import jax
import jax.numpy as jnp
import numpy as np
from jax.experimental import pallas as pl
from jax.experimental.pallas import tpu as pltpu


def gcn_kernel(node_ref, adj_ref, w_ref, b_ref, out_ref, *,
               matmul_dtype, approx_recip: bool):
    """One grid step = Bb graphs.

    node_ref: [1, Bb*N, Din]   (input dtype, e.g. f32)
    adj_ref:  [1, Bb, N, N]    (input dtype; 0/1 values)
    w_ref:    [Din, Dout]      (input dtype, resident)
    b_ref:    [1, Dout]        f32, resident
    out_ref:  [1, Bb, N, Dout] output dtype
    """
    bb, n = adj_ref.shape[1], adj_ref.shape[2]
    dout = w_ref.shape[1]

    # --- Linear first (reassociation): ONE big MXU matmul over every row. ---
    h = jnp.dot(node_ref[0].astype(matmul_dtype),
                w_ref[...].astype(matmul_dtype),
                preferred_element_type=jnp.float32)           # [Bb*N, Dout] f32
    h = h.reshape(bb, n, dout)                                # lane dim unchanged

    # --- Degree + D^-1, vectorised over the whole block (one reduce/recip). ---
    adj = adj_ref[0]                                          # [Bb, N, N]
    deg = jnp.sum(adj.astype(jnp.float32), axis=-1, keepdims=True)   # [Bb, N, 1]
    inv_deg = pl.reciprocal(jnp.maximum(deg, 1.0), approx=approx_recip)

    # --- Message passing: batched adj @ h (graphs are block-diagonal), f32 acc. ---
    msg = jnp.einsum("bij,bjd->bid",
                     adj.astype(matmul_dtype), h.astype(matmul_dtype),
                     preferred_element_type=jnp.float32)      # [Bb, N, Dout]

    # --- Epilogue: D^-1 scale, bias, LeakyReLU(0.01); all f32 VPU ops. ---
    out = msg * inv_deg + b_ref[...]
    out = jnp.where(out >= 0, out, 0.01 * out)
    out_ref[0] = out.astype(out_ref.dtype)


def _round_up(x, m):
    return ((x + m - 1) // m) * m


def _chip_info():
    """(physical VMEM bytes, TensorCores per chip); conservative fallbacks."""
    vmem_bytes, num_cores = 64 * 1024 * 1024, 1      # v7x-safe defaults
    try:
        info = pltpu.get_tpu_info()
        vmem_bytes = int(getattr(info, "vmem_capacity_bytes", vmem_bytes))
        for attr in ("num_tensorcores", "tensorcore_count", "num_cores",
                     "cores_per_chip"):
            v = getattr(info, attr, None)
            if isinstance(v, int) and v > 0:
                num_cores = v
                break
    except Exception:
        pass
    return vmem_bytes, num_cores


def _block_bytes(bb, N, Din, Dout, in_bytes, out_bytes):
    """VMEM for one grid step: (8,128) padding, double buffers, resident W/bias,
    plus ~1 MiB for compiler-internal scratch."""
    adj_b = bb * _round_up(N, 8) * _round_up(N, 128) * in_bytes
    node_b = _round_up(bb * N, 8) * _round_up(Din, 128) * in_bytes
    out_b = bb * _round_up(N, 8) * _round_up(Dout, 128) * out_bytes
    w_b = _round_up(Din, 8) * _round_up(Dout, 128) * in_bytes
    bias_b = 8 * _round_up(Dout, 128) * 4
    return 2 * (adj_b + node_b + out_b + w_b + bias_b) + (1 << 20)


def _pick_block_b(B, N, Din, Dout, in_bytes, out_bytes, num_cores, vmem_budget,
                  rows_target=1024):
    """Graphs per grid step: one step on single-TC chips when it fits; >= num_cores
    steps on multi-core chips (v7x megacore); capped by the VMEM budget; divisors
    of B preferred so no host-side tail padding is needed."""
    bb = max(1, min(B, rows_target // max(N, 1)))
    if num_cores > 1 and B >= num_cores:
        bb = min(bb, pl.cdiv(B, num_cores))          # keep >= num_cores grid blocks
    while bb > 1 and _block_bytes(bb, N, Din, Dout, in_bytes, out_bytes) > vmem_budget:
        bb -= 1
    divisor = max((d for d in range(1, bb + 1) if B % d == 0), default=1)
    return divisor if 3 * divisor >= bb else bb


def graph_conv_layer(node_mat, adj_mat, weight, bias, *, block_b=None,
                     matmul_dtype=jnp.bfloat16, out_dtype=None):
    """node_mat: [B,N,Din], adj_mat: [B,N,N], weight: [Din,Dout] (pre-transposed),
    bias: [Dout]. Returns [B, N, Dout]."""
    B, N, Din = node_mat.shape
    Dout = weight.shape[1]
    out_dtype = node_mat.dtype if out_dtype is None else out_dtype
    in_bytes = jnp.dtype(node_mat.dtype).itemsize
    out_bytes = jnp.dtype(out_dtype).itemsize

    vmem_bytes, num_cores = _chip_info()
    vmem_limit = min(64 * 1024 * 1024, vmem_bytes // 2)   # 64 MiB v5e/v6e, 32 MiB v7x
    bb = block_b if block_b is not None else _pick_block_b(
        B, N, Din, Dout, in_bytes, out_bytes, num_cores, vmem_limit // 2)
    G = pl.cdiv(B, bb)
    B_pad = G * bb
    if B_pad != B:   # fallback only; _pick_block_b prefers divisors of B
        node_mat = jnp.pad(node_mat, ((0, B_pad - B), (0, 0), (0, 0)))
        adj_mat = jnp.pad(adj_mat, ((0, B_pad - B), (0, 0), (0, 0)))

    # No wrapper-side dtype casts: inputs are DMA'd as-is, cast in-kernel.
    node_g = node_mat.reshape(G, bb * N, Din)
    adj_g = adj_mat.reshape(G, bb, N, N)
    b2 = bias.reshape(1, Dout).astype(jnp.float32)

    kernel = functools.partial(
        gcn_kernel, matmul_dtype=matmul_dtype,
        approx_recip=(jnp.dtype(matmul_dtype) != jnp.dtype(jnp.float32)))

    out = pl.pallas_call(
        kernel,
        out_shape=jax.ShapeDtypeStruct((G, bb, N, Dout), out_dtype),
        grid_spec=pltpu.PrefetchScalarGridSpec(
            num_scalar_prefetch=0,
            grid=(G,),
            in_specs=[
                pl.BlockSpec((1, bb * N, Din), lambda g: (g, 0, 0)),
                pl.BlockSpec((1, bb, N, N), lambda g: (g, 0, 0, 0)),
                pl.BlockSpec((Din, Dout), lambda g: (0, 0)),    # resident weight
                pl.BlockSpec((1, Dout), lambda g: (0, 0)),      # resident bias
            ],
            out_specs=pl.BlockSpec((1, bb, N, Dout), lambda g: (g, 0, 0, 0)),
        ),
        compiler_params=pltpu.CompilerParams(
            dimension_semantics=("parallel",),
            vmem_limit_bytes=vmem_limit),
    )(node_g, adj_g, weight, b2)

    return out.reshape(B_pad, N, Dout)[:B]


def reference(node_mat, adj_mat, weight, bias):
    """float64 numpy reference (matches the PyTorch module semantics)."""
    node = np.asarray(node_mat, dtype=np.float64)
    adj = np.asarray(adj_mat, dtype=np.float64)
    w = np.asarray(weight, dtype=np.float64)
    b = np.asarray(bias, dtype=np.float64)
    deg = np.maximum(adj.sum(-1, keepdims=True), 1.0)
    msg = np.einsum("bij,bjd->bid", adj, node) / deg
    h = np.einsum("bnd,de->bne", msg, w) + b
    return np.where(h >= 0, h, 0.01 * h)


if __name__ == "__main__":
    key = jax.random.PRNGKey(0)
    B, N, DIN, DOUT = 35, 16, 32, 32

    k_node, k_adj, k_w, k_b = jax.random.split(key, 4)
    node_mat = jax.random.normal(k_node, (B, N, DIN), dtype=jnp.float32)

    # random symmetric 0/1 adjacency; atom 0 isolated to exercise clamp(min=1)
    a = (jax.random.uniform(k_adj, (B, N, N)) < 0.3).astype(jnp.float32)
    adj_mat = jnp.clip(a + jnp.swapaxes(a, -1, -2), 0.0, 1.0)
    adj_mat = adj_mat.at[:, 0, :].set(0.0)
    adj_mat = adj_mat.at[:, :, 0].set(0.0)

    # nn.Linear(node_in_len, node_out_len)-style init (W pre-transposed [Din,Dout])
    bound = 1.0 / np.sqrt(DIN)
    weight = jax.random.uniform(k_w, (DIN, DOUT), minval=-bound, maxval=bound,
                                dtype=jnp.float32)
    bias = jax.random.uniform(k_b, (DOUT,), minval=-bound, maxval=bound,
                              dtype=jnp.float32)

    ref = reference(node_mat, adj_mat, weight, bias)

    # near-exact path: f32 MXU operands + exact reciprocal
    out_f32 = jax.block_until_ready(
        graph_conv_layer(node_mat, adj_mat, weight, bias,
                         matmul_dtype=jnp.float32))
    np.testing.assert_allclose(np.asarray(out_f32, dtype=np.float64), ref,
                               rtol=1e-4, atol=1e-4)

    # fast path: in-kernel bf16 MXU operands, f32 accumulation, EUP approx recip
    out_bf16 = jax.block_until_ready(
        graph_conv_layer(node_mat, adj_mat, weight, bias))
    np.testing.assert_allclose(np.asarray(out_bf16, dtype=np.float64), ref,
                               rtol=2e-2, atol=2e-2)

    # forced non-divisor block size: exercises the multi-step + tail-pad path
    out_pad = jax.block_until_ready(
        graph_conv_layer(node_mat, adj_mat, weight, bias,
                         block_b=8, matmul_dtype=jnp.float32))
    np.testing.assert_allclose(np.asarray(out_pad, dtype=np.float64), ref,
                               rtol=1e-4, atol=1e-4)

    print("KERNEL_OK")
</pallas_src>

<mosaic_0001>
module attributes {stable_mosaic.version = 11 : i64} {
  func.func @gcn_kernel(%arg0: i32, %arg1: memref<1x560x32xf32, #tpu.memory_space<vmem>>, %arg2: memref<1x35x16x16xf32, #tpu.memory_space<vmem>>, %arg3: memref<32x32xf32, #tpu.memory_space<vmem>>, %arg4: memref<1x32xf32, #tpu.memory_space<vmem>>, %arg5: memref<1x35x16x32xf32, #tpu.memory_space<vmem>>) attributes {dimension_semantics = [#tpu.dimension_semantics<parallel>], iteration_bounds = array<i64: 1>, scalar_prefetch = 0 : i64, scratch_operands = 0 : i64, tpu.core_type = #tpu.core_type<tc>, window_params = [{transform_indices = @transform_0, window_bounds = array<i64: 1, 560, 32>}, {transform_indices = @transform_1, window_bounds = array<i64: 1, 35, 16, 16>}, {pipeline_mode = #tpu.pipeline_mode<synchronous>, transform_indices = @transform_2, window_bounds = array<i64: 32, 32>}, {pipeline_mode = #tpu.pipeline_mode<synchronous>, transform_indices = @transform_3, window_bounds = array<i64: 1, 32>}, {transform_indices = @transform_4, window_bounds = array<i64: 1, 35, 16, 32>}]} {
    %c0 = arith.constant 0 : index
    %c0_0 = arith.constant 0 : index
    %c0_1 = arith.constant 0 : index
    %0 = vector.load %arg1[%c0, %c0_0, %c0_1] : memref<1x560x32xf32, #tpu.memory_space<vmem>>, vector<1x560x32xf32>
    %1 = vector.shape_cast %0 : vector<1x560x32xf32> to vector<560x32xf32>
    %c0_2 = arith.constant 0 : index
    %c0_3 = arith.constant 0 : index
    %2 = vector.load %arg3[%c0_2, %c0_3] : memref<32x32xf32, #tpu.memory_space<vmem>>, vector<32x32xf32>
    %cst = arith.constant dense<0.000000e+00> : vector<560x32xf32>
    %3 = tpu.matmul %1, %2, %cst {dimension_numbers = #tpu.dot_dimension_numbers<[1], [0], [0], [1], [0, 0, 1, 1], [], []>} : vector<560x32xf32>, vector<32x32xf32>, vector<560x32xf32> -> vector<560x32xf32>
    %4 = vector.shape_cast %3 : vector<560x32xf32> to vector<35x16x32xf32>
    %c0_4 = arith.constant 0 : index
    %c0_5 = arith.constant 0 : index
    %c0_6 = arith.constant 0 : index
    %c0_7 = arith.constant 0 : index
    %5 = vector.load %arg2[%c0_4, %c0_5, %c0_6, %c0_7] : memref<1x35x16x16xf32, #tpu.memory_space<vmem>>, vector<1x35x16x16xf32>
    %6 = vector.shape_cast %5 : vector<1x35x16x16xf32> to vector<35x16x16xf32>
    %cst_8 = arith.constant dense<0.000000e+00> : vector<35x16xf32>
    %7 = vector.multi_reduction <add>, %6, %cst_8 [2] : vector<35x16x16xf32> to vector<35x16xf32>
    %8 = vector.shape_cast %7 : vector<35x16xf32> to vector<35x16x1xf32>
    %cst_9 = arith.constant 1.000000e+00 : f32
    %9 = vector.broadcast %cst_9 : f32 to vector<35x16x1xf32>
    %10 = arith.maximumf %8, %9 : vector<35x16x1xf32>
    %11 = tpu.reciprocal %10 : vector<35x16x1xf32> -> vector<35x16x1xf32>
    "tpu.trace_start"() <{level = 10 : i32, message = "bij,bjd->bid"}> : () -> ()
    %cst_10 = arith.constant dense<0.000000e+00> : vector<35x16x32xf32>
    %12 = tpu.matmul %6, %4, %cst_10 {dimension_numbers = #tpu.dot_dimension_numbers<[2], [1], [1], [2], [0, 0, 0, 1, 1, 2], [0], [0]>} : vector<35x16x16xf32>, vector<35x16x32xf32>, vector<35x16x32xf32> -> vector<35x16x32xf32>
    "tpu.trace_stop"() : () -> ()
    %13 = vector.broadcast %11 : vector<35x16x1xf32> to vector<35x16x32xf32>
    %14 = arith.mulf %12, %13 : vector<35x16x32xf32>
    %c0_11 = arith.constant 0 : index
    %c0_12 = arith.constant 0 : index
    %15 = vector.load %arg4[%c0_11, %c0_12] : memref<1x32xf32, #tpu.memory_space<vmem>>, vector<1x32xf32>
    %16 = vector.shape_cast %15 : vector<1x32xf32> to vector<1x1x32xf32>
    %17 = vector.broadcast %16 : vector<1x1x32xf32> to vector<35x16x32xf32>
    %18 = arith.addf %14, %17 : vector<35x16x32xf32>
    %cst_13 = arith.constant 0.000000e+00 : f32
    %19 = vector.broadcast %cst_13 : f32 to vector<35x16x32xf32>
    %20 = arith.cmpf oge, %18, %19 : vector<35x16x32xf32>
    %cst_14 = arith.constant 0.00999999977 : f32
    %21 = vector.broadcast %cst_14 : f32 to vector<35x16x32xf32>
    %22 = arith.mulf %21, %18 : vector<35x16x32xf32>
    %23 = arith.select %20, %18, %22 : vector<35x16x32xi1>, vector<35x16x32xf32>
    %c0_15 = arith.constant 0 : index
    %c0_16 = arith.constant 0 : index
    %c0_17 = arith.constant 0 : index
    %c0_18 = arith.constant 0 : index
    %24 = vector.load %arg5[%c0_15, %c0_16, %c0_17, %c0_18] : memref<1x35x16x32xf32, #tpu.memory_space<vmem>>, vector<1x35x16x32xf32>
    %25 = vector.shape_cast %24 : vector<1x35x16x32xf32> to vector<35x16x32xf32>
    %26 = vector.shape_cast %23 : vector<35x16x32xf32> to vector<1x35x16x32xf32>
    tpu.vector_store %arg5[%c0_15, %c0_16, %c0_17, %c0_18], %26 {strides = array<i32>} : memref<1x35x16x32xf32, #tpu.memory_space<vmem>>, vector<1x35x16x32xf32>,
    return
  }
  func.func @transform_0(%arg0: i32) -> (i32, i32, i32) {
    %c0_i32 = arith.constant 0 : i32
    %c0_i32_0 = arith.constant 0 : i32
    %c0_i32_1 = arith.constant 0 : i32
    return %arg0, %c0_i32, %c0_i32_0 : i32, i32, i32
  }
  func.func @transform_1(%arg0: i32) -> (i32, i32, i32, i32) {
    %c0_i32 = arith.constant 0 : i32
    %c0_i32_0 = arith.constant 0 : i32
    %c0_i32_1 = arith.constant 0 : i32
    %c0_i32_2 = arith.constant 0 : i32
    return %arg0, %c0_i32, %c0_i32_0, %c0_i32_1 : i32, i32, i32, i32
  }
  func.func @transform_2(%arg0: i32) -> (i32, i32) {
    %c0_i32 = arith.constant 0 : i32
    %c0_i32_0 = arith.constant 0 : i32
    %c0_i32_1 = arith.constant 0 : i32
    return %c0_i32, %c0_i32_0 : i32, i32
  }
  func.func @transform_3(%arg0: i32) -> (i32, i32) {
    %c0_i32 = arith.constant 0 : i32
    %c0_i32_0 = arith.constant 0 : i32
    %c0_i32_1 = arith.constant 0 : i32
    return %c0_i32, %c0_i32_0 : i32, i32
  }
  func.func @transform_4(%arg0: i32) -> (i32, i32, i32, i32) {
    %c0_i32 = arith.constant 0 : i32
    %c0_i32_0 = arith.constant 0 : i32
    %c0_i32_1 = arith.constant 0 : i32
    %c0_i32_2 = arith.constant 0 : i32
    return %arg0, %c0_i32, %c0_i32_0, %c0_i32_1 : i32, i32, i32, i32
  }
}

</mosaic_0001>

<llo_original>
// kernel: tpu_custom_call.1
$region0: #{tpu_custom_call.1}
  #allocation0 [shape = 'u32[]', space=smem, size = 0x4, offset = 0x4, fixed_abs, tag = 'smem constant byte address 0x4 - core index']
  #allocation1 [shape = 'u32[144,128]{1,0:T(1,128)}', space=vmem, size = 0x12000, scoped, tag = 'internal scratch']
  %s0 = inlined_call_operand.vmem [shape: f32[1,560,32], index: 0, kind: input, shape index: {}]
  %s1 = inlined_call_operand.vmem [shape: f32[1,35,16,16], index: 1, kind: input, shape index: {}]
  %s2 = inlined_call_operand.vmem [shape: f32[32,32], index: 2, kind: input, shape index: {}]
  %s3 = inlined_call_operand.vmem [shape: f32[1,32], index: 3, kind: input, shape index: {}]
  %s4 = inlined_call_operand.vmem [shape: f32[1,35,16,32], index: 4, kind: output, shape index: {}]
  %s5 = sld [smem:[#allocation0]]
  $region26: #{tpu_custom_call.1} parent=0
    _
  %s7 = ssub.s32 1, %s5
  %s8 = scalar_select 0, %s7, %s5
  // Predicated region
  $region2: #{tpu_custom_call.1} parent=0 // pred_check
    _
  $region3: #{tpu_custom_call.1} parent=0 // pred_check_branch
    %10 = sbr.rel (0) target = $region5
  $region4: #{tpu_custom_call.1} parent=0 // pred_region
    _
  $region5: #{tpu_custom_call.1} parent=0 // pred_fallthru
    _
  // Predicated region
  $region6: #{tpu_custom_call.1} parent=0 // pred_check
    _
  $region7: #{tpu_custom_call.1} parent=0 // pred_check_branch
    %12 = sbr.rel (0) target = $region9
  $region8: #{tpu_custom_call.1} parent=0 // pred_region
    _
  $region9: #{tpu_custom_call.1} parent=0 // pred_fallthru
    _
  // Predicated region
  $region10: #{tpu_custom_call.1} parent=0 // pred_check
    _
  $region11: #{tpu_custom_call.1} parent=0 // pred_check_branch
    %14 = sbr.rel (0) target = $region13
  $region12: #{tpu_custom_call.1} parent=0 // pred_region
    _
  $region13: #{tpu_custom_call.1} parent=0 // pred_fallthru
    _
  // Predicated region
  $region14: #{tpu_custom_call.1} parent=0 // pred_check
    _
  $region15: #{tpu_custom_call.1} parent=0 // pred_check_branch
    %16 = sbr.rel (0) target = $region17
  $region16: #{tpu_custom_call.1} parent=0 // pred_region
    _
  $region17: #{tpu_custom_call.1} parent=0 // pred_fallthru
    _
  %v17 = vld [vmem:[%s0] sm:$0xff]
  %v18 = vld [vmem:[%s0 + $0x8] sm:$0xff]
  %v19 = vld [vmem:[%s0 + $0x10] sm:$0xff]
  %v20 = vld [vmem:[%s0 + $0x18] sm:$0xff]
  %v21 = vld [vmem:[%s0 + $0x20] sm:$0xff]
  %v22 = vld [vmem:[%s0 + $0x28] sm:$0xff]
  %v23 = vld [vmem:[%s0 + $0x30] sm:$0xff]
  %v24 = vld [vmem:[%s0 + $0x38] sm:$0xff]
  %v25 = vld [vmem:[%s0 + $0x40] sm:$0xff]
  %v26 = vld [vmem:[%s0 + $0x48] sm:$0xff]
  %v27 = vld [vmem:[%s0 + $0x50] sm:$0xff]
  %v28 = vld [vmem:[%s0 + $0x58] sm:$0xff]
  %v29 = vld [vmem:[%s0 + $0x60] sm:$0xff]
  %v30 = vld [vmem:[%s0 + $0x68] sm:$0xff]
  %v31 = vld [vmem:[%s0 + $0x70] sm:$0xff]
  %v32 = vld [vmem:[%s0 + $0x78] sm:$0xff]
  %v33 = vld [vmem:[%s0 + $0x80] sm:$0xff]
  %v34 = vld [vmem:[%s0 + $0x88] sm:$0xff]
  %v35 = vld [vmem:[%s0 + $0x90] sm:$0xff]
  %v36 = vld [vmem:[%s0 + $0x98] sm:$0xff]
  %v37 = vld [vmem:[%s0 + $0xa0] sm:$0xff]
  %v38 = vld [vmem:[%s0 + $0xa8] sm:$0xff]
  %v39 = vld [vmem:[%s0 + $0xb0] sm:$0xff]
  %v40 = vld [vmem:[%s0 + $0xb8] sm:$0xff]
  %v41 = vld [vmem:[%s0 + $0xc0] sm:$0xff]
  %v42 = vld [vmem:[%s0 + $0xc8] sm:$0xff]
  %v43 = vld [vmem:[%s0 + $0xd0] sm:$0xff]
  %v44 = vld [vmem:[%s0 + $0xd8] sm:$0xff]
  %v45 = vld [vmem:[%s0 + $0xe0] sm:$0xff]
  %v46 = vld [vmem:[%s0 + $0xe8] sm:$0xff]
  %v47 = vld [vmem:[%s0 + $0xf0] sm:$0xff]
  %v48 = vld [vmem:[%s0 + $0xf8] sm:$0xff]
  %v49 = vld [vmem:[%s0 + $0x100] sm:$0xff]
  %v50 = vld [vmem:[%s0 + $0x108] sm:$0xff]
  %v51 = vld [vmem:[%s0 + $0x110] sm:$0xff]
  %v52 = vld [vmem:[%s0 + $0x118] sm:$0xff]
  %v53 = vld [vmem:[%s0 + $0x120] sm:$0xff]
  %v54 = vld [vmem:[%s0 + $0x128] sm:$0xff]
  %v55 = vld [vmem:[%s0 + $0x130] sm:$0xff]
  %v56 = vld [vmem:[%s0 + $0x138] sm:$0xff]
  %v57 = vld [vmem:[%s0 + $0x140] sm:$0xff]
  %v58 = vld [vmem:[%s0 + $0x148] sm:$0xff]
  %v59 = vld [vmem:[%s0 + $0x150] sm:$0xff]
  %v60 = vld [vmem:[%s0 + $0x158] sm:$0xff]
  %v61 = vld [vmem:[%s0 + $0x160] sm:$0xff]
  %v62 = vld [vmem:[%s0 + $0x168] sm:$0xff]
  %v63 = vld [vmem:[%s0 + $0x170] sm:$0xff]
  %v64 = vld [vmem:[%s0 + $0x178] sm:$0xff]
  %v65 = vld [vmem:[%s0 + $0x180] sm:$0xff]
  %v66 = vld [vmem:[%s0 + $0x188] sm:$0xff]
  %v67 = vld [vmem:[%s0 + $0x190] sm:$0xff]
  %v68 = vld [vmem:[%s0 + $0x198] sm:$0xff]
  %v69 = vld [vmem:[%s0 + $0x1a0] sm:$0xff]
  %v70 = vld [vmem:[%s0 + $0x1a8] sm:$0xff]
  %v71 = vld [vmem:[%s0 + $0x1b0] sm:$0xff]
  %v72 = vld [vmem:[%s0 + $0x1b8] sm:$0xff]
  %v73 = vld [vmem:[%s0 + $0x1c0] sm:$0xff]
  %v74 = vld [vmem:[%s0 + $0x1c8] sm:$0xff]
  %v75 = vld [vmem:[%s0 + $0x1d0] sm:$0xff]
  %v76 = vld [vmem:[%s0 + $0x1d8] sm:$0xff]
  %v77 = vld [vmem:[%s0 + $0x1e0] sm:$0xff]
  %v78 = vld [vmem:[%s0 + $0x1e8] sm:$0xff]
  %v79 = vld [vmem:[%s0 + $0x1f0] sm:$0xff]
  %v80 = vld [vmem:[%s0 + $0x1f8] sm:$0xff]
  %v81 = vld [vmem:[%s0 + $0x200] sm:$0xff]
  %v82 = vld [vmem:[%s0 + $0x208] sm:$0xff]
  %v83 = vld [vmem:[%s0 + $0x210] sm:$0xff]
  %v84 = vld [vmem:[%s0 + $0x218] sm:$0xff]
  %v85 = vld [vmem:[%s0 + $0x220] sm:$0xff]
  %v86 = vld [vmem:[%s0 + $0x228] sm:$0xff]
  %v87 = vld [vmem:[%s2] sm:$0xff]
  %v88 = vld [vmem:[%s2 + $0x8] sm:$0xff]
  %v89 = vld [vmem:[%s2 + $0x10] sm:$0xff]
  %v90 = vld [vmem:[%s2 + $0x18] sm:$0xff]
  %vm91 = vcmask 261120
  %v93 = vsel %vm91, %v17, 0
  %v96 = vsel %vm91, %v18, 0
  %v99 = vsel %vm91, %v19, 0
  %v102 = vsel %vm91, %v20, 0
  %v105 = vsel %vm91, %v21, 0
  %v108 = vsel %vm91, %v22, 0
  %v111 = vsel %vm91, %v23, 0
  %v114 = vsel %vm91, %v24, 0
  %v117 = vsel %vm91, %v25, 0
  %v120 = vsel %vm91, %v26, 0
  %v123 = vsel %vm91, %v27, 0
  %v126 = vsel %vm91, %v28, 0
  %v129 = vsel %vm91, %v29, 0
  %v132 = vsel %vm91, %v30, 0
  %v135 = vsel %vm91, %v31, 0
  %v138 = vsel %vm91, %v32, 0
  %v141 = vsel %vm91, %v33, 0
  %v144 = vsel %vm91, %v34, 0
  %v147 = vsel %vm91, %v35, 0
  %v150 = vsel %vm91, %v36, 0
  %v153 = vsel %vm91, %v37, 0
  %v156 = vsel %vm91, %v38, 0
  %v159 = vsel %vm91, %v39, 0
  %v162 = vsel %vm91, %v40, 0
  %v165 = vsel %vm91, %v41, 0
  %v168 = vsel %vm91, %v42, 0
  %v171 = vsel %vm91, %v43, 0
  %v174 = vsel %vm91, %v44, 0
  %v177 = vsel %vm91, %v45, 0
  %v180 = vsel %vm91, %v46, 0
  %v183 = vsel %vm91, %v47, 0
  %v186 = vsel %vm91, %v48, 0
  %v189 = vsel %vm91, %v49, 0
  %v192 = vsel %vm91, %v50, 0
  %v195 = vsel %vm91, %v51, 0
  %v198 = vsel %vm91, %v52, 0
  %v201 = vsel %vm91, %v53, 0
  %v204 = vsel %vm91, %v54, 0
  %v207 = vsel %vm91, %v55, 0
  %v210 = vsel %vm91, %v56, 0
  %v213 = vsel %vm91, %v57, 0
  %v216 = vsel %vm91, %v58, 0
  %v219 = vsel %vm91, %v59, 0
  %v222 = vsel %vm91, %v60, 0
  %v225 = vsel %vm91, %v61, 0
  %v228 = vsel %vm91, %v62, 0
  %v231 = vsel %vm91, %v63, 0
  %v234 = vsel %vm91, %v64, 0
  %v237 = vsel %vm91, %v65, 0
  %v240 = vsel %vm91, %v66, 0
  %v243 = vsel %vm91, %v67, 0
  %v246 = vsel %vm91, %v68, 0
  %v249 = vsel %vm91, %v69, 0
  %v252 = vsel %vm91, %v70, 0
  %v255 = vsel %vm91, %v71, 0
  %v258 = vsel %vm91, %v72, 0
  %v261 = vsel %vm91, %v73, 0
  %v264 = vsel %vm91, %v74, 0
  %v267 = vsel %vm91, %v75, 0
  %v270 = vsel %vm91, %v76, 0
  %v273 = vsel %vm91, %v77, 0
  %v276 = vsel %vm91, %v78, 0
  %v279 = vsel %vm91, %v79, 0
  %v282 = vsel %vm91, %v80, 0
  %v285 = vsel %vm91, %v81, 0
  %v288 = vsel %vm91, %v82, 0
  %v291 = vsel %vm91, %v83, 0
  %v294 = vsel %vm91, %v84, 0
  %v297 = vsel %vm91, %v85, 0
  %v300 = vsel %vm91, %v86, 0
  %302 = vmatprep.subr.mxu0 0.0
  %303 = vmatpush1.msra.mxu0 %v87
  %304 = vmatprep.subr.mxu0 0.0
  %305 = vmatpush1.msra.mxu0 %v88
  %306 = vmatprep.subr.mxu0 0.0
  %307 = vmatpush1.msra.mxu0 %v89
  %308 = vmatprep.subr.mxu0 0.0
  %309 = vmatpush1.msra.mxu0 %v90
  %310 = vmatprep.subr.mxu0 0.0
  %311 = vmatpush1.msra.mxu0 0.0
  %312 = vmatprep.subr.mxu0 0.0
  %313 = vmatpush1.msra.mxu0 0.0
  %314 = vmatprep.subr.mxu0 0.0
  %315 = vmatpush1.msra.mxu0 0.0
  %316 = vmatprep.subr.mxu0 0.0
  %317 = vmatpush1.msra.mxu0 0.0
  %318 = vmatprep.subr.mxu0 0.0
  %319 = vmatpush1.msra.mxu0 0.0
  %320 = vmatprep.subr.mxu0 0.0
  %321 = vmatpush1.msra.mxu0 0.0
  %322 = vmatprep.subr.mxu0 0.0
  %323 = vmatpush1.msra.mxu0 0.0
  %324 = vmatprep.subr.mxu0 0.0
  %325 = vmatpush1.msra.mxu0 0.0
  %326 = vmatprep.subr.mxu0 0.0
  %327 = vmatpush1.msra.mxu0 0.0
  %328 = vmatprep.subr.mxu0 0.0
  %329 = vmatpush1.msra.mxu0 0.0
  %330 = vmatprep.subr.mxu0 0.0
  %331 = vmatpush1.msra.mxu0 0.0
  %332 = vmatprep.subr.mxu0 0.0
  %333 = vmatpush1.msra.mxu0 0.0
  %334 = vmatprep.subr.mxu0 0.0
  %335 = vmatpush1.msra.mxu0 0.0
  %336 = vmatprep.subr.mxu0 0.0
  %337 = vmatpush1.msra.mxu0 0.0
  %338 = vmatprep.subr.mxu0 0.0
  %339 = vmatpush1.msra.mxu0 0.0
  %340 = vmatprep.subr.mxu0 0.0
  %341 = vmatpush1.msra.mxu0 0.0
  %342 = vmatprep.subr.mxu0 0.0
  %343 = vmatpush1.msra.mxu0 0.0
  %344 = vmatprep.subr.mxu0 0.0
  %345 = vmatpush1.msra.mxu0 0.0
  %346 = vmatprep.subr.mxu0 0.0
  %347 = vmatpush1.msra.mxu0 0.0
  %348 = vmatprep.subr.mxu0 0.0
  %349 = vmatpush1.msra.mxu0 0.0
  %350 = vmatprep.subr.mxu0 0.0
  %351 = vmatpush1.msra.mxu0 0.0
  %352 = vmatprep.subr.mxu0 0.0
  %353 = vmatpush1.msra.mxu0 0.0
  %354 = vmatprep.subr.mxu0 0.0
  %355 = vmatpush1.msra.mxu0 0.0
  %356 = vmatprep.subr.mxu0 0.0
  %357 = vmatpush1.msra.mxu0 0.0
  %358 = vmatprep.subr.mxu0 0.0
  %359 = vmatpush1.msra.mxu0 0.0
  %360 = vmatprep.subr.mxu0 0.0
  %361 = vmatpush1.msra.mxu0 0.0
  %362 = vmatprep.subr.mxu0 0.0
  %363 = vmatpush1.msra.mxu0 0.0
  %364 = vmatprep.subr.mxu0 0.0
  %365 = vmatpush1.msra.mxu0 0.0
  %366 = vmatprep.mubr.f32.mxu0 0.0
  %367 = vmatmul.mubr.f32.gmra.mrb[0].mxu0 %v93
  %v368 = vpop.f32.mrb[0].mxu0
  %v369 = vadd.f32 0.0, %v368
  %v370 = vpop.f32.mrb[0].mxu0
  %371 = vmatprep.mubr.f32.mxu0 0.0
  %372 = vmatmul.mubr.f32.gmra.mrb[0].mxu0 %v96
  %v373 = vpop.f32.mrb[0].mxu0
  %v374 = vadd.f32 0.0, %v373
  %v375 = vpop.f32.mrb[0].mxu0
  %376 = vmatprep.mubr.f32.mxu0 0.0
  %377 = vmatmul.mubr.f32.gmra.mrb[0].mxu0 %v99
  %v378 = vpop.f32.mrb[0].mxu0
  %v379 = vadd.f32 0.0, %v378
  %v380 = vpop.f32.mrb[0].mxu0
  %381 = vmatprep.mubr.f32.mxu0 0.0
  %382 = vmatmul.mubr.f32.gmra.mrb[0].mxu0 %v102
  %v383 = vpop.f32.mrb[0].mxu0
  %v384 = vadd.f32 0.0, %v383
  %v385 = vpop.f32.mrb[0].mxu0
  %386 = vmatprep.mubr.f32.mxu0 0.0
  %387 = vmatmul.mubr.f32.gmra.mrb[0].mxu0 %v105
  %v388 = vpop.f32.mrb[0].mxu0
  %v389 = vadd.f32 0.0, %v388
  %v390 = vpop.f32.mrb[0].mxu0
  %391 = vmatprep.mubr.f32.mxu0 0.0
  %392 = vmatmul.mubr.f32.gmra.mrb[0].mxu0 %v108
  %v393 = vpop.f32.mrb[0].mxu0
  %v394 = vadd.f32 0.0, %v393
  %v395 = vpop.f32.mrb[0].mxu0
  %396 = vmatprep.mubr.f32.mxu0 0.0
  %397 = vmatmul.mubr.f32.gmra.mrb[0].mxu0 %v111
  %v398 = vpop.f32.mrb[0].mxu0
  %v399 = vadd.f32 0.0, %v398
  %v400 = vpop.f32.mrb[0].mxu0
  %401 = vmatprep.mubr.f32.mxu0 0.0
  %402 = vmatmul.mubr.f32.gmra.mrb[0].mxu0 %v114
  %v403 = vpop.f32.mrb[0].mxu0
  %v404 = vadd.f32 0.0, %v403
  %v405 = vpop.f32.mrb[0].mxu0
  %406 = vmatprep.mubr.f32.mxu0 0.0
  %407 = vmatmul.mubr.f32.gmra.mrb[0].mxu0 %v117
  %v408 = vpop.f32.mrb[0].mxu0
  %v409 = vadd.f32 0.0, %v408
  %v410 = vpop.f32.mrb[0].mxu0
  %411 = vmatprep.mubr.f32.mxu0 0.0
  %412 = vmatmul.mubr.f32.gmra.mrb[0].mxu0 %v120
  %v413 = vpop.f32.mrb[0].mxu0
  %v414 = vadd.f32 0.0, %v413
  %v415 = vpop.f32.mrb[0].mxu0
  %416 = vmatprep.mubr.f32.mxu0 0.0
  %417 = vmatmul.mubr.f32.gmra.mrb[0].mxu0 %v123
  %v418 = vpop.f32.mrb[0].mxu0
  %v419 = vadd.f32 0.0, %v418
  %v420 = vpop.f32.mrb[0].mxu0
  %421 = vmatprep.mubr.f32.mxu0 0.0
  %422 = vmatmul.mubr.f32.gmra.mrb[0].mxu0 %v126
  %v423 = vpop.f32.mrb[0].mxu0
  %v424 = vadd.f32 0.0, %v423
  %v425 = vpop.f32.mrb[0].mxu0
  %426 = vmatprep.mubr.f32.mxu0 0.0
  %427 = vmatmul.mubr.f32.gmra.mrb[0].mxu0 %v129
  %v428 = vpop.f32.mrb[0].mxu0
  %v429 = vadd.f32 0.0, %v428
  %v430 = vpop.f32.mrb[0].mxu0
  %431 = vmatprep.mubr.f32.mxu0 0.0
  %432 = vmatmul.mubr.f32.gmra.mrb[0].mxu0 %v132
  %v433 = vpop.f32.mrb[0].mxu0
  %v434 = vadd.f32 0.0, %v433
  %v435 = vpop.f32.mrb[0].mxu0
  %436 = vmatprep.mubr.f32.mxu0 0.0
  %437 = vmatmul.mubr.f32.gmra.mrb[0].mxu0 %v135
  %v438 = vpop.f32.mrb[0].mxu0
  %v439 = vadd.f32 0.0, %v438
  %v440 = vpop.f32.mrb[0].mxu0
  %441 = vmatprep.mubr.f32.mxu0 0.0
  %442 = vmatmul.mubr.f32.gmra.mrb[0].mxu0 %v138
  %v443 = vpop.f32.mrb[0].mxu0
  %v444 = vadd.f32 0.0, %v443
  %v445 = vpop.f32.mrb[0].mxu0
  %446 = vmatprep.mubr.f32.mxu0 0.0
  %447 = vmatmul.mubr.f32.gmra.mrb[0].mxu0 %v141
  %v448 = vpop.f32.mrb[0].mxu0
  %v449 = vadd.f32 0.0, %v448
  %v450 = vpop.f32.mrb[0].mxu0
  %451 = vmatprep.mubr.f32.mxu0 0.0
  %452 = vmatmul.mubr.f32.gmra.mrb[0].mxu0 %v144
  %v453 = vpop.f32.mrb[0].mxu0
  %v454 = vadd.f32 0.0, %v453
  %v455 = vpop.f32.mrb[0].mxu0
  %456 = vmatprep.mubr.f32.mxu0 0.0
  %457 = vmatmul.mubr.f32.gmra.mrb[0].mxu0 %v147
  %v458 = vpop.f32.mrb[0].mxu0
  %v459 = vadd.f32 0.0, %v458
  %v460 = vpop.f32.mrb[0].mxu0
  %461 = vmatprep.mubr.f32.mxu0 0.0
  %462 = vmatmul.mubr.f32.gmra.mrb[0].mxu0 %v150
  %v463 = vpop.f32.mrb[0].mxu0
  %v464 = vadd.f32 0.0, %v463
  %v465 = vpop.f32.mrb[0].mxu0
  %466 = vmatprep.mubr.f32.mxu0 0.0
  %467 = vmatmul.mubr.f32.gmra.mrb[0].mxu0 %v153
  %v468 = vpop.f32.mrb[0].mxu0
  %v469 = vadd.f32 0.0, %v468
  %v470 = vpop.f32.mrb[0].mxu0
  %471 = vmatprep.mubr.f32.mxu0 0.0
  %472 = vmatmul.mubr.f32.gmra.mrb[0].mxu0 %v156
  %v473 = vpop.f32.mrb[0].mxu0
  %v474 = vadd.f32 0.0, %v473
  %v475 = vpop.f32.mrb[0].mxu0
  %476 = vmatprep.mubr.f32.mxu0 0.0
  %477 = vmatmul.mubr.f32.gmra.mrb[0].mxu0 %v159
  %v478 = vpop.f32.mrb[0].mxu0
  %v479 = vadd.f32 0.0, %v478
  %v480 = vpop.f32.mrb[0].mxu0
  %481 = vmatprep.mubr.f32.mxu0 0.0
  %482 = vmatmul.mubr.f32.gmra.mrb[0].mxu0 %v162
  %v483 = vpop.f32.mrb[0].mxu0
  %v484 = vadd.f32 0.0, %v483
  %v485 = vpop.f32.mrb[0].mxu0
  %486 = vmatprep.mubr.f32.mxu0 0.0
  %487 = vmatmul.mubr.f32.gmra.mrb[0].mxu0 %v165
  %v488 = vpop.f32.mrb[0].mxu0
  %v489 = vadd.f32 0.0, %v488
  %v490 = vpop.f32.mrb[0].mxu0
  %491 = vmatprep.mubr.f32.mxu0 0.0
  %492 = vmatmul.mubr.f32.gmra.mrb[0].mxu0 %v168
  %v493 = vpop.f32.mrb[0].mxu0
  %v494 = vadd.f32 0.0, %v493
  %v495 = vpop.f32.mrb[0].mxu0
  %496 = vmatprep.mubr.f32.mxu0 0.0
  %497 = vmatmul.mubr.f32.gmra.mrb[0].mxu0 %v171
  %v498 = vpop.f32.mrb[0].mxu0
  %v499 = vadd.f32 0.0, %v498
  %v500 = vpop.f32.mrb[0].mxu0
  %501 = vmatprep.mubr.f32.mxu0 0.0
  %502 = vmatmul.mubr.f32.gmra.mrb[0].mxu0 %v174
  %v503 = vpop.f32.mrb[0].mxu0
  %v504 = vadd.f32 0.0, %v503
  %v505 = vpop.f32.mrb[0].mxu0
  %506 = vmatprep.mubr.f32.mxu0 0.0
  %507 = vmatmul.mubr.f32.gmra.mrb[0].mxu0 %v177
  %v508 = vpop.f32.mrb[0].mxu0
  %v509 = vadd.f32 0.0, %v508
  %v510 = vpop.f32.mrb[0].mxu0
  %511 = vmatprep.mubr.f32.mxu0 0.0
  %512 = vmatmul.mubr.f32.gmra.mrb[0].mxu0 %v180
  %v513 = vpop.f32.mrb[0].mxu0
  %v514 = vadd.f32 0.0, %v513
  %v515 = vpop.f32.mrb[0].mxu0
  %516 = vmatprep.mubr.f32.mxu0 0.0
  %517 = vmatmul.mubr.f32.gmra.mrb[0].mxu0 %v183
  %v518 = vpop.f32.mrb[0].mxu0
  %v519 = vadd.f32 0.0, %v518
  %v520 = vpop.f32.mrb[0].mxu0
  %521 = vmatprep.mubr.f32.mxu0 0.0
  %522 = vmatmul.mubr.f32.gmra.mrb[0].mxu0 %v186
  %v523 = vpop.f32.mrb[0].mxu0
  %v524 = vadd.f32 0.0, %v523
  %v525 = vpop.f32.mrb[0].mxu0
  %526 = vmatprep.mubr.f32.mxu0 0.0
  %527 = vmatmul.mubr.f32.gmra.mrb[0].mxu0 %v189
  %v528 = vpop.f32.mrb[0].mxu0
  %v529 = vadd.f32 0.0, %v528
  %v530 = vpop.f32.mrb[0].mxu0
  %531 = vmatprep.mubr.f32.mxu0 0.0
  %532 = vmatmul.mubr.f32.gmra.mrb[0].mxu0 %v192
  %v533 = vpop.f32.mrb[0].mxu0
  %v534 = vadd.f32 0.0, %v533
  %v535 = vpop.f32.mrb[0].mxu0
  %536 = vmatprep.mubr.f32.mxu0 0.0
  %537 = vmatmul.mubr.f32.gmra.mrb[0].mxu0 %v195
  %v538 = vpop.f32.mrb[0].mxu0
  %v539 = vadd.f32 0.0, %v538
  %v540 = vpop.f32.mrb[0].mxu0
  %541 = vmatprep.mubr.f32.mxu0 0.0
  %542 = vmatmul.mubr.f32.gmra.mrb[0].mxu0 %v198
  %v543 = vpop.f32.mrb[0].mxu0
  %v544 = vadd.f32 0.0, %v543
  %v545 = vpop.f32.mrb[0].mxu0
  %546 = vmatprep.mubr.f32.mxu0 0.0
  %547 = vmatmul.mubr.f32.gmra.mrb[0].mxu0 %v201
  %v548 = vpop.f32.mrb[0].mxu0
  %v549 = vadd.f32 0.0, %v548
  %v550 = vpop.f32.mrb[0].mxu0
  %551 = vmatprep.mubr.f32.mxu0 0.0
  %552 = vmatmul.mubr.f32.gmra.mrb[0].mxu0 %v204
  %v553 = vpop.f32.mrb[0].mxu0
  %v554 = vadd.f32 0.0, %v553
  %v555 = vpop.f32.mrb[0].mxu0
  %556 = vmatprep.mubr.f32.mxu0 0.0
  %557 = vmatmul.mubr.f32.gmra.mrb[0].mxu0 %v207
  %v558 = vpop.f32.mrb[0].mxu0
  %v559 = vadd.f32 0.0, %v558
  %v560 = vpop.f32.mrb[0].mxu0
  %561 = vmatprep.mubr.f32.mxu0 0.0
  %562 = vmatmul.mubr.f32.gmra.mrb[0].mxu0 %v210
  %v563 = vpop.f32.mrb[0].mxu0
  %v564 = vadd.f32 0.0, %v563
  %v565 = vpop.f32.mrb[0].mxu0
  %566 = vmatprep.mubr.f32.mxu0 0.0
  %567 = vmatmul.mubr.f32.gmra.mrb[0].mxu0 %v213
  %v568 = vpop.f32.mrb[0].mxu0
  %v569 = vadd.f32 0.0, %v568
  %v570 = vpop.f32.mrb[0].mxu0
  %571 = vmatprep.mubr.f32.mxu0 0.0
  %572 = vmatmul.mubr.f32.gmra.mrb[0].mxu0 %v216
  %v573 = vpop.f32.mrb[0].mxu0
  %v574 = vadd.f32 0.0, %v573
  %v575 = vpop.f32.mrb[0].mxu0
  %576 = vmatprep.mubr.f32.mxu0 0.0
  %577 = vmatmul.mubr.f32.gmra.mrb[0].mxu0 %v219
  %v578 = vpop.f32.mrb[0].mxu0
  %v579 = vadd.f32 0.0, %v578
  %v580 = vpop.f32.mrb[0].mxu0
  %581 = vmatprep.mubr.f32.mxu0 0.0
  %582 = vmatmul.mubr.f32.gmra.mrb[0].mxu0 %v222
  %v583 = vpop.f32.mrb[0].mxu0
  %v584 = vadd.f32 0.0, %v583
  %v585 = vpop.f32.mrb[0].mxu0
  %586 = vmatprep.mubr.f32.mxu0 0.0
  %587 = vmatmul.mubr.f32.gmra.mrb[0].mxu0 %v225
  %v588 = vpop.f32.mrb[0].mxu0
  %v589 = vadd.f32 0.0, %v588
  %v590 = vpop.f32.mrb[0].mxu0
  %591 = vmatprep.mubr.f32.mxu0 0.0
  %592 = vmatmul.mubr.f32.gmra.mrb[0].mxu0 %v228
  %v593 = vpop.f32.mrb[0].mxu0
  %v594 = vadd.f32 0.0, %v593
  %v595 = vpop.f32.mrb[0].mxu0
  %596 = vmatprep.mubr.f32.mxu0 0.0
  %597 = vmatmul.mubr.f32.gmra.mrb[0].mxu0 %v231
  %v598 = vpop.f32.mrb[0].mxu0
  %v599 = vadd.f32 0.0, %v598
  %v600 = vpop.f32.mrb[0].mxu0
  %601 = vmatprep.mubr.f32.mxu0 0.0
  %602 = vmatmul.mubr.f32.gmra.mrb[0].mxu0 %v234
  %v603 = vpop.f32.mrb[0].mxu0
  %v604 = vadd.f32 0.0, %v603
  %v605 = vpop.f32.mrb[0].mxu0
  %606 = vmatprep.mubr.f32.mxu0 0.0
  %607 = vmatmul.mubr.f32.gmra.mrb[0].mxu0 %v237
  %v608 = vpop.f32.mrb[0].mxu0
  %v609 = vadd.f32 0.0, %v608
  %v610 = vpop.f32.mrb[0].mxu0
  %611 = vmatprep.mubr.f32.mxu0 0.0
  %612 = vmatmul.mubr.f32.gmra.mrb[0].mxu0 %v240
  %v613 = vpop.f32.mrb[0].mxu0
  %v614 = vadd.f32 0.0, %v613
  %v615 = vpop.f32.mrb[0].mxu0
  %616 = vmatprep.mubr.f32.mxu0 0.0
  %617 = vmatmul.mubr.f32.gmra.mrb[0].mxu0 %v243
  %v618 = vpop.f32.mrb[0].mxu0
  %v619 = vadd.f32 0.0, %v618
  %v620 = vpop.f32.mrb[0].mxu0
  %621 = vmatprep.mubr.f32.mxu0 0.0
  %622 = vmatmul.mubr.f32.gmra.mrb[0].mxu0 %v246
  %v623 = vpop.f32.mrb[0].mxu0
  %v624 = vadd.f32 0.0, %v623
  %v625 = vpop.f32.mrb[0].mxu0
  %626 = vmatprep.mubr.f32.mxu0 0.0
  %627 = vmatmul.mubr.f32.gmra.mrb[0].mxu0 %v249
  %v628 = vpop.f32.mrb[0].mxu0
  %v629 = vadd.f32 0.0, %v628
  %v630 = vpop.f32.mrb[0].mxu0
  %631 = vmatprep.mubr.f32.mxu0 0.0
  %632 = vmatmul.mubr.f32.gmra.mrb[0].mxu0 %v252
  %v633 = vpop.f32.mrb[0].mxu0
  %v634 = vadd.f32 0.0, %v633
  %v635 = vpop.f32.mrb[0].mxu0
  %636 = vmatprep.mubr.f32.mxu0 0.0
  %637 = vmatmul.mubr.f32.gmra.mrb[0].mxu0 %v255
  %v638 = vpop.f32.mrb[0].mxu0
  %v639 = vadd.f32 0.0, %v638
  %v640 = vpop.f32.mrb[0].mxu0
  %641 = vmatprep.mubr.f32.mxu0 0.0
  %642 = vmatmul.mubr.f32.gmra.mrb[0].mxu0 %v258
  %v643 = vpop.f32.mrb[0].mxu0
  %v644 = vadd.f32 0.0, %v643
  %v645 = vpop.f32.mrb[0].mxu0
  %646 = vmatprep.mubr.f32.mxu0 0.0
  %647 = vmatmul.mubr.f32.gmra.mrb[0].mxu0 %v261
  %v648 = vpop.f32.mrb[0].mxu0
  %v649 = vadd.f32 0.0, %v648
  %v650 = vpop.f32.mrb[0].mxu0
  %651 = vmatprep.mubr.f32.mxu0 0.0
  %652 = vmatmul.mubr.f32.gmra.mrb[0].mxu0 %v264
  %v653 = vpop.f32.mrb[0].mxu0
  %v654 = vadd.f32 0.0, %v653
  %v655 = vpop.f32.mrb[0].mxu0
  %656 = vmatprep.mubr.f32.mxu0 0.0
  %657 = vmatmul.mubr.f32.gmra.mrb[0].mxu0 %v267
  %v658 = vpop.f32.mrb[0].mxu0
  %v659 = vadd.f32 0.0, %v658
  %v660 = vpop.f32.mrb[0].mxu0
  %661 = vmatprep.mubr.f32.mxu0 0.0
  %662 = vmatmul.mubr.f32.gmra.mrb[0].mxu0 %v270
  %v663 = vpop.f32.mrb[0].mxu0
  %v664 = vadd.f32 0.0, %v663
  %v665 = vpop.f32.mrb[0].mxu0
  %666 = vmatprep.mubr.f32.mxu0 0.0
  %667 = vmatmul.mubr.f32.gmra.mrb[0].mxu0 %v273
  %v668 = vpop.f32.mrb[0].mxu0
  %v669 = vadd.f32 0.0, %v668
  %v670 = vpop.f32.mrb[0].mxu0
  %671 = vmatprep.mubr.f32.mxu0 0.0
  %672 = vmatmul.mubr.f32.gmra.mrb[0].mxu0 %v276
  %v673 = vpop.f32.mrb[0].mxu0
  %v674 = vadd.f32 0.0, %v673
  %v675 = vpop.f32.mrb[0].mxu0
  %676 = vmatprep.mubr.f32.mxu0 0.0
  %677 = vmatmul.mubr.f32.gmra.mrb[0].mxu0 %v279
  %v678 = vpop.f32.mrb[0].mxu0
  %v679 = vadd.f32 0.0, %v678
  %v680 = vpop.f32.mrb[0].mxu0
  %681 = vmatprep.mubr.f32.mxu0 0.0
  %682 = vmatmul.mubr.f32.gmra.mrb[0].mxu0 %v282
  %v683 = vpop.f32.mrb[0].mxu0
  %v684 = vadd.f32 0.0, %v683
  %v685 = vpop.f32.mrb[0].mxu0
  %686 = vmatprep.mubr.f32.mxu0 0.0
  %687 = vmatmul.mubr.f32.gmra.mrb[0].mxu0 %v285
  %v688 = vpop.f32.mrb[0].mxu0
  %v689 = vadd.f32 0.0, %v688
  %v690 = vpop.f32.mrb[0].mxu0
  %691 = vmatprep.mubr.f32.mxu0 0.0
  %692 = vmatmul.mubr.f32.gmra.mrb[0].mxu0 %v288
  %v693 = vpop.f32.mrb[0].mxu0
  %v694 = vadd.f32 0.0, %v693
  %v695 = vpop.f32.mrb[0].mxu0
  %696 = vmatprep.mubr.f32.mxu0 0.0
  %697 = vmatmul.mubr.f32.gmra.mrb[0].mxu0 %v291
  %v698 = vpop.f32.mrb[0].mxu0
  %v699 = vadd.f32 0.0, %v698
  %v700 = vpop.f32.mrb[0].mxu0
  %701 = vmatprep.mubr.f32.mxu0 0.0
  %702 = vmatmul.mubr.f32.gmra.mrb[0].mxu0 %v294
  %v703 = vpop.f32.mrb[0].mxu0
  %v704 = vadd.f32 0.0, %v703
  %v705 = vpop.f32.mrb[0].mxu0
  %706 = vmatprep.mubr.f32.mxu0 0.0
  %707 = vmatmul.mubr.f32.gmra.mrb[0].mxu0 %v297
  %v708 = vpop.f32.mrb[0].mxu0
  %v709 = vadd.f32 0.0, %v708
  %v710 = vpop.f32.mrb[0].mxu0
  %711 = vmatprep.mubr.f32.mxu0 0.0
  %712 = vmatmul.mubr.f32.gmra.mrb[0].mxu0 %v300
  %v713 = vpop.f32.mrb[0].mxu0
  %v714 = vadd.f32 0.0, %v713
  %v715 = vpop.f32.mrb[0].mxu0
  %716 = vdwg.mxu0
  %v717 = vld [vmem:[%s1] sm:$0xff]
  %v718 = vld [vmem:[%s1 + $0x8] sm:$0xff]
  %v719 = vld [vmem:[%s1 + $0x10] sm:$0xff]
  %v720 = vld [vmem:[%s1 + $0x18] sm:$0xff]
  %v721 = vld [vmem:[%s1 + $0x20] sm:$0xff]
  %v722 = vld [vmem:[%s1 + $0x28] sm:$0xff]
  %v723 = vld [vmem:[%s1 + $0x30] sm:$0xff]
  %v724 = vld [vmem:[%s1 + $0x38] sm:$0xff]
  %v725 = vld [vmem:[%s1 + $0x40] sm:$0xff]
  %v726 = vld [vmem:[%s1 + $0x48] sm:$0xff]
  %v727 = vld [vmem:[%s1 + $0x50] sm:$0xff]
  %v728 = vld [vmem:[%s1 + $0x58] sm:$0xff]
  %v729 = vld [vmem:[%s1 + $0x60] sm:$0xff]
  %v730 = vld [vmem:[%s1 + $0x68] sm:$0xff]
  %v731 = vld [vmem:[%s1 + $0x70] sm:$0xff]
  %v732 = vld [vmem:[%s1 + $0x78] sm:$0xff]
  %v733 = vld [vmem:[%s1 + $0x80] sm:$0xff]
  %v734 = vld [vmem:[%s1 + $0x88] sm:$0xff]
  %v735 = vld [vmem:[%s1 + $0x90] sm:$0xff]
  %v736 = vld [vmem:[%s1 + $0x98] sm:$0xff]
  %v737 = vld [vmem:[%s1 + $0xa0] sm:$0xff]
  %v738 = vld [vmem:[%s1 + $0xa8] sm:$0xff]
  %v739 = vld [vmem:[%s1 + $0xb0] sm:$0xff]
  %v740 = vld [vmem:[%s1 + $0xb8] sm:$0xff]
  %v741 = vld [vmem:[%s1 + $0xc0] sm:$0xff]
  %v742 = vld [vmem:[%s1 + $0xc8] sm:$0xff]
  %v743 = vld [vmem:[%s1 + $0xd0] sm:$0xff]
  %v744 = vld [vmem:[%s1 + $0xd8] sm:$0xff]
  %v745 = vld [vmem:[%s1 + $0xe0] sm:$0xff]
  %v746 = vld [vmem:[%s1 + $0xe8] sm:$0xff]
  %v747 = vld [vmem:[%s1 + $0xf0] sm:$0xff]
  %v748 = vld [vmem:[%s1 + $0xf8] sm:$0xff]
  %v749 = vld [vmem:[%s1 + $0x100] sm:$0xff]
  %v750 = vld [vmem:[%s1 + $0x108] sm:$0xff]
  %v751 = vld [vmem:[%s1 + $0x110] sm:$0xff]
  %v752 = vld [vmem:[%s1 + $0x118] sm:$0xff]
  %v753 = vld [vmem:[%s1 + $0x120] sm:$0xff]
  %v754 = vld [vmem:[%s1 + $0x128] sm:$0xff]
  %v755 = vld [vmem:[%s1 + $0x130] sm:$0xff]
  %v756 = vld [vmem:[%s1 + $0x138] sm:$0xff]
  %v757 = vld [vmem:[%s1 + $0x140] sm:$0xff]
  %v758 = vld [vmem:[%s1 + $0x148] sm:$0xff]
  %v759 = vld [vmem:[%s1 + $0x150] sm:$0xff]
  %v760 = vld [vmem:[%s1 + $0x158] sm:$0xff]
  %v761 = vld [vmem:[%s1 + $0x160] sm:$0xff]
  %v762 = vld [vmem:[%s1 + $0x168] sm:$0xff]
  %v763 = vld [vmem:[%s1 + $0x170] sm:$0xff]
  %v764 = vld [vmem:[%s1 + $0x178] sm:$0xff]
  %v765 = vld [vmem:[%s1 + $0x180] sm:$0xff]
  %v766 = vld [vmem:[%s1 + $0x188] sm:$0xff]
  %v767 = vld [vmem:[%s1 + $0x190] sm:$0xff]
  %v768 = vld [vmem:[%s1 + $0x198] sm:$0xff]
  %v769 = vld [vmem:[%s1 + $0x1a0] sm:$0xff]
  %v770 = vld [vmem:[%s1 + $0x1a8] sm:$0xff]
  %v771 = vld [vmem:[%s1 + $0x1b0] sm:$0xff]
  %v772 = vld [vmem:[%s1 + $0x1b8] sm:$0xff]
  %v773 = vld [vmem:[%s1 + $0x1c0] sm:$0xff]
  %v774 = vld [vmem:[%s1 + $0x1c8] sm:$0xff]
  %v775 = vld [vmem:[%s1 + $0x1d0] sm:$0xff]
  %v776 = vld [vmem:[%s1 + $0x1d8] sm:$0xff]
  %v777 = vld [vmem:[%s1 + $0x1e0] sm:$0xff]
  %v778 = vld [vmem:[%s1 + $0x1e8] sm:$0xff]
  %v779 = vld [vmem:[%s1 + $0x1f0] sm:$0xff]
  %v780 = vld [vmem:[%s1 + $0x1f8] sm:$0xff]
  %v781 = vld [vmem:[%s1 + $0x200] sm:$0xff]
  %v782 = vld [vmem:[%s1 + $0x208] sm:$0xff]
  %v783 = vld [vmem:[%s1 + $0x210] sm:$0xff]
  %v784 = vld [vmem:[%s1 + $0x218] sm:$0xff]
  %v785 = vld [vmem:[%s1 + $0x220] sm:$0xff]
  %v786 = vld [vmem:[%s1 + $0x228] sm:$0xff]
  %vm787 = vcmask 130048
  %v788 = vsel %vm787, %v717, 0.0
  %789 = vadd.xlane.f32.xlu0 %v788
  %v790 = vpop.xlane.xlu0 %789
  %v791 = vsel %vm787, %v718, 0.0
  %792 = vadd.xlane.f32.xlu0 %v791
  %v793 = vpop.xlane.xlu0 %792
  %v794 = vsel %vm787, %v719, 0.0
  %795 = vadd.xlane.f32.xlu0 %v794
  %v796 = vpop.xlane.xlu0 %795
  %v797 = vsel %vm787, %v720, 0.0
  %798 = vadd.xlane.f32.xlu0 %v797
  %v799 = vpop.xlane.xlu0 %798
  %v800 = vsel %vm787, %v721, 0.0
  %801 = vadd.xlane.f32.xlu0 %v800
  %v802 = vpop.xlane.xlu0 %801
  %v803 = vsel %vm787, %v722, 0.0
  %804 = vadd.xlane.f32.xlu0 %v803
  %v805 = vpop.xlane.xlu0 %804
  %v806 = vsel %vm787, %v723, 0.0
  %807 = vadd.xlane.f32.xlu0 %v806
  %v808 = vpop.xlane.xlu0 %807
  %v809 = vsel %vm787, %v724, 0.0
  %810 = vadd.xlane.f32.xlu0 %v809
  %v811 = vpop.xlane.xlu0 %810
  %v812 = vsel %vm787, %v725, 0.0
  %813 = vadd.xlane.f32.xlu0 %v812
  %v814 = vpop.xlane.xlu0 %813
  %v815 = vsel %vm787, %v726, 0.0
  %816 = vadd.xlane.f32.xlu0 %v815
  %v817 = vpop.xlane.xlu0 %816
  %v818 = vsel %vm787, %v727, 0.0
  %819 = vadd.xlane.f32.xlu0 %v818
  %v820 = vpop.xlane.xlu0 %819
  %v821 = vsel %vm787, %v728, 0.0
  %822 = vadd.xlane.f32.xlu0 %v821
  %v823 = vpop.xlane.xlu0 %822
  %v824 = vsel %vm787, %v729, 0.0
  %825 = vadd.xlane.f32.xlu0 %v824
  %v826 = vpop.xlane.xlu0 %825
  %v827 = vsel %vm787, %v730, 0.0
  %828 = vadd.xlane.f32.xlu0 %v827
  %v829 = vpop.xlane.xlu0 %828
  %v830 = vsel %vm787, %v731, 0.0
  %831 = vadd.xlane.f32.xlu0 %v830
  %v832 = vpop.xlane.xlu0 %831
  %v833 = vsel %vm787, %v732, 0.0
  %834 = vadd.xlane.f32.xlu0 %v833
  %v835 = vpop.xlane.xlu0 %834
  %v836 = vsel %vm787, %v733, 0.0
  %837 = vadd.xlane.f32.xlu0 %v836
  %v838 = vpop.xlane.xlu0 %837
  %v839 = vsel %vm787, %v734, 0.0
  %840 = vadd.xlane.f32.xlu0 %v839
  %v841 = vpop.xlane.xlu0 %840
  %v842 = vsel %vm787, %v735, 0.0
  %843 = vadd.xlane.f32.xlu0 %v842
  %v844 = vpop.xlane.xlu0 %843
  %v845 = vsel %vm787, %v736, 0.0
  %846 = vadd.xlane.f32.xlu0 %v845
  %v847 = vpop.xlane.xlu0 %846
  %v848 = vsel %vm787, %v737, 0.0
  %849 = vadd.xlane.f32.xlu0 %v848
  %v850 = vpop.xlane.xlu0 %849
  %v851 = vsel %vm787, %v738, 0.0
  %852 = vadd.xlane.f32.xlu0 %v851
  %v853 = vpop.xlane.xlu0 %852
  %v854 = vsel %vm787, %v739, 0.0
  %855 = vadd.xlane.f32.xlu0 %v854
  %v856 = vpop.xlane.xlu0 %855
  %v857 = vsel %vm787, %v740, 0.0
  %858 = vadd.xlane.f32.xlu0 %v857
  %v859 = vpop.xlane.xlu0 %858
  %v860 = vsel %vm787, %v741, 0.0
  %861 = vadd.xlane.f32.xlu0 %v860
  %v862 = vpop.xlane.xlu0 %861
  %v863 = vsel %vm787, %v742, 0.0
  %864 = vadd.xlane.f32.xlu0 %v863
  %v865 = vpop.xlane.xlu0 %864
  %v866 = vsel %vm787, %v743, 0.0
  %867 = vadd.xlane.f32.xlu0 %v866
  %v868 = vpop.xlane.xlu0 %867
  %v869 = vsel %vm787, %v744, 0.0
  %870 = vadd.xlane.f32.xlu0 %v869
  %v871 = vpop.xlane.xlu0 %870
  %v872 = vsel %vm787, %v745, 0.0
  %873 = vadd.xlane.f32.xlu0 %v872
  %v874 = vpop.xlane.xlu0 %873
  %v875 = vsel %vm787, %v746, 0.0
  %876 = vadd.xlane.f32.xlu0 %v875
  %v877 = vpop.xlane.xlu0 %876
  %v878 = vsel %vm787, %v747, 0.0
  %879 = vadd.xlane.f32.xlu0 %v878
  %v880 = vpop.xlane.xlu0 %879
  %v881 = vsel %vm787, %v748, 0.0
  %882 = vadd.xlane.f32.xlu0 %v881
  %v883 = vpop.xlane.xlu0 %882
  %v884 = vsel %vm787, %v749, 0.0
  %885 = vadd.xlane.f32.xlu0 %v884
  %v886 = vpop.xlane.xlu0 %885
  %v887 = vsel %vm787, %v750, 0.0
  %888 = vadd.xlane.f32.xlu0 %v887
  %v889 = vpop.xlane.xlu0 %888
  %v890 = vsel %vm787, %v751, 0.0
  %891 = vadd.xlane.f32.xlu0 %v890
  %v892 = vpop.xlane.xlu0 %891
  %v893 = vsel %vm787, %v752, 0.0
  %894 = vadd.xlane.f32.xlu0 %v893
  %v895 = vpop.xlane.xlu0 %894
  %v896 = vsel %vm787, %v753, 0.0
  %897 = vadd.xlane.f32.xlu0 %v896
  %v898 = vpop.xlane.xlu0 %897
  %v899 = vsel %vm787, %v754, 0.0
  %900 = vadd.xlane.f32.xlu0 %v899
  %v901 = vpop.xlane.xlu0 %900
  %v902 = vsel %vm787, %v755, 0.0
  %903 = vadd.xlane.f32.xlu0 %v902
  %v904 = vpop.xlane.xlu0 %903
  %v905 = vsel %vm787, %v756, 0.0
  %906 = vadd.xlane.f32.xlu0 %v905
  %v907 = vpop.xlane.xlu0 %906
  %v908 = vsel %vm787, %v757, 0.0
  %909 = vadd.xlane.f32.xlu0 %v908
  %v910 = vpop.xlane.xlu0 %909
  %v911 = vsel %vm787, %v758, 0.0
  %912 = vadd.xlane.f32.xlu0 %v911
  %v913 = vpop.xlane.xlu0 %912
  %v914 = vsel %vm787, %v759, 0.0
  %915 = vadd.xlane.f32.xlu0 %v914
  %v916 = vpop.xlane.xlu0 %915
  %v917 = vsel %vm787, %v760, 0.0
  %918 = vadd.xlane.f32.xlu0 %v917
  %v919 = vpop.xlane.xlu0 %918
  %v920 = vsel %vm787, %v761, 0.0
  %921 = vadd.xlane.f32.xlu0 %v920
  %v922 = vpop.xlane.xlu0 %921
  %v923 = vsel %vm787, %v762, 0.0
  %924 = vadd.xlane.f32.xlu0 %v923
  %v925 = vpop.xlane.xlu0 %924
  %v926 = vsel %vm787, %v763, 0.0
  %927 = vadd.xlane.f32.xlu0 %v926
  %v928 = vpop.xlane.xlu0 %927
  %v929 = vsel %vm787, %v764, 0.0
  %930 = vadd.xlane.f32.xlu0 %v929
  %v931 = vpop.xlane.xlu0 %930
  %v932 = vsel %vm787, %v765, 0.0
  %933 = vadd.xlane.f32.xlu0 %v932
  %v934 = vpop.xlane.xlu0 %933
  %v935 = vsel %vm787, %v766, 0.0
  %936 = vadd.xlane.f32.xlu0 %v935
  %v937 = vpop.xlane.xlu0 %936
  %v938 = vsel %vm787, %v767, 0.0
  %939 = vadd.xlane.f32.xlu0 %v938
  %v940 = vpop.xlane.xlu0 %939
  %v941 = vsel %vm787, %v768, 0.0
  %942 = vadd.xlane.f32.xlu0 %v941
  %v943 = vpop.xlane.xlu0 %942
  %v944 = vsel %vm787, %v769, 0.0
  %945 = vadd.xlane.f32.xlu0 %v944
  %v946 = vpop.xlane.xlu0 %945
  %v947 = vsel %vm787, %v770, 0.0
  %948 = vadd.xlane.f32.xlu0 %v947
  %v949 = vpop.xlane.xlu0 %948
  %v950 = vsel %vm787, %v771, 0.0
  %951 = vadd.xlane.f32.xlu0 %v950
  %v952 = vpop.xlane.xlu0 %951
  %v953 = vsel %vm787, %v772, 0.0
  %954 = vadd.xlane.f32.xlu0 %v953
  %v955 = vpop.xlane.xlu0 %954
  %v956 = vsel %vm787, %v773, 0.0
  %957 = vadd.xlane.f32.xlu0 %v956
  %v958 = vpop.xlane.xlu0 %957
  %v959 = vsel %vm787, %v774, 0.0
  %960 = vadd.xlane.f32.xlu0 %v959
  %v961 = vpop.xlane.xlu0 %960
  %v962 = vsel %vm787, %v775, 0.0
  %963 = vadd.xlane.f32.xlu0 %v962
  %v964 = vpop.xlane.xlu0 %963
  %v965 = vsel %vm787, %v776, 0.0
  %966 = vadd.xlane.f32.xlu0 %v965
  %v967 = vpop.xlane.xlu0 %966
  %v968 = vsel %vm787, %v777, 0.0
  %969 = vadd.xlane.f32.xlu0 %v968
  %v970 = vpop.xlane.xlu0 %969
  %v971 = vsel %vm787, %v778, 0.0
  %972 = vadd.xlane.f32.xlu0 %v971
  %v973 = vpop.xlane.xlu0 %972
  %v974 = vsel %vm787, %v779, 0.0
  %975 = vadd.xlane.f32.xlu0 %v974
  %v976 = vpop.xlane.xlu0 %975
  %v977 = vsel %vm787, %v780, 0.0
  %978 = vadd.xlane.f32.xlu0 %v977
  %v979 = vpop.xlane.xlu0 %978
  %v980 = vsel %vm787, %v781, 0.0
  %981 = vadd.xlane.f32.xlu0 %v980
  %v982 = vpop.xlane.xlu0 %981
  %v983 = vsel %vm787, %v782, 0.0
  %984 = vadd.xlane.f32.xlu0 %v983
  %v985 = vpop.xlane.xlu0 %984
  %v986 = vsel %vm787, %v783, 0.0
  %987 = vadd.xlane.f32.xlu0 %v986
  %v988 = vpop.xlane.xlu0 %987
  %v989 = vsel %vm787, %v784, 0.0
  %990 = vadd.xlane.f32.xlu0 %v989
  %v991 = vpop.xlane.xlu0 %990
  %v992 = vsel %vm787, %v785, 0.0
  %993 = vadd.xlane.f32.xlu0 %v992
  %v994 = vpop.xlane.xlu0 %993
  %v995 = vsel %vm787, %v786, 0.0
  %996 = vadd.xlane.f32.xlu0 %v995
  %v997 = vpop.xlane.xlu0 %996
  %v998 = vmax.f32 %v790, 1.0
  %v999 = vmax.f32 %v793, 1.0
  %v1000 = vmax.f32 %v796, 1.0
  %v1001 = vmax.f32 %v799, 1.0
  %v1002 = vmax.f32 %v802, 1.0
  %v1003 = vmax.f32 %v805, 1.0
  %v1004 = vmax.f32 %v808, 1.0
  %v1005 = vmax.f32 %v811, 1.0
  %v1006 = vmax.f32 %v814, 1.0
  %v1007 = vmax.f32 %v817, 1.0
  %v1008 = vmax.f32 %v820, 1.0
  %v1009 = vmax.f32 %v823, 1.0
  %v1010 = vmax.f32 %v826, 1.0
  %v1011 = vmax.f32 %v829, 1.0
  %v1012 = vmax.f32 %v832, 1.0
  %v1013 = vmax.f32 %v835, 1.0
  %v1014 = vmax.f32 %v838, 1.0
  %v1015 = vmax.f32 %v841, 1.0
  %v1016 = vmax.f32 %v844, 1.0
  %v1017 = vmax.f32 %v847, 1.0
  %v1018 = vmax.f32 %v850, 1.0
  %v1019 = vmax.f32 %v853, 1.0
  %v1020 = vmax.f32 %v856, 1.0
  %v1021 = vmax.f32 %v859, 1.0
  %v1022 = vmax.f32 %v862, 1.0
  %v1023 = vmax.f32 %v865, 1.0
  %v1024 = vmax.f32 %v868, 1.0
  %v1025 = vmax.f32 %v871, 1.0
  %v1026 = vmax.f32 %v874, 1.0
  %v1027 = vmax.f32 %v877, 1.0
  %v1028 = vmax.f32 %v880, 1.0
  %v1029 = vmax.f32 %v883, 1.0
  %v1030 = vmax.f32 %v886, 1.0
  %v1031 = vmax.f32 %v889, 1.0
  %v1032 = vmax.f32 %v892, 1.0
  %v1033 = vmax.f32 %v895, 1.0
  %v1034 = vmax.f32 %v898, 1.0
  %v1035 = vmax.f32 %v901, 1.0
  %v1036 = vmax.f32 %v904, 1.0
  %v1037 = vmax.f32 %v907, 1.0
  %v1038 = vmax.f32 %v910, 1.0
  %v1039 = vmax.f32 %v913, 1.0
  %v1040 = vmax.f32 %v916, 1.0
  %v1041 = vmax.f32 %v919, 1.0
  %v1042 = vmax.f32 %v922, 1.0
  %v1043 = vmax.f32 %v925, 1.0
  %v1044 = vmax.f32 %v928, 1.0
  %v1045 = vmax.f32 %v931, 1.0
  %v1046 = vmax.f32 %v934, 1.0
  %v1047 = vmax.f32 %v937, 1.0
  %v1048 = vmax.f32 %v940, 1.0
  %v1049 = vmax.f32 %v943, 1.0
  %v1050 = vmax.f32 %v946, 1.0
  %v1051 = vmax.f32 %v949, 1.0
  %v1052 = vmax.f32 %v952, 1.0
  %v1053 = vmax.f32 %v955, 1.0
  %v1054 = vmax.f32 %v958, 1.0
  %v1055 = vmax.f32 %v961, 1.0
  %v1056 = vmax.f32 %v964, 1.0
  %v1057 = vmax.f32 %v967, 1.0
  %v1058 = vmax.f32 %v970, 1.0
  %v1059 = vmax.f32 %v973, 1.0
  %v1060 = vmax.f32 %v976, 1.0
  %v1061 = vmax.f32 %v979, 1.0
  %v1062 = vmax.f32 %v982, 1.0
  %v1063 = vmax.f32 %v985, 1.0
  %v1064 = vmax.f32 %v988, 1.0
  %v1065 = vmax.f32 %v991, 1.0
  %v1066 = vmax.f32 %v994, 1.0
  %v1067 = vmax.f32 %v997, 1.0
  %v1068 = vrcp.pop %v998
  %v1069 = vrcp.pop %v999
  %v1070 = vrcp.pop %v1000
  %v1071 = vrcp.pop %v1001
  %v1072 = vrcp.pop %v1002
  %v1073 = vrcp.pop %v1003
  %v1074 = vrcp.pop %v1004
  %v1075 = vrcp.pop %v1005
  %v1076 = vrcp.pop %v1006
  %v1077 = vrcp.pop %v1007
  %v1078 = vrcp.pop %v1008
  %v1079 = vrcp.pop %v1009
  %v1080 = vrcp.pop %v1010
  %v1081 = vrcp.pop %v1011
  %v1082 = vrcp.pop %v1012
  %v1083 = vrcp.pop %v1013
  %v1084 = vrcp.pop %v1014
  %v1085 = vrcp.pop %v1015
  %v1086 = vrcp.pop %v1016
  %v1087 = vrcp.pop %v1017
  %v1088 = vrcp.pop %v1018
  %v1089 = vrcp.pop %v1019
  %v1090 = vrcp.pop %v1020
  %v1091 = vrcp.pop %v1021
  %v1092 = vrcp.pop %v1022
  %v1093 = vrcp.pop %v1023
  %v1094 = vrcp.pop %v1024
  %v1095 = vrcp.pop %v1025
  %v1096 = vrcp.pop %v1026
  %v1097 = vrcp.pop %v1027
  %v1098 = vrcp.pop %v1028
  %v1099 = vrcp.pop %v1029
  %v1100 = vrcp.pop %v1030
  %v1101 = vrcp.pop %v1031
  %v1102 = vrcp.pop %v1032
  %v1103 = vrcp.pop %v1033
  %v1104 = vrcp.pop %v1034
  %v1105 = vrcp.pop %v1035
  %v1106 = vrcp.pop %v1036
  %v1107 = vrcp.pop %v1037
  %v1108 = vrcp.pop %v1038
  %v1109 = vrcp.pop %v1039
  %v1110 = vrcp.pop %v1040
  %v1111 = vrcp.pop %v1041
  %v1112 = vrcp.pop %v1042
  %v1113 = vrcp.pop %v1043
  %v1114 = vrcp.pop %v1044
  %v1115 = vrcp.pop %v1045
  %v1116 = vrcp.pop %v1046
  %v1117 = vrcp.pop %v1047
  %v1118 = vrcp.pop %v1048
  %v1119 = vrcp.pop %v1049
  %v1120 = vrcp.pop %v1050
  %v1121 = vrcp.pop %v1051
  %v1122 = vrcp.pop %v1052
  %v1123 = vrcp.pop %v1053
  %v1124 = vrcp.pop %v1054
  %v1125 = vrcp.pop %v1055
  %v1126 = vrcp.pop %v1056
  %v1127 = vrcp.pop %v1057
  %v1128 = vrcp.pop %v1058
  %v1129 = vrcp.pop %v1059
  %v1130 = vrcp.pop %v1060
  %v1131 = vrcp.pop %v1061
  %v1132 = vrcp.pop %v1062
  %v1133 = vrcp.pop %v1063
  %v1134 = vrcp.pop %v1064
  %v1135 = vrcp.pop %v1065
  %v1136 = vrcp.pop %v1066
  %v1137 = vrcp.pop %v1067
  %v1139 = vsel %vm787, %v717, 0
  %v1142 = vsel %vm787, %v718, 0
  %1144 = vmatprep.subr.mxu0 0.0
  %1145 = vmatpush1.msra.mxu0 %v369
  %1146 = vmatprep.subr.mxu0 0.0
  %1147 = vmatpush1.msra.mxu0 %v374
  %1148 = vmatprep.subr.mxu0 0.0
  %1149 = vmatpush1.msra.mxu0 0.0
  %1150 = vmatprep.subr.mxu0 0.0
  %1151 = vmatpush1.msra.mxu0 0.0
  %1152 = vmatprep.subr.mxu0 0.0
  %1153 = vmatpush1.msra.mxu0 0.0
  %1154 = vmatprep.subr.mxu0 0.0
  %1155 = vmatpush1.msra.mxu0 0.0
  %1156 = vmatprep.subr.mxu0 0.0
  %1157 = vmatpush1.msra.mxu0 0.0
  %1158 = vmatprep.subr.mxu0 0.0
  %1159 = vmatpush1.msra.mxu0 0.0
  %1160 = vmatprep.subr.mxu0 0.0
  %1161 = vmatpush1.msra.mxu0 0.0
  %1162 = vmatprep.subr.mxu0 0.0
  %1163 = vmatpush1.msra.mxu0 0.0
  %1164 = vmatprep.subr.mxu0 0.0
  %1165 = vmatpush1.msra.mxu0 0.0
  %1166 = vmatprep.subr.mxu0 0.0
  %1167 = vmatpush1.msra.mxu0 0.0
  %1168 = vmatprep.subr.mxu0 0.0
  %1169 = vmatpush1.msra.mxu0 0.0
  %1170 = vmatprep.subr.mxu0 0.0
  %1171 = vmatpush1.msra.mxu0 0.0
  %1172 = vmatprep.subr.mxu0 0.0
  %1173 = vmatpush1.msra.mxu0 0.0
  %1174 = vmatprep.subr.mxu0 0.0
  %1175 = vmatpush1.msra.mxu0 0.0
  %1176 = vmatprep.subr.mxu0 0.0
  %1177 = vmatpush1.msra.mxu0 0.0
  %1178 = vmatprep.subr.mxu0 0.0
  %1179 = vmatpush1.msra.mxu0 0.0
  %1180 = vmatprep.subr.mxu0 0.0
  %1181 = vmatpush1.msra.mxu0 0.0
  %1182 = vmatprep.subr.mxu0 0.0
  %1183 = vmatpush1.msra.mxu0 0.0
  %1184 = vmatprep.subr.mxu0 0.0
  %1185 = vmatpush1.msra.mxu0 0.0
  %1186 = vmatprep.subr.mxu0 0.0
  %1187 = vmatpush1.msra.mxu0 0.0
  %1188 = vmatprep.subr.mxu0 0.0
  %1189 = vmatpush1.msra.mxu0 0.0
  %1190 = vmatprep.subr.mxu0 0.0
  %1191 = vmatpush1.msra.mxu0 0.0
  %1192 = vmatprep.subr.mxu0 0.0
  %1193 = vmatpush1.msra.mxu0 0.0
  %1194 = vmatprep.subr.mxu0 0.0
  %1195 = vmatpush1.msra.mxu0 0.0
  %1196 = vmatprep.subr.mxu0 0.0
  %1197 = vmatpush1.msra.mxu0 0.0
  %1198 = vmatprep.subr.mxu0 0.0
  %1199 = vmatpush1.msra.mxu0 0.0
  %1200 = vmatprep.subr.mxu0 0.0
  %1201 = vmatpush1.msra.mxu0 0.0
  %1202 = vmatprep.subr.mxu0 0.0
  %1203 = vmatpush1.msra.mxu0 0.0
  %1204 = vmatprep.subr.mxu0 0.0
  %1205 = vmatpush1.msra.mxu0 0.0
  %1206 = vmatprep.subr.mxu0 0.0
  %1207 = vmatpush1.msra.mxu0 0.0
  %1208 = vmatprep.mubr.f32.mxu0 0.0
  %1209 = vmatmul.mubr.f32.gmra.mrb[0].mxu0 %v1139
  %v1210 = vpop.f32.mrb[0].mxu0
  %v1211 = vadd.f32 0.0, %v1210
  %v1212 = vpop.f32.mrb[0].mxu0
  %1213 = vmatprep.mubr.f32.mxu0 0.0
  %1214 = vmatmul.mubr.f32.gmra.mrb[0].mxu0 %v1142
  %v1215 = vpop.f32.mrb[0].mxu0
  %v1216 = vadd.f32 0.0, %v1215
  %v1217 = vpop.f32.mrb[0].mxu0
  %1218 = vdwg.mxu0
  %v1220 = vsel %vm787, %v719, 0
  %v1223 = vsel %vm787, %v720, 0
  %1225 = vmatprep.subr.mxu0 0.0
  %1226 = vmatpush1.msra.mxu0 %v379
  %1227 = vmatprep.subr.mxu0 0.0
  %1228 = vmatpush1.msra.mxu0 %v384
  %1229 = vmatprep.subr.mxu0 0.0
  %1230 = vmatpush1.msra.mxu0 0.0
  %1231 = vmatprep.subr.mxu0 0.0
  %1232 = vmatpush1.msra.mxu0 0.0
  %1233 = vmatprep.subr.mxu0 0.0
  %1234 = vmatpush1.msra.mxu0 0.0
  %1235 = vmatprep.subr.mxu0 0.0
  %1236 = vmatpush1.msra.mxu0 0.0
  %1237 = vmatprep.subr.mxu0 0.0
  %1238 = vmatpush1.msra.mxu0 0.0
  %1239 = vmatprep.subr.mxu0 0.0
  %1240 = vmatpush1.msra.mxu0 0.0
  %1241 = vmatprep.subr.mxu0 0.0
  %1242 = vmatpush1.msra.mxu0 0.0
  %1243 = vmatprep.subr.mxu0 0.0
  %1244 = vmatpush1.msra.mxu0 0.0
  %1245 = vmatprep.subr.mxu0 0.0
  %1246 = vmatpush1.msra.mxu0 0.0
  %1247 = vmatprep.subr.mxu0 0.0
  %1248 = vmatpush1.msra.mxu0 0.0
  %1249 = vmatprep.subr.mxu0 0.0
  %1250 = vmatpush1.msra.mxu0 0.0
  %1251 = vmatprep.subr.mxu0 0.0
  %1252 = vmatpush1.msra.mxu0 0.0
  %1253 = vmatprep.subr.mxu0 0.0
  %1254 = vmatpush1.msra.mxu0 0.0
  %1255 = vmatprep.subr.mxu0 0.0
  %1256 = vmatpush1.msra.mxu0 0.0
  %1257 = vmatprep.subr.mxu0 0.0
  %1258 = vmatpush1.msra.mxu0 0.0
  %1259 = vmatprep.subr.mxu0 0.0
  %1260 = vmatpush1.msra.mxu0 0.0
  %1261 = vmatprep.subr.mxu0 0.0
  %1262 = vmatpush1.msra.mxu0 0.0
  %1263 = vmatprep.subr.mxu0 0.0
  %1264 = vmatpush1.msra.mxu0 0.0
  %1265 = vmatprep.subr.mxu0 0.0
  %1266 = vmatpush1.msra.mxu0 0.0
  %1267 = vmatprep.subr.mxu0 0.0
  %1268 = vmatpush1.msra.mxu0 0.0
  %1269 = vmatprep.subr.mxu0 0.0
  %1270 = vmatpush1.msra.mxu0 0.0
  %1271 = vmatprep.subr.mxu0 0.0
  %1272 = vmatpush1.msra.mxu0 0.0
  %1273 = vmatprep.subr.mxu0 0.0
  %1274 = vmatpush1.msra.mxu0 0.0
  %1275 = vmatprep.subr.mxu0 0.0
  %1276 = vmatpush1.msra.mxu0 0.0
  %1277 = vmatprep.subr.mxu0 0.0
  %1278 = vmatpush1.msra.mxu0 0.0
  %1279 = vmatprep.subr.mxu0 0.0
  %1280 = vmatpush1.msra.mxu0 0.0
  %1281 = vmatprep.subr.mxu0 0.0
  %1282 = vmatpush1.msra.mxu0 0.0
  %1283 = vmatprep.subr.mxu0 0.0
  %1284 = vmatpush1.msra.mxu0 0.0
  %1285 = vmatprep.subr.mxu0 0.0
  %1286 = vmatpush1.msra.mxu0 0.0
  %1287 = vmatprep.subr.mxu0 0.0
  %1288 = vmatpush1.msra.mxu0 0.0
  %1289 = vmatprep.mubr.f32.mxu0 0.0
  %1290 = vmatmul.mubr.f32.gmra.mrb[0].mxu0 %v1220
  %v1291 = vpop.f32.mrb[0].mxu0
  %v1292 = vadd.f32 0.0, %v1291
  %v1293 = vpop.f32.mrb[0].mxu0
  %1294 = vmatprep.mubr.f32.mxu0 0.0
  %1295 = vmatmul.mubr.f32.gmra.mrb[0].mxu0 %v1223
  %v1296 = vpop.f32.mrb[0].mxu0
  %v1297 = vadd.f32 0.0, %v1296
  %v1298 = vpop.f32.mrb[0].mxu0
  %1299 = vdwg.mxu0
  %v1301 = vsel %vm787, %v721, 0
  %v1304 = vsel %vm787, %v722, 0
  %1306 = vmatprep.subr.mxu0 0.0
  %1307 = vmatpush1.msra.mxu0 %v389
  %1308 = vmatprep.subr.mxu0 0.0
  %1309 = vmatpush1.msra.mxu0 %v394
  %1310 = vmatprep.subr.mxu0 0.0
  %1311 = vmatpush1.msra.mxu0 0.0
  %1312 = vmatprep.subr.mxu0 0.0
  %1313 = vmatpush1.msra.mxu0 0.0
  %1314 = vmatprep.subr.mxu0 0.0
  %1315 = vmatpush1.msra.mxu0 0.0
  %1316 = vmatprep.subr.mxu0 0.0
  %1317 = vmatpush1.msra.mxu0 0.0
  %1318 = vmatprep.subr.mxu0 0.0
  %1319 = vmatpush1.msra.mxu0 0.0
  %1320 = vmatprep.subr.mxu0 0.0
  %1321 = vmatpush1.msra.mxu0 0.0
  %1322 = vmatprep.subr.mxu0 0.0
  %1323 = vmatpush1.msra.mxu0 0.0
  %1324 = vmatprep.subr.mxu0 0.0
  %1325 = vmatpush1.msra.mxu0 0.0
  %1326 = vmatprep.subr.mxu0 0.0
  %1327 = vmatpush1.msra.mxu0 0.0
  %1328 = vmatprep.subr.mxu0 0.0
  %1329 = vmatpush1.msra.mxu0 0.0
  %1330 = vmatprep.subr.mxu0 0.0
  %1331 = vmatpush1.msra.mxu0 0.0
  %1332 = vmatprep.subr.mxu0 0.0
  %1333 = vmatpush1.msra.mxu0 0.0
  %1334 = vmatprep.subr.mxu0 0.0
  %1335 = vmatpush1.msra.mxu0 0.0
  %1336 = vmatprep.subr.mxu0 0.0
  %1337 = vmatpush1.msra.mxu0 0.0
  %1338 = vmatprep.subr.mxu0 0.0
  %1339 = vmatpush1.msra.mxu0 0.0
  %1340 = vmatprep.subr.mxu0 0.0
  %1341 = vmatpush1.msra.mxu0 0.0
  %1342 = vmatprep.subr.mxu0 0.0
  %1343 = vmatpush1.msra.mxu0 0.0
  %1344 = vmatprep.subr.mxu0 0.0
  %1345 = vmatpush1.msra.mxu0 0.0
  %1346 = vmatprep.subr.mxu0 0.0
  %1347 = vmatpush1.msra.mxu0 0.0
  %1348 = vmatprep.subr.mxu0 0.0
  %1349 = vmatpush1.msra.mxu0 0.0
  %1350 = vmatprep.subr.mxu0 0.0
  %1351 = vmatpush1.msra.mxu0 0.0
  %1352 = vmatprep.subr.mxu0 0.0
  %1353 = vmatpush1.msra.mxu0 0.0
  %1354 = vmatprep.subr.mxu0 0.0
  %1355 = vmatpush1.msra.mxu0 0.0
  %1356 = vmatprep.subr.mxu0 0.0
  %1357 = vmatpush1.msra.mxu0 0.0
  %1358 = vmatprep.subr.mxu0 0.0
  %1359 = vmatpush1.msra.mxu0 0.0
  %1360 = vmatprep.subr.mxu0 0.0
  %1361 = vmatpush1.msra.mxu0 0.0
  %1362 = vmatprep.subr.mxu0 0.0
  %1363 = vmatpush1.msra.mxu0 0.0
  %1364 = vmatprep.subr.mxu0 0.0
  %1365 = vmatpush1.msra.mxu0 0.0
  %1366 = vmatprep.subr.mxu0 0.0
  %1367 = vmatpush1.msra.mxu0 0.0
  %1368 = vmatprep.subr.mxu0 0.0
  %1369 = vmatpush1.msra.mxu0 0.0
  %1370 = vmatprep.mubr.f32.mxu0 0.0
  %1371 = vmatmul.mubr.f32.gmra.mrb[0].mxu0 %v1301
  %v1372 = vpop.f32.mrb[0].mxu0
  %v1373 = vadd.f32 0.0, %v1372
  %v1374 = vpop.f32.mrb[0].mxu0
  %1375 = vmatprep.mubr.f32.mxu0 0.0
  %1376 = vmatmul.mubr.f32.gmra.mrb[0].mxu0 %v1304
  %v1377 = vpop.f32.mrb[0].mxu0
  %v1378 = vadd.f32 0.0, %v1377
  %v1379 = vpop.f32.mrb[0].mxu0
  %1380 = vdwg.mxu0
  %v1382 = vsel %vm787, %v723, 0
  %v1385 = vsel %vm787, %v724, 0
  %1387 = vmatprep.subr.mxu0 0.0
  %1388 = vmatpush1.msra.mxu0 %v399
  %1389 = vmatprep.subr.mxu0 0.0
  %1390 = vmatpush1.msra.mxu0 %v404
  %1391 = vmatprep.subr.mxu0 0.0
  %1392 = vmatpush1.msra.mxu0 0.0
  %1393 = vmatprep.subr.mxu0 0.0
  %1394 = vmatpush1.msra.mxu0 0.0
  %1395 = vmatprep.subr.mxu0 0.0
  %1396 = vmatpush1.msra.mxu0 0.0
  %1397 = vmatprep.subr.mxu0 0.0
  %1398 = vmatpush1.msra.mxu0 0.0
  %1399 = vmatprep.subr.mxu0 0.0
  %1400 = vmatpush1.msra.mxu0 0.0
  %1401 = vmatprep.subr.mxu0 0.0
  %1402 = vmatpush1.msra.mxu0 0.0
  %1403 = vmatprep.subr.mxu0 0.0
  %1404 = vmatpush1.msra.mxu0 0.0
  %1405 = vmatprep.subr.mxu0 0.0
  %1406 = vmatpush1.msra.mxu0 0.0
  %1407 = vmatprep.subr.mxu0 0.0
  %1408 = vmatpush1.msra.mxu0 0.0
  %1409 = vmatprep.subr.mxu0 0.0
  %1410 = vmatpush1.msra.mxu0 0.0
  %1411 = vmatprep.subr.mxu0 0.0
  %1412 = vmatpush1.msra.mxu0 0.0
  %1413 = vmatprep.subr.mxu0 0.0
  %1414 = vmatpush1.msra.mxu0 0.0
  %1415 = vmatprep.subr.mxu0 0.0
  %1416 = vmatpush1.msra.mxu0 0.0
  %1417 = vmatprep.subr.mxu0 0.0
  %1418 = vmatpush1.msra.mxu0 0.0
  %1419 = vmatprep.subr.mxu0 0.0
  %1420 = vmatpush1.msra.mxu0 0.0
  %1421 = vmatprep.subr.mxu0 0.0
  %1422 = vmatpush1.msra.mxu0 0.0
  %1423 = vmatprep.subr.mxu0 0.0
  %1424 = vmatpush1.msra.mxu0 0.0
  %1425 = vmatprep.subr.mxu0 0.0
  %1426 = vmatpush1.msra.mxu0 0.0
  %1427 = vmatprep.subr.mxu0 0.0
  %1428 = vmatpush1.msra.mxu0 0.0
  %1429 = vmatprep.subr.mxu0 0.0
  %1430 = vmatpush1.msra.mxu0 0.0
  %1431 = vmatprep.subr.mxu0 0.0
  %1432 = vmatpush1.msra.mxu0 0.0
  %1433 = vmatprep.subr.mxu0 0.0
  %1434 = vmatpush1.msra.mxu0 0.0
  %1435 = vmatprep.subr.mxu0 0.0
  %1436 = vmatpush1.msra.mxu0 0.0
  %1437 = vmatprep.subr.mxu0 0.0
  %1438 = vmatpush1.msra.mxu0 0.0
  %1439 = vmatprep.subr.mxu0 0.0
  %1440 = vmatpush1.msra.mxu0 0.0
  %1441 = vmatprep.subr.mxu0 0.0
  %1442 = vmatpush1.msra.mxu0 0.0
  %1443 = vmatprep.subr.mxu0 0.0
  %1444 = vmatpush1.msra.mxu0 0.0
  %1445 = vmatprep.subr.mxu0 0.0
  %1446 = vmatpush1.msra.mxu0 0.0
  %1447 = vmatprep.subr.mxu0 0.0
  %1448 = vmatpush1.msra.mxu0 0.0
  %1449 = vmatprep.subr.mxu0 0.0
  %1450 = vmatpush1.msra.mxu0 0.0
  %1451 = vmatprep.mubr.f32.mxu0 0.0
  %1452 = vmatmul.mubr.f32.gmra.mrb[0].mxu0 %v1382
  %v1453 = vpop.f32.mrb[0].mxu0
  %v1454 = vadd.f32 0.0, %v1453
  %v1455 = vpop.f32.mrb[0].mxu0
  %1456 = vmatprep.mubr.f32.mxu0 0.0
  %1457 = vmatmul.mubr.f32.gmra.mrb[0].mxu0 %v1385
  %v1458 = vpop.f32.mrb[0].mxu0
  %v1459 = vadd.f32 0.0, %v1458
  %v1460 = vpop.f32.mrb[0].mxu0
  %1461 = vdwg.mxu0
  %v1463 = vsel %vm787, %v725, 0
  %v1466 = vsel %vm787, %v726, 0
  %1468 = vmatprep.subr.mxu0 0.0
  %1469 = vmatpush1.msra.mxu0 %v409
  %1470 = vmatprep.subr.mxu0 0.0
  %1471 = vmatpush1.msra.mxu0 %v414
  %1472 = vmatprep.subr.mxu0 0.0
  %1473 = vmatpush1.msra.mxu0 0.0
  %1474 = vmatprep.subr.mxu0 0.0
  %1475 = vmatpush1.msra.mxu0 0.0
  %1476 = vmatprep.subr.mxu0 0.0
  %1477 = vmatpush1.msra.mxu0 0.0
  %1478 = vmatprep.subr.mxu0 0.0
  %1479 = vmatpush1.msra.mxu0 0.0
  %1480 = vmatprep.subr.mxu0 0.0
  %1481 = vmatpush1.msra.mxu0 0.0
  %1482 = vmatprep.subr.mxu0 0.0
  %1483 = vmatpush1.msra.mxu0 0.0
  %1484 = vmatprep.subr.mxu0 0.0
  %1485 = vmatpush1.msra.mxu0 0.0
  %1486 = vmatprep.subr.mxu0 0.0
  %1487 = vmatpush1.msra.mxu0 0.0
  %1488 = vmatprep.subr.mxu0 0.0
  %1489 = vmatpush1.msra.mxu0 0.0
  %1490 = vmatprep.subr.mxu0 0.0
  %1491 = vmatpush1.msra.mxu0 0.0
  %1492 = vmatprep.subr.mxu0 0.0
  %1493 = vmatpush1.msra.mxu0 0.0
  %1494 = vmatprep.subr.mxu0 0.0
  %1495 = vmatpush1.msra.mxu0 0.0
  %1496 = vmatprep.subr.mxu0 0.0
  %1497 = vmatpush1.msra.mxu0 0.0
  %1498 = vmatprep.subr.mxu0 0.0
  %1499 = vmatpush1.msra.mxu0 0.0
  %1500 = vmatprep.subr.mxu0 0.0
  %1501 = vmatpush1.msra.mxu0 0.0
  %1502 = vmatprep.subr.mxu0 0.0
  %1503 = vmatpush1.msra.mxu0 0.0
  %1504 = vmatprep.subr.mxu0 0.0
  %1505 = vmatpush1.msra.mxu0 0.0
  %1506 = vmatprep.subr.mxu0 0.0
  %1507 = vmatpush1.msra.mxu0 0.0
  %1508 = vmatprep.subr.mxu0 0.0
  %1509 = vmatpush1.msra.mxu0 0.0
  %1510 = vmatprep.subr.mxu0 0.0
  %1511 = vmatpush1.msra.mxu0 0.0
  %1512 = vmatprep.subr.mxu0 0.0
  %1513 = vmatpush1.msra.mxu0 0.0
  %1514 = vmatprep.subr.mxu0 0.0
  %1515 = vmatpush1.msra.mxu0 0.0
  %1516 = vmatprep.subr.mxu0 0.0
  %1517 = vmatpush1.msra.mxu0 0.0
  %1518 = vmatprep.subr.mxu0 0.0
  %1519 = vmatpush1.msra.mxu0 0.0
  %1520 = vmatprep.subr.mxu0 0.0
  %1521 = vmatpush1.msra.mxu0 0.0
  %1522 = vmatprep.subr.mxu0 0.0
  %1523 = vmatpush1.msra.mxu0 0.0
  %1524 = vmatprep.subr.mxu0 0.0
  %1525 = vmatpush1.msra.mxu0 0.0
  %1526 = vmatprep.subr.mxu0 0.0
  %1527 = vmatpush1.msra.mxu0 0.0
  %1528 = vmatprep.subr.mxu0 0.0
  %1529 = vmatpush1.msra.mxu0 0.0
  %1530 = vmatprep.subr.mxu0 0.0
  %1531 = vmatpush1.msra.mxu0 0.0
  %1532 = vmatprep.mubr.f32.mxu0 0.0
  %1533 = vmatmul.mubr.f32.gmra.mrb[0].mxu0 %v1463
  %v1534 = vpop.f32.mrb[0].mxu0
  %v1535 = vadd.f32 0.0, %v1534
  %v1536 = vpop.f32.mrb[0].mxu0
  %1537 = vmatprep.mubr.f32.mxu0 0.0
  %1538 = vmatmul.mubr.f32.gmra.mrb[0].mxu0 %v1466
  %v1539 = vpop.f32.mrb[0].mxu0
  %v1540 = vadd.f32 0.0, %v1539
  %v1541 = vpop.f32.mrb[0].mxu0
  %1542 = vdwg.mxu0
  %v1544 = vsel %vm787, %v727, 0
  %v1547 = vsel %vm787, %v728, 0
  %1549 = vmatprep.subr.mxu0 0.0
  %1550 = vmatpush1.msra.mxu0 %v419
  %1551 = vmatprep.subr.mxu0 0.0
  %1552 = vmatpush1.msra.mxu0 %v424
  %1553 = vmatprep.subr.mxu0 0.0
  %1554 = vmatpush1.msra.mxu0 0.0
  %1555 = vmatprep.subr.mxu0 0.0
  %1556 = vmatpush1.msra.mxu0 0.0
  %1557 = vmatprep.subr.mxu0 0.0
  %1558 = vmatpush1.msra.mxu0 0.0
  %1559 = vmatprep.subr.mxu0 0.0
  %1560 = vmatpush1.msra.mxu0 0.0
  %1561 = vmatprep.subr.mxu0 0.0
  %1562 = vmatpush1.msra.mxu0 0.0
  %1563 = vmatprep.subr.mxu0 0.0
  %1564 = vmatpush1.msra.mxu0 0.0
  %1565 = vmatprep.subr.mxu0 0.0
  %1566 = vmatpush1.msra.mxu0 0.0
  %1567 = vmatprep.subr.mxu0 0.0
  %1568 = vmatpush1.msra.mxu0 0.0
  %1569 = vmatprep.subr.mxu0 0.0
  %1570 = vmatpush1.msra.mxu0 0.0
  %1571 = vmatprep.subr.mxu0 0.0
  %1572 = vmatpush1.msra.mxu0 0.0
  %1573 = vmatprep.subr.mxu0 0.0
  %1574 = vmatpush1.msra.mxu0 0.0
  %1575 = vmatprep.subr.mxu0 0.0
  %1576 = vmatpush1.msra.mxu0 0.0
  %1577 = vmatprep.subr.mxu0 0.0
  %1578 = vmatpush1.msra.mxu0 0.0
  %1579 = vmatprep.subr.mxu0 0.0
  %1580 = vmatpush1.msra.mxu0 0.0
  %1581 = vmatprep.subr.mxu0 0.0
  %1582 = vmatpush1.msra.mxu0 0.0
  %1583 = vmatprep.subr.mxu0 0.0
  %1584 = vmatpush1.msra.mxu0 0.0
  %1585 = vmatprep.subr.mxu0 0.0
  %1586 = vmatpush1.msra.mxu0 0.0
  %1587 = vmatprep.subr.mxu0 0.0
  %1588 = vmatpush1.msra.mxu0 0.0
  %1589 = vmatprep.subr.mxu0 0.0
  %1590 = vmatpush1.msra.mxu0 0.0
  %1591 = vmatprep.subr.mxu0 0.0
  %1592 = vmatpush1.msra.mxu0 0.0
  %1593 = vmatprep.subr.mxu0 0.0
  %1594 = vmatpush1.msra.mxu0 0.0
  %1595 = vmatprep.subr.mxu0 0.0
  %1596 = vmatpush1.msra.mxu0 0.0
  %1597 = vmatprep.subr.mxu0 0.0
  %1598 = vmatpush1.msra.mxu0 0.0
  %1599 = vmatprep.subr.mxu0 0.0
  %1600 = vmatpush1.msra.mxu0 0.0
  %1601 = vmatprep.subr.mxu0 0.0
  %1602 = vmatpush1.msra.mxu0 0.0
  %1603 = vmatprep.subr.mxu0 0.0
  %1604 = vmatpush1.msra.mxu0 0.0
  %1605 = vmatprep.subr.mxu0 0.0
  %1606 = vmatpush1.msra.mxu0 0.0
  %1607 = vmatprep.subr.mxu0 0.0
  %1608 = vmatpush1.msra.mxu0 0.0
  %1609 = vmatprep.subr.mxu0 0.0
  %1610 = vmatpush1.msra.mxu0 0.0
  %1611 = vmatprep.subr.mxu0 0.0
  %1612 = vmatpush1.msra.mxu0 0.0
  %1613 = vmatprep.mubr.f32.mxu0 0.0
  %1614 = vmatmul.mubr.f32.gmra.mrb[0].mxu0 %v1544
  %v1615 = vpop.f32.mrb[0].mxu0
  %v1616 = vadd.f32 0.0, %v1615
  %v1617 = vpop.f32.mrb[0].mxu0
  %1618 = vmatprep.mubr.f32.mxu0 0.0
  %1619 = vmatmul.mubr.f32.gmra.mrb[0].mxu0 %v1547
  %v1620 = vpop.f32.mrb[0].mxu0
  %v1621 = vadd.f32 0.0, %v1620
  %v1622 = vpop.f32.mrb[0].mxu0
  %1623 = vdwg.mxu0
  %v1625 = vsel %vm787, %v729, 0
  %v1628 = vsel %vm787, %v730, 0
  %1630 = vmatprep.subr.mxu0 0.0
  %1631 = vmatpush1.msra.mxu0 %v429
  %1632 = vmatprep.subr.mxu0 0.0
  %1633 = vmatpush1.msra.mxu0 %v434
  %1634 = vmatprep.subr.mxu0 0.0
  %1635 = vmatpush1.msra.mxu0 0.0
  %1636 = vmatprep.subr.mxu0 0.0
  %1637 = vmatpush1.msra.mxu0 0.0
  %1638 = vmatprep.subr.mxu0 0.0
  %1639 = vmatpush1.msra.mxu0 0.0
  %1640 = vmatprep.subr.mxu0 0.0
  %1641 = vmatpush1.msra.mxu0 0.0
  %1642 = vmatprep.subr.mxu0 0.0
  %1643 = vmatpush1.msra.mxu0 0.0
  %1644 = vmatprep.subr.mxu0 0.0
  %1645 = vmatpush1.msra.mxu0 0.0
  %1646 = vmatprep.subr.mxu0 0.0
  %1647 = vmatpush1.msra.mxu0 0.0
  %1648 = vmatprep.subr.mxu0 0.0
  %1649 = vmatpush1.msra.mxu0 0.0
  %1650 = vmatprep.subr.mxu0 0.0
  %1651 = vmatpush1.msra.mxu0 0.0
  %1652 = vmatprep.subr.mxu0 0.0
  %1653 = vmatpush1.msra.mxu0 0.0
  %1654 = vmatprep.subr.mxu0 0.0
  %1655 = vmatpush1.msra.mxu0 0.0
  %1656 = vmatprep.subr.mxu0 0.0
  %1657 = vmatpush1.msra.mxu0 0.0
  %1658 = vmatprep.subr.mxu0 0.0
  %1659 = vmatpush1.msra.mxu0 0.0
  %1660 = vmatprep.subr.mxu0 0.0
  %1661 = vmatpush1.msra.mxu0 0.0
  %1662 = vmatprep.subr.mxu0 0.0
  %1663 = vmatpush1.msra.mxu0 0.0
  %1664 = vmatprep.subr.mxu0 0.0
  %1665 = vmatpush1.msra.mxu0 0.0
  %1666 = vmatprep.subr.mxu0 0.0
  %1667 = vmatpush1.msra.mxu0 0.0
  %1668 = vmatprep.subr.mxu0 0.0
  %1669 = vmatpush1.msra.mxu0 0.0
  %1670 = vmatprep.subr.mxu0 0.0
  %1671 = vmatpush1.msra.mxu0 0.0
  %1672 = vmatprep.subr.mxu0 0.0
  %1673 = vmatpush1.msra.mxu0 0.0
  %1674 = vmatprep.subr.mxu0 0.0
  %1675 = vmatpush1.msra.mxu0 0.0
  %1676 = vmatprep.subr.mxu0 0.0
  %1677 = vmatpush1.msra.mxu0 0.0
  %1678 = vmatprep.subr.mxu0 0.0
  %1679 = vmatpush1.msra.mxu0 0.0
  %1680 = vmatprep.subr.mxu0 0.0
  %1681 = vmatpush1.msra.mxu0 0.0
  %1682 = vmatprep.subr.mxu0 0.0
  %1683 = vmatpush1.msra.mxu0 0.0
  %1684 = vmatprep.subr.mxu0 0.0
  %1685 = vmatpush1.msra.mxu0 0.0
  %1686 = vmatprep.subr.mxu0 0.0
  %1687 = vmatpush1.msra.mxu0 0.0
  %1688 = vmatprep.subr.mxu0 0.0
  %1689 = vmatpush1.msra.mxu0 0.0
  %1690 = vmatprep.subr.mxu0 0.0
  %1691 = vmatpush1.msra.mxu0 0.0
  %1692 = vmatprep.subr.mxu0 0.0
  %1693 = vmatpush1.msra.mxu0 0.0
  %1694 = vmatprep.mubr.f32.mxu0 0.0
  %1695 = vmatmul.mubr.f32.gmra.mrb[0].mxu0 %v1625
  %v1696 = vpop.f32.mrb[0].mxu0
  %v1697 = vadd.f32 0.0, %v1696
  %v1698 = vpop.f32.mrb[0].mxu0
  %1699 = vmatprep.mubr.f32.mxu0 0.0
  %1700 = vmatmul.mubr.f32.gmra.mrb[0].mxu0 %v1628
  %v1701 = vpop.f32.mrb[0].mxu0
  %v1702 = vadd.f32 0.0, %v1701
  %v1703 = vpop.f32.mrb[0].mxu0
  %1704 = vdwg.mxu0
  %v1706 = vsel %vm787, %v731, 0
  %v1709 = vsel %vm787, %v732, 0
  %1711 = vmatprep.subr.mxu0 0.0
  %1712 = vmatpush1.msra.mxu0 %v439
  %1713 = vmatprep.subr.mxu0 0.0
  %1714 = vmatpush1.msra.mxu0 %v444
  %1715 = vmatprep.subr.mxu0 0.0
  %1716 = vmatpush1.msra.mxu0 0.0
  %1717 = vmatprep.subr.mxu0 0.0
  %1718 = vmatpush1.msra.mxu0 0.0
  %1719 = vmatprep.subr.mxu0 0.0
  %1720 = vmatpush1.msra.mxu0 0.0
  %1721 = vmatprep.subr.mxu0 0.0
  %1722 = vmatpush1.msra.mxu0 0.0
  %1723 = vmatprep.subr.mxu0 0.0
  %1724 = vmatpush1.msra.mxu0 0.0
  %1725 = vmatprep.subr.mxu0 0.0
  %1726 = vmatpush1.msra.mxu0 0.0
  %1727 = vmatprep.subr.mxu0 0.0
  %1728 = vmatpush1.msra.mxu0 0.0
  %1729 = vmatprep.subr.mxu0 0.0
  %1730 = vmatpush1.msra.mxu0 0.0
  %1731 = vmatprep.subr.mxu0 0.0
  %1732 = vmatpush1.msra.mxu0 0.0
  %1733 = vmatprep.subr.mxu0 0.0
  %1734 = vmatpush1.msra.mxu0 0.0
  %1735 = vmatprep.subr.mxu0 0.0
  %1736 = vmatpush1.msra.mxu0 0.0
  %1737 = vmatprep.subr.mxu0 0.0
  %1738 = vmatpush1.msra.mxu0 0.0
  %1739 = vmatprep.subr.mxu0 0.0
  %1740 = vmatpush1.msra.mxu0 0.0
  %1741 = vmatprep.subr.mxu0 0.0
  %1742 = vmatpush1.msra.mxu0 0.0
  %1743 = vmatprep.subr.mxu0 0.0
  %1744 = vmatpush1.msra.mxu0 0.0
  %1745 = vmatprep.subr.mxu0 0.0
  %1746 = vmatpush1.msra.mxu0 0.0
  %1747 = vmatprep.subr.mxu0 0.0
  %1748 = vmatpush1.msra.mxu0 0.0
  %1749 = vmatprep.subr.mxu0 0.0
  %1750 = vmatpush1.msra.mxu0 0.0
  %1751 = vmatprep.subr.mxu0 0.0
  %1752 = vmatpush1.msra.mxu0 0.0
  %1753 = vmatprep.subr.mxu0 0.0
  %1754 = vmatpush1.msra.mxu0 0.0
  %1755 = vmatprep.subr.mxu0 0.0
  %1756 = vmatpush1.msra.mxu0 0.0
  %1757 = vmatprep.subr.mxu0 0.0
  %1758 = vmatpush1.msra.mxu0 0.0
  %1759 = vmatprep.subr.mxu0 0.0
  %1760 = vmatpush1.msra.mxu0 0.0
  %1761 = vmatprep.subr.mxu0 0.0
  %1762 = vmatpush1.msra.mxu0 0.0
  %1763 = vmatprep.subr.mxu0 0.0
  %1764 = vmatpush1.msra.mxu0 0.0
  %1765 = vmatprep.subr.mxu0 0.0
  %1766 = vmatpush1.msra.mxu0 0.0
  %1767 = vmatprep.subr.mxu0 0.0
  %1768 = vmatpush1.msra.mxu0 0.0
  %1769 = vmatprep.subr.mxu0 0.0
  %1770 = vmatpush1.msra.mxu0 0.0
  %1771 = vmatprep.subr.mxu0 0.0
  %1772 = vmatpush1.msra.mxu0 0.0
  %1773 = vmatprep.subr.mxu0 0.0
  %1774 = vmatpush1.msra.mxu0 0.0
  %1775 = vmatprep.mubr.f32.mxu0 0.0
  %1776 = vmatmul.mubr.f32.gmra.mrb[0].mxu0 %v1706
  %v1777 = vpop.f32.mrb[0].mxu0
  %v1778 = vadd.f32 0.0, %v1777
  %v1779 = vpop.f32.mrb[0].mxu0
  %1780 = vmatprep.mubr.f32.mxu0 0.0
  %1781 = vmatmul.mubr.f32.gmra.mrb[0].mxu0 %v1709
  %v1782 = vpop.f32.mrb[0].mxu0
  %v1783 = vadd.f32 0.0, %v1782
  %v1784 = vpop.f32.mrb[0].mxu0
  %1785 = vdwg.mxu0
  %v1787 = vsel %vm787, %v733, 0
  %v1790 = vsel %vm787, %v734, 0
  %1792 = vmatprep.subr.mxu0 0.0
  %1793 = vmatpush1.msra.mxu0 %v449
  %1794 = vmatprep.subr.mxu0 0.0
  %1795 = vmatpush1.msra.mxu0 %v454
  %1796 = vmatprep.subr.mxu0 0.0
  %1797 = vmatpush1.msra.mxu0 0.0
  %1798 = vmatprep.subr.mxu0 0.0
  %1799 = vmatpush1.msra.mxu0 0.0
  %1800 = vmatprep.subr.mxu0 0.0
  %1801 = vmatpush1.msra.mxu0 0.0
  %1802 = vmatprep.subr.mxu0 0.0
  %1803 = vmatpush1.msra.mxu0 0.0
  %1804 = vmatprep.subr.mxu0 0.0
  %1805 = vmatpush1.msra.mxu0 0.0
  %1806 = vmatprep.subr.mxu0 0.0
  %1807 = vmatpush1.msra.mxu0 0.0
  %1808 = vmatprep.subr.mxu0 0.0
  %1809 = vmatpush1.msra.mxu0 0.0
  %1810 = vmatprep.subr.mxu0 0.0
  %1811 = vmatpush1.msra.mxu0 0.0
  %1812 = vmatprep.subr.mxu0 0.0
  %1813 = vmatpush1.msra.mxu0 0.0
  %1814 = vmatprep.subr.mxu0 0.0
  %1815 = vmatpush1.msra.mxu0 0.0
  %1816 = vmatprep.subr.mxu0 0.0
  %1817 = vmatpush1.msra.mxu0 0.0
  %1818 = vmatprep.subr.mxu0 0.0
  %1819 = vmatpush1.msra.mxu0 0.0
  %1820 = vmatprep.subr.mxu0 0.0
  %1821 = vmatpush1.msra.mxu0 0.0
  %1822 = vmatprep.subr.mxu0 0.0
  %1823 = vmatpush1.msra.mxu0 0.0
  %1824 = vmatprep.subr.mxu0 0.0
  %1825 = vmatpush1.msra.mxu0 0.0
  %1826 = vmatprep.subr.mxu0 0.0
  %1827 = vmatpush1.msra.mxu0 0.0
  %1828 = vmatprep.subr.mxu0 0.0
  %1829 = vmatpush1.msra.mxu0 0.0
  %1830 = vmatprep.subr.mxu0 0.0
  %1831 = vmatpush1.msra.mxu0 0.0
  %1832 = vmatprep.subr.mxu0 0.0
  %1833 = vmatpush1.msra.mxu0 0.0
  %1834 = vmatprep.subr.mxu0 0.0
  %1835 = vmatpush1.msra.mxu0 0.0
  %1836 = vmatprep.subr.mxu0 0.0
  %1837 = vmatpush1.msra.mxu0 0.0
  %1838 = vmatprep.subr.mxu0 0.0
  %1839 = vmatpush1.msra.mxu0 0.0
  %1840 = vmatprep.subr.mxu0 0.0
  %1841 = vmatpush1.msra.mxu0 0.0
  %1842 = vmatprep.subr.mxu0 0.0
  %1843 = vmatpush1.msra.mxu0 0.0
  %1844 = vmatprep.subr.mxu0 0.0
  %1845 = vmatpush1.msra.mxu0 0.0
  %1846 = vmatprep.subr.mxu0 0.0
  %1847 = vmatpush1.msra.mxu0 0.0
  %1848 = vmatprep.subr.mxu0 0.0
  %1849 = vmatpush1.msra.mxu0 0.0
  %1850 = vmatprep.subr.mxu0 0.0
  %1851 = vmatpush1.msra.mxu0 0.0
  %1852 = vmatprep.subr.mxu0 0.0
  %1853 = vmatpush1.msra.mxu0 0.0
  %1854 = vmatprep.subr.mxu0 0.0
  %1855 = vmatpush1.msra.mxu0 0.0
  %1856 = vmatprep.mubr.f32.mxu0 0.0
  %1857 = vmatmul.mubr.f32.gmra.mrb[0].mxu0 %v1787
  %v1858 = vpop.f32.mrb[0].mxu0
  %v1859 = vadd.f32 0.0, %v1858
  %v1860 = vpop.f32.mrb[0].mxu0
  %1861 = vmatprep.mubr.f32.mxu0 0.0
  %1862 = vmatmul.mubr.f32.gmra.mrb[0].mxu0 %v1790
  %v1863 = vpop.f32.mrb[0].mxu0
  %v1864 = vadd.f32 0.0, %v1863
  %v1865 = vpop.f32.mrb[0].mxu0
  %1866 = vdwg.mxu0
  %v1868 = vsel %vm787, %v735, 0
  %v1871 = vsel %vm787, %v736, 0
  %1873 = vmatprep.subr.mxu0 0.0
  %1874 = vmatpush1.msra.mxu0 %v459
  %1875 = vmatprep.subr.mxu0 0.0
  %1876 = vmatpush1.msra.mxu0 %v464
  %1877 = vmatprep.subr.mxu0 0.0
  %1878 = vmatpush1.msra.mxu0 0.0
  %1879 = vmatprep.subr.mxu0 0.0
  %1880 = vmatpush1.msra.mxu0 0.0
  %1881 = vmatprep.subr.mxu0 0.0
  %1882 = vmatpush1.msra.mxu0 0.0
  %1883 = vmatprep.subr.mxu0 0.0
  %1884 = vmatpush1.msra.mxu0 0.0
  %1885 = vmatprep.subr.mxu0 0.0
  %1886 = vmatpush1.msra.mxu0 0.0
  %1887 = vmatprep.subr.mxu0 0.0
  %1888 = vmatpush1.msra.mxu0 0.0
  %1889 = vmatprep.subr.mxu0 0.0
  %1890 = vmatpush1.msra.mxu0 0.0
  %1891 = vmatprep.subr.mxu0 0.0
  %1892 = vmatpush1.msra.mxu0 0.0
  %1893 = vmatprep.subr.mxu0 0.0
  %1894 = vmatpush1.msra.mxu0 0.0
  %1895 = vmatprep.subr.mxu0 0.0
  %1896 = vmatpush1.msra.mxu0 0.0
  %1897 = vmatprep.subr.mxu0 0.0
  %1898 = vmatpush1.msra.mxu0 0.0
  %1899 = vmatprep.subr.mxu0 0.0
  %1900 = vmatpush1.msra.mxu0 0.0
  %1901 = vmatprep.subr.mxu0 0.0
  %1902 = vmatpush1.msra.mxu0 0.0
  %1903 = vmatprep.subr.mxu0 0.0
  %1904 = vmatpush1.msra.mxu0 0.0
  %1905 = vmatprep.subr.mxu0 0.0
  %1906 = vmatpush1.msra.mxu0 0.0
  %1907 = vmatprep.subr.mxu0 0.0
  %1908 = vmatpush1.msra.mxu0 0.0
  %1909 = vmatprep.subr.mxu0 0.0
  %1910 = vmatpush1.msra.mxu0 0.0
  %1911 = vmatprep.subr.mxu0 0.0
  %1912 = vmatpush1.msra.mxu0 0.0
  %1913 = vmatprep.subr.mxu0 0.0
  %1914 = vmatpush1.msra.mxu0 0.0
  %1915 = vmatprep.subr.mxu0 0.0
  %1916 = vmatpush1.msra.mxu0 0.0
  %1917 = vmatprep.subr.mxu0 0.0
  %1918 = vmatpush1.msra.mxu0 0.0
  %1919 = vmatprep.subr.mxu0 0.0
  %1920 = vmatpush1.msra.mxu0 0.0
  %1921 = vmatprep.subr.mxu0 0.0
  %1922 = vmatpush1.msra.mxu0 0.0
  %1923 = vmatprep.subr.mxu0 0.0
  %1924 = vmatpush1.msra.mxu0 0.0
  %1925 = vmatprep.subr.mxu0 0.0
  %1926 = vmatpush1.msra.mxu0 0.0
  %1927 = vmatprep.subr.mxu0 0.0
  %1928 = vmatpush1.msra.mxu0 0.0
  %1929 = vmatprep.subr.mxu0 0.0
  %1930 = vmatpush1.msra.mxu0 0.0
  %1931 = vmatprep.subr.mxu0 0.0
  %1932 = vmatpush1.msra.mxu0 0.0
  %1933 = vmatprep.subr.mxu0 0.0
  %1934 = vmatpush1.msra.mxu0 0.0
  %1935 = vmatprep.subr.mxu0 0.0
  %1936 = vmatpush1.msra.mxu0 0.0
  %1937 = vmatprep.mubr.f32.mxu0 0.0
  %1938 = vmatmul.mubr.f32.gmra.mrb[0].mxu0 %v1868
  %v1939 = vpop.f32.mrb[0].mxu0
  %v1940 = vadd.f32 0.0, %v1939
  %v1941 = vpop.f32.mrb[0].mxu0
  %1942 = vmatprep.mubr.f32.mxu0 0.0
  %1943 = vmatmul.mubr.f32.gmra.mrb[0].mxu0 %v1871
  %v1944 = vpop.f32.mrb[0].mxu0
  %v1945 = vadd.f32 0.0, %v1944
  %v1946 = vpop.f32.mrb[0].mxu0
  %1947 = vdwg.mxu0
  %v1949 = vsel %vm787, %v737, 0
  %v1952 = vsel %vm787, %v738, 0
  %1954 = vmatprep.subr.mxu0 0.0
  %1955 = vmatpush1.msra.mxu0 %v469
  %1956 = vmatprep.subr.mxu0 0.0
  %1957 = vmatpush1.msra.mxu0 %v474
  %1958 = vmatprep.subr.mxu0 0.0
  %1959 = vmatpush1.msra.mxu0 0.0
  %1960 = vmatprep.subr.mxu0 0.0
  %1961 = vmatpush1.msra.mxu0 0.0
  %1962 = vmatprep.subr.mxu0 0.0
  %1963 = vmatpush1.msra.mxu0 0.0
  %1964 = vmatprep.subr.mxu0 0.0
  %1965 = vmatpush1.msra.mxu0 0.0
  %1966 = vmatprep.subr.mxu0 0.0
  %1967 = vmatpush1.msra.mxu0 0.0
  %1968 = vmatprep.subr.mxu0 0.0
  %1969 = vmatpush1.msra.mxu0 0.0
  %1970 = vmatprep.subr.mxu0 0.0
  %1971 = vmatpush1.msra.mxu0 0.0
  %1972 = vmatprep.subr.mxu0 0.0
  %1973 = vmatpush1.msra.mxu0 0.0
  %1974 = vmatprep.subr.mxu0 0.0
  %1975 = vmatpush1.msra.mxu0 0.0
  %1976 = vmatprep.subr.mxu0 0.0
  %1977 = vmatpush1.msra.mxu0 0.0
  %1978 = vmatprep.subr.mxu0 0.0
  %1979 = vmatpush1.msra.mxu0 0.0
  %1980 = vmatprep.subr.mxu0 0.0
  %1981 = vmatpush1.msra.mxu0 0.0
  %1982 = vmatprep.subr.mxu0 0.0
  %1983 = vmatpush1.msra.mxu0 0.0
  %1984 = vmatprep.subr.mxu0 0.0
  %1985 = vmatpush1.msra.mxu0 0.0
  %1986 = vmatprep.subr.mxu0 0.0
  %1987 = vmatpush1.msra.mxu0 0.0
  %1988 = vmatprep.subr.mxu0 0.0
  %1989 = vmatpush1.msra.mxu0 0.0
  %1990 = vmatprep.subr.mxu0 0.0
  %1991 = vmatpush1.msra.mxu0 0.0
  %1992 = vmatprep.subr.mxu0 0.0
  %1993 = vmatpush1.msra.mxu0 0.0
  %1994 = vmatprep.subr.mxu0 0.0
  %1995 = vmatpush1.msra.mxu0 0.0
  %1996 = vmatprep.subr.mxu0 0.0
  %1997 = vmatpush1.msra.mxu0 0.0
  %1998 = vmatprep.subr.mxu0 0.0
  %1999 = vmatpush1.msra.mxu0 0.0
  %2000 = vmatprep.subr.mxu0 0.0
  %2001 = vmatpush1.msra.mxu0 0.0
  %2002 = vmatprep.subr.mxu0 0.0
  %2003 = vmatpush1.msra.mxu0 0.0
  %2004 = vmatprep.subr.mxu0 0.0
  %2005 = vmatpush1.msra.mxu0 0.0
  %2006 = vmatprep.subr.mxu0 0.0
  %2007 = vmatpush1.msra.mxu0 0.0
  %2008 = vmatprep.subr.mxu0 0.0
  %2009 = vmatpush1.msra.mxu0 0.0
  %2010 = vmatprep.subr.mxu0 0.0
  %2011 = vmatpush1.msra.mxu0 0.0
  %2012 = vmatprep.subr.mxu0 0.0
  %2013 = vmatpush1.msra.mxu0 0.0
  %2014 = vmatprep.subr.mxu0 0.0
  %2015 = vmatpush1.msra.mxu0 0.0
  %2016 = vmatprep.subr.mxu0 0.0
  %2017 = vmatpush1.msra.mxu0 0.0
  %2018 = vmatprep.mubr.f32.mxu0 0.0
  %2019 = vmatmul.mubr.f32.gmra.mrb[0].mxu0 %v1949
  %v2020 = vpop.f32.mrb[0].mxu0
  %v2021 = vadd.f32 0.0, %v2020
  %v2022 = vpop.f32.mrb[0].mxu0
  %2023 = vmatprep.mubr.f32.mxu0 0.0
  %2024 = vmatmul.mubr.f32.gmra.mrb[0].mxu0 %v1952
  %v2025 = vpop.f32.mrb[0].mxu0
  %v2026 = vadd.f32 0.0, %v2025
  %v2027 = vpop.f32.mrb[0].mxu0
  %2028 = vdwg.mxu0
  %v2030 = vsel %vm787, %v739, 0
  %v2033 = vsel %vm787, %v740, 0
  %2035 = vmatprep.subr.mxu0 0.0
  %2036 = vmatpush1.msra.mxu0 %v479
  %2037 = vmatprep.subr.mxu0 0.0
  %2038 = vmatpush1.msra.mxu0 %v484
  %2039 = vmatprep.subr.mxu0 0.0
  %2040 = vmatpush1.msra.mxu0 0.0
  %2041 = vmatprep.subr.mxu0 0.0
  %2042 = vmatpush1.msra.mxu0 0.0
  %2043 = vmatprep.subr.mxu0 0.0
  %2044 = vmatpush1.msra.mxu0 0.0
  %2045 = vmatprep.subr.mxu0 0.0
  %2046 = vmatpush1.msra.mxu0 0.0
  %2047 = vmatprep.subr.mxu0 0.0
  %2048 = vmatpush1.msra.mxu0 0.0
  %2049 = vmatprep.subr.mxu0 0.0
  %2050 = vmatpush1.msra.mxu0 0.0
  %2051 = vmatprep.subr.mxu0 0.0
  %2052 = vmatpush1.msra.mxu0 0.0
  %2053 = vmatprep.subr.mxu0 0.0
  %2054 = vmatpush1.msra.mxu0 0.0
  %2055 = vmatprep.subr.mxu0 0.0
  %2056 = vmatpush1.msra.mxu0 0.0
  %2057 = vmatprep.subr.mxu0 0.0
  %2058 = vmatpush1.msra.mxu0 0.0
  %2059 = vmatprep.subr.mxu0 0.0
  %2060 = vmatpush1.msra.mxu0 0.0
  %2061 = vmatprep.subr.mxu0 0.0
  %2062 = vmatpush1.msra.mxu0 0.0
  %2063 = vmatprep.subr.mxu0 0.0
  %2064 = vmatpush1.msra.mxu0 0.0
  %2065 = vmatprep.subr.mxu0 0.0
  %2066 = vmatpush1.msra.mxu0 0.0
  %2067 = vmatprep.subr.mxu0 0.0
  %2068 = vmatpush1.msra.mxu0 0.0
  %2069 = vmatprep.subr.mxu0 0.0
  %2070 = vmatpush1.msra.mxu0 0.0
  %2071 = vmatprep.subr.mxu0 0.0
  %2072 = vmatpush1.msra.mxu0 0.0
  %2073 = vmatprep.subr.mxu0 0.0
  %2074 = vmatpush1.msra.mxu0 0.0
  %2075 = vmatprep.subr.mxu0 0.0
  %2076 = vmatpush1.msra.mxu0 0.0
  %2077 = vmatprep.subr.mxu0 0.0
  %2078 = vmatpush1.msra.mxu0 0.0
  %2079 = vmatprep.subr.mxu0 0.0
  %2080 = vmatpush1.msra.mxu0 0.0
  %2081 = vmatprep.subr.mxu0 0.0
  %2082 = vmatpush1.msra.mxu0 0.0
  %2083 = vmatprep.subr.mxu0 0.0
  %2084 = vmatpush1.msra.mxu0 0.0
  %2085 = vmatprep.subr.mxu0 0.0
  %2086 = vmatpush1.msra.mxu0 0.0
  %2087 = vmatprep.subr.mxu0 0.0
  %2088 = vmatpush1.msra.mxu0 0.0
  %2089 = vmatprep.subr.mxu0 0.0
  %2090 = vmatpush1.msra.mxu0 0.0
  %2091 = vmatprep.subr.mxu0 0.0
  %2092 = vmatpush1.msra.mxu0 0.0
  %2093 = vmatprep.subr.mxu0 0.0
  %2094 = vmatpush1.msra.mxu0 0.0
  %2095 = vmatprep.subr.mxu0 0.0
  %2096 = vmatpush1.msra.mxu0 0.0
  %2097 = vmatprep.subr.mxu0 0.0
  %2098 = vmatpush1.msra.mxu0 0.0
  %2099 = vmatprep.mubr.f32.mxu0 0.0
  %2100 = vmatmul.mubr.f32.gmra.mrb[0].mxu0 %v2030
  %v2101 = vpop.f32.mrb[0].mxu0
  %v2102 = vadd.f32 0.0, %v2101
  %v2103 = vpop.f32.mrb[0].mxu0
  %2104 = vmatprep.mubr.f32.mxu0 0.0
  %2105 = vmatmul.mubr.f32.gmra.mrb[0].mxu0 %v2033
  %v2106 = vpop.f32.mrb[0].mxu0
  %v2107 = vadd.f32 0.0, %v2106
  %v2108 = vpop.f32.mrb[0].mxu0
  %2109 = vdwg.mxu0
  %v2111 = vsel %vm787, %v741, 0
  %v2114 = vsel %vm787, %v742, 0
  %2116 = vmatprep.subr.mxu0 0.0
  %2117 = vmatpush1.msra.mxu0 %v489
  %2118 = vmatprep.subr.mxu0 0.0
  %2119 = vmatpush1.msra.mxu0 %v494
  %2120 = vmatprep.subr.mxu0 0.0
  %2121 = vmatpush1.msra.mxu0 0.0
  %2122 = vmatprep.subr.mxu0 0.0
  %2123 = vmatpush1.msra.mxu0 0.0
  %2124 = vmatprep.subr.mxu0 0.0
  %2125 = vmatpush1.msra.mxu0 0.0
  %2126 = vmatprep.subr.mxu0 0.0
  %2127 = vmatpush1.msra.mxu0 0.0
  %2128 = vmatprep.subr.mxu0 0.0
  %2129 = vmatpush1.msra.mxu0 0.0
  %2130 = vmatprep.subr.mxu0 0.0
  %2131 = vmatpush1.msra.mxu0 0.0
  %2132 = vmatprep.subr.mxu0 0.0
  %2133 = vmatpush1.msra.mxu0 0.0
  %2134 = vmatprep.subr.mxu0 0.0
  %2135 = vmatpush1.msra.mxu0 0.0
  %2136 = vmatprep.subr.mxu0 0.0
  %2137 = vmatpush1.msra.mxu0 0.0
  %2138 = vmatprep.subr.mxu0 0.0
  %2139 = vmatpush1.msra.mxu0 0.0
  %2140 = vmatprep.subr.mxu0 0.0
  %2141 = vmatpush1.msra.mxu0 0.0
  %2142 = vmatprep.subr.mxu0 0.0
  %2143 = vmatpush1.msra.mxu0 0.0
  %2144 = vmatprep.subr.mxu0 0.0
  %2145 = vmatpush1.msra.mxu0 0.0
  %2146 = vmatprep.subr.mxu0 0.0
  %2147 = vmatpush1.msra.mxu0 0.0
  %2148 = vmatprep.subr.mxu0 0.0
  %2149 = vmatpush1.msra.mxu0 0.0
  %2150 = vmatprep.subr.mxu0 0.0
  %2151 = vmatpush1.msra.mxu0 0.0
  %2152 = vmatprep.subr.mxu0 0.0
  %2153 = vmatpush1.msra.mxu0 0.0
  %2154 = vmatprep.subr.mxu0 0.0
  %2155 = vmatpush1.msra.mxu0 0.0
  %2156 = vmatprep.subr.mxu0 0.0
  %2157 = vmatpush1.msra.mxu0 0.0
  %2158 = vmatprep.subr.mxu0 0.0
  %2159 = vmatpush1.msra.mxu0 0.0
  %2160 = vmatprep.subr.mxu0 0.0
  %2161 = vmatpush1.msra.mxu0 0.0
  %2162 = vmatprep.subr.mxu0 0.0
  %2163 = vmatpush1.msra.mxu0 0.0
  %2164 = vmatprep.subr.mxu0 0.0
  %2165 = vmatpush1.msra.mxu0 0.0
  %2166 = vmatprep.subr.mxu0 0.0
  %2167 = vmatpush1.msra.mxu0 0.0
  %2168 = vmatprep.subr.mxu0 0.0
  %2169 = vmatpush1.msra.mxu0 0.0
  %2170 = vmatprep.subr.mxu0 0.0
  %2171 = vmatpush1.msra.mxu0 0.0
  %2172 = vmatprep.subr.mxu0 0.0
  %2173 = vmatpush1.msra.mxu0 0.0
  %2174 = vmatprep.subr.mxu0 0.0
  %2175 = vmatpush1.msra.mxu0 0.0
  %2176 = vmatprep.subr.mxu0 0.0
  %2177 = vmatpush1.msra.mxu0 0.0
  %2178 = vmatprep.subr.mxu0 0.0
  %2179 = vmatpush1.msra.mxu0 0.0
  %2180 = vmatprep.mubr.f32.mxu0 0.0
  %2181 = vmatmul.mubr.f32.gmra.mrb[0].mxu0 %v2111
  %v2182 = vpop.f32.mrb[0].mxu0
  %v2183 = vadd.f32 0.0, %v2182
  %v2184 = vpop.f32.mrb[0].mxu0
  %2185 = vmatprep.mubr.f32.mxu0 0.0
  %2186 = vmatmul.mubr.f32.gmra.mrb[0].mxu0 %v2114
  %v2187 = vpop.f32.mrb[0].mxu0
  %v2188 = vadd.f32 0.0, %v2187
  %v2189 = vpop.f32.mrb[0].mxu0
  %2190 = vdwg.mxu0
  %v2192 = vsel %vm787, %v743, 0
  %v2195 = vsel %vm787, %v744, 0
  %2197 = vmatprep.subr.mxu0 0.0
  %2198 = vmatpush1.msra.mxu0 %v499
  %2199 = vmatprep.subr.mxu0 0.0
  %2200 = vmatpush1.msra.mxu0 %v504
  %2201 = vmatprep.subr.mxu0 0.0
  %2202 = vmatpush1.msra.mxu0 0.0
  %2203 = vmatprep.subr.mxu0 0.0
  %2204 = vmatpush1.msra.mxu0 0.0
  %2205 = vmatprep.subr.mxu0 0.0
  %2206 = vmatpush1.msra.mxu0 0.0
  %2207 = vmatprep.subr.mxu0 0.0
  %2208 = vmatpush1.msra.mxu0 0.0
  %2209 = vmatprep.subr.mxu0 0.0
  %2210 = vmatpush1.msra.mxu0 0.0
  %2211 = vmatprep.subr.mxu0 0.0
  %2212 = vmatpush1.msra.mxu0 0.0
  %2213 = vmatprep.subr.mxu0 0.0
  %2214 = vmatpush1.msra.mxu0 0.0
  %2215 = vmatprep.subr.mxu0 0.0
  %2216 = vmatpush1.msra.mxu0 0.0
  %2217 = vmatprep.subr.mxu0 0.0
  %2218 = vmatpush1.msra.mxu0 0.0
  %2219 = vmatprep.subr.mxu0 0.0
  %2220 = vmatpush1.msra.mxu0 0.0
  %2221 = vmatprep.subr.mxu0 0.0
  %2222 = vmatpush1.msra.mxu0 0.0
  %2223 = vmatprep.subr.mxu0 0.0
  %2224 = vmatpush1.msra.mxu0 0.0
  %2225 = vmatprep.subr.mxu0 0.0
  %2226 = vmatpush1.msra.mxu0 0.0
  %2227 = vmatprep.subr.mxu0 0.0
  %2228 = vmatpush1.msra.mxu0 0.0
  %2229 = vmatprep.subr.mxu0 0.0
  %2230 = vmatpush1.msra.mxu0 0.0
  %2231 = vmatprep.subr.mxu0 0.0
  %2232 = vmatpush1.msra.mxu0 0.0
  %2233 = vmatprep.subr.mxu0 0.0
  %2234 = vmatpush1.msra.mxu0 0.0
  %2235 = vmatprep.subr.mxu0 0.0
  %2236 = vmatpush1.msra.mxu0 0.0
  %2237 = vmatprep.subr.mxu0 0.0
  %2238 = vmatpush1.msra.mxu0 0.0
  %2239 = vmatprep.subr.mxu0 0.0
  %2240 = vmatpush1.msra.mxu0 0.0
  %2241 = vmatprep.subr.mxu0 0.0
  %2242 = vmatpush1.msra.mxu0 0.0
  %2243 = vmatprep.subr.mxu0 0.0
  %2244 = vmatpush1.msra.mxu0 0.0
  %2245 = vmatprep.subr.mxu0 0.0
  %2246 = vmatpush1.msra.mxu0 0.0
  %2247 = vmatprep.subr.mxu0 0.0
  %2248 = vmatpush1.msra.mxu0 0.0
  %2249 = vmatprep.subr.mxu0 0.0
  %2250 = vmatpush1.msra.mxu0 0.0
  %2251 = vmatprep.subr.mxu0 0.0
  %2252 = vmatpush1.msra.mxu0 0.0
  %2253 = vmatprep.subr.mxu0 0.0
  %2254 = vmatpush1.msra.mxu0 0.0
  %2255 = vmatprep.subr.mxu0 0.0
  %2256 = vmatpush1.msra.mxu0 0.0
  %2257 = vmatprep.subr.mxu0 0.0
  %2258 = vmatpush1.msra.mxu0 0.0
  %2259 = vmatprep.subr.mxu0 0.0
  %2260 = vmatpush1.msra.mxu0 0.0
  %2261 = vmatprep.mubr.f32.mxu0 0.0
  %2262 = vmatmul.mubr.f32.gmra.mrb[0].mxu0 %v2192
  %v2263 = vpop.f32.mrb[0].mxu0
  %v2264 = vadd.f32 0.0, %v2263
  %v2265 = vpop.f32.mrb[0].mxu0
  %2266 = vmatprep.mubr.f32.mxu0 0.0
  %2267 = vmatmul.mubr.f32.gmra.mrb[0].mxu0 %v2195
  %v2268 = vpop.f32.mrb[0].mxu0
  %v2269 = vadd.f32 0.0, %v2268
  %v2270 = vpop.f32.mrb[0].mxu0
  %2271 = vdwg.mxu0
  %v2273 = vsel %vm787, %v745, 0
  %v2276 = vsel %vm787, %v746, 0
  %2278 = vmatprep.subr.mxu0 0.0
  %2279 = vmatpush1.msra.mxu0 %v509
  %2280 = vmatprep.subr.mxu0 0.0
  %2281 = vmatpush1.msra.mxu0 %v514
  %2282 = vmatprep.subr.mxu0 0.0
  %2283 = vmatpush1.msra.mxu0 0.0
  %2284 = vmatprep.subr.mxu0 0.0
  %2285 = vmatpush1.msra.mxu0 0.0
  %2286 = vmatprep.subr.mxu0 0.0
  %2287 = vmatpush1.msra.mxu0 0.0
  %2288 = vmatprep.subr.mxu0 0.0
  %2289 = vmatpush1.msra.mxu0 0.0
  %2290 = vmatprep.subr.mxu0 0.0
  %2291 = vmatpush1.msra.mxu0 0.0
  %2292 = vmatprep.subr.mxu0 0.0
  %2293 = vmatpush1.msra.mxu0 0.0
  %2294 = vmatprep.subr.mxu0 0.0
  %2295 = vmatpush1.msra.mxu0 0.0
  %2296 = vmatprep.subr.mxu0 0.0
  %2297 = vmatpush1.msra.mxu0 0.0
  %2298 = vmatprep.subr.mxu0 0.0
  %2299 = vmatpush1.msra.mxu0 0.0
  %2300 = vmatprep.subr.mxu0 0.0
  %2301 = vmatpush1.msra.mxu0 0.0
  %2302 = vmatprep.subr.mxu0 0.0
  %2303 = vmatpush1.msra.mxu0 0.0
  %2304 = vmatprep.subr.mxu0 0.0
  %2305 = vmatpush1.msra.mxu0 0.0
  %2306 = vmatprep.subr.mxu0 0.0
  %2307 = vmatpush1.msra.mxu0 0.0
  %2308 = vmatprep.subr.mxu0 0.0
  %2309 = vmatpush1.msra.mxu0 0.0
  %2310 = vmatprep.subr.mxu0 0.0
  %2311 = vmatpush1.msra.mxu0 0.0
  %2312 = vmatprep.subr.mxu0 0.0
  %2313 = vmatpush1.msra.mxu0 0.0
  %2314 = vmatprep.subr.mxu0 0.0
  %2315 = vmatpush1.msra.mxu0 0.0
  %2316 = vmatprep.subr.mxu0 0.0
  %2317 = vmatpush1.msra.mxu0 0.0
  %2318 = vmatprep.subr.mxu0 0.0
  %2319 = vmatpush1.msra.mxu0 0.0
  %2320 = vmatprep.subr.mxu0 0.0
  %2321 = vmatpush1.msra.mxu0 0.0
  %2322 = vmatprep.subr.mxu0 0.0
  %2323 = vmatpush1.msra.mxu0 0.0
  %2324 = vmatprep.subr.mxu0 0.0
  %2325 = vmatpush1.msra.mxu0 0.0
  %2326 = vmatprep.subr.mxu0 0.0
  %2327 = vmatpush1.msra.mxu0 0.0
  %2328 = vmatprep.subr.mxu0 0.0
  %2329 = vmatpush1.msra.mxu0 0.0
  %2330 = vmatprep.subr.mxu0 0.0
  %2331 = vmatpush1.msra.mxu0 0.0
  %2332 = vmatprep.subr.mxu0 0.0
  %2333 = vmatpush1.msra.mxu0 0.0
  %2334 = vmatprep.subr.mxu0 0.0
  %2335 = vmatpush1.msra.mxu0 0.0
  %2336 = vmatprep.subr.mxu0 0.0
  %2337 = vmatpush1.msra.mxu0 0.0
  %2338 = vmatprep.subr.mxu0 0.0
  %2339 = vmatpush1.msra.mxu0 0.0
  %2340 = vmatprep.subr.mxu0 0.0
  %2341 = vmatpush1.msra.mxu0 0.0
  %2342 = vmatprep.mubr.f32.mxu0 0.0
  %2343 = vmatmul.mubr.f32.gmra.mrb[0].mxu0 %v2273
  %v2344 = vpop.f32.mrb[0].mxu0
  %v2345 = vadd.f32 0.0, %v2344
  %v2346 = vpop.f32.mrb[0].mxu0
  %2347 = vmatprep.mubr.f32.mxu0 0.0
  %2348 = vmatmul.mubr.f32.gmra.mrb[0].mxu0 %v2276
  %v2349 = vpop.f32.mrb[0].mxu0
  %v2350 = vadd.f32 0.0, %v2349
  %v2351 = vpop.f32.mrb[0].mxu0
  %2352 = vdwg.mxu0
  %v2354 = vsel %vm787, %v747, 0
  %v2357 = vsel %vm787, %v748, 0
  %2359 = vmatprep.subr.mxu0 0.0
  %2360 = vmatpush1.msra.mxu0 %v519
  %2361 = vmatprep.subr.mxu0 0.0
  %2362 = vmatpush1.msra.mxu0 %v524
  %2363 = vmatprep.subr.mxu0 0.0
  %2364 = vmatpush1.msra.mxu0 0.0
  %2365 = vmatprep.subr.mxu0 0.0
  %2366 = vmatpush1.msra.mxu0 0.0
  %2367 = vmatprep.subr.mxu0 0.0
  %2368 = vmatpush1.msra.mxu0 0.0
  %2369 = vmatprep.subr.mxu0 0.0
  %2370 = vmatpush1.msra.mxu0 0.0
  %2371 = vmatprep.subr.mxu0 0.0
  %2372 = vmatpush1.msra.mxu0 0.0
  %2373 = vmatprep.subr.mxu0 0.0
  %2374 = vmatpush1.msra.mxu0 0.0
  %2375 = vmatprep.subr.mxu0 0.0
  %2376 = vmatpush1.msra.mxu0 0.0
  %2377 = vmatprep.subr.mxu0 0.0
  %2378 = vmatpush1.msra.mxu0 0.0
  %2379 = vmatprep.subr.mxu0 0.0
  %2380 = vmatpush1.msra.mxu0 0.0
  %2381 = vmatprep.subr.mxu0 0.0
  %2382 = vmatpush1.msra.mxu0 0.0
  %2383 = vmatprep.subr.mxu0 0.0
  %2384 = vmatpush1.msra.mxu0 0.0
  %2385 = vmatprep.subr.mxu0 0.0
  %2386 = vmatpush1.msra.mxu0 0.0
  %2387 = vmatprep.subr.mxu0 0.0
  %2388 = vmatpush1.msra.mxu0 0.0
  %2389 = vmatprep.subr.mxu0 0.0
  %2390 = vmatpush1.msra.mxu0 0.0
  %2391 = vmatprep.subr.mxu0 0.0
  %2392 = vmatpush1.msra.mxu0 0.0
  %2393 = vmatprep.subr.mxu0 0.0
  %2394 = vmatpush1.msra.mxu0 0.0
  %2395 = vmatprep.subr.mxu0 0.0
  %2396 = vmatpush1.msra.mxu0 0.0
  %2397 = vmatprep.subr.mxu0 0.0
  %2398 = vmatpush1.msra.mxu0 0.0
  %2399 = vmatprep.subr.mxu0 0.0
  %2400 = vmatpush1.msra.mxu0 0.0
  %2401 = vmatprep.subr.mxu0 0.0
  %2402 = vmatpush1.msra.mxu0 0.0
  %2403 = vmatprep.subr.mxu0 0.0
  %2404 = vmatpush1.msra.mxu0 0.0
  %2405 = vmatprep.subr.mxu0 0.0
  %2406 = vmatpush1.msra.mxu0 0.0
  %2407 = vmatprep.subr.mxu0 0.0
  %2408 = vmatpush1.msra.mxu0 0.0
  %2409 = vmatprep.subr.mxu0 0.0
  %2410 = vmatpush1.msra.mxu0 0.0
  %2411 = vmatprep.subr.mxu0 0.0
  %2412 = vmatpush1.msra.mxu0 0.0
  %2413 = vmatprep.subr.mxu0 0.0
  %2414 = vmatpush1.msra.mxu0 0.0
  %2415 = vmatprep.subr.mxu0 0.0
  %2416 = vmatpush1.msra.mxu0 0.0
  %2417 = vmatprep.subr.mxu0 0.0
  %2418 = vmatpush1.msra.mxu0 0.0
  %2419 = vmatprep.subr.mxu0 0.0
  %2420 = vmatpush1.msra.mxu0 0.0
  %2421 = vmatprep.subr.mxu0 0.0
  %2422 = vmatpush1.msra.mxu0 0.0
  %2423 = vmatprep.mubr.f32.mxu0 0.0
  %2424 = vmatmul.mubr.f32.gmra.mrb[0].mxu0 %v2354
  %v2425 = vpop.f32.mrb[0].mxu0
  %v2426 = vadd.f32 0.0, %v2425
  %v2427 = vpop.f32.mrb[0].mxu0
  %2428 = vmatprep.mubr.f32.mxu0 0.0
  %2429 = vmatmul.mubr.f32.gmra.mrb[0].mxu0 %v2357
  %v2430 = vpop.f32.mrb[0].mxu0
  %v2431 = vadd.f32 0.0, %v2430
  %v2432 = vpop.f32.mrb[0].mxu0
  %2433 = vdwg.mxu0
  %v2435 = vsel %vm787, %v749, 0
  %v2438 = vsel %vm787, %v750, 0
  %2440 = vmatprep.subr.mxu0 0.0
  %2441 = vmatpush1.msra.mxu0 %v529
  %2442 = vmatprep.subr.mxu0 0.0
  %2443 = vmatpush1.msra.mxu0 %v534
  %2444 = vmatprep.subr.mxu0 0.0
  %2445 = vmatpush1.msra.mxu0 0.0
  %2446 = vmatprep.subr.mxu0 0.0
  %2447 = vmatpush1.msra.mxu0 0.0
  %2448 = vmatprep.subr.mxu0 0.0
  %2449 = vmatpush1.msra.mxu0 0.0
  %2450 = vmatprep.subr.mxu0 0.0
  %2451 = vmatpush1.msra.mxu0 0.0
  %2452 = vmatprep.subr.mxu0 0.0
  %2453 = vmatpush1.msra.mxu0 0.0
  %2454 = vmatprep.subr.mxu0 0.0
  %2455 = vmatpush1.msra.mxu0 0.0
  %2456 = vmatprep.subr.mxu0 0.0
  %2457 = vmatpush1.msra.mxu0 0.0
  %2458 = vmatprep.subr.mxu0 0.0
  %2459 = vmatpush1.msra.mxu0 0.0
  %2460 = vmatprep.subr.mxu0 0.0
  %2461 = vmatpush1.msra.mxu0 0.0
  %2462 = vmatprep.subr.mxu0 0.0
  %2463 = vmatpush1.msra.mxu0 0.0
  %2464 = vmatprep.subr.mxu0 0.0
  %2465 = vmatpush1.msra.mxu0 0.0
  %2466 = vmatprep.subr.mxu0 0.0
  %2467 = vmatpush1.msra.mxu0 0.0
  %2468 = vmatprep.subr.mxu0 0.0
  %2469 = vmatpush1.msra.mxu0 0.0
  %2470 = vmatprep.subr.mxu0 0.0
  %2471 = vmatpush1.msra.mxu0 0.0
  %2472 = vmatprep.subr.mxu0 0.0
  %2473 = vmatpush1.msra.mxu0 0.0
  %2474 = vmatprep.subr.mxu0 0.0
  %2475 = vmatpush1.msra.mxu0 0.0
  %2476 = vmatprep.subr.mxu0 0.0
  %2477 = vmatpush1.msra.mxu0 0.0
  %2478 = vmatprep.subr.mxu0 0.0
  %2479 = vmatpush1.msra.mxu0 0.0
  %2480 = vmatprep.subr.mxu0 0.0
  %2481 = vmatpush1.msra.mxu0 0.0
  %2482 = vmatprep.subr.mxu0 0.0
  %2483 = vmatpush1.msra.mxu0 0.0
  %2484 = vmatprep.subr.mxu0 0.0
  %2485 = vmatpush1.msra.mxu0 0.0
  %2486 = vmatprep.subr.mxu0 0.0
  %2487 = vmatpush1.msra.mxu0 0.0
  %2488 = vmatprep.subr.mxu0 0.0
  %2489 = vmatpush1.msra.mxu0 0.0
  %2490 = vmatprep.subr.mxu0 0.0
  %2491 = vmatpush1.msra.mxu0 0.0
  %2492 = vmatprep.subr.mxu0 0.0
  %2493 = vmatpush1.msra.mxu0 0.0
  %2494 = vmatprep.subr.mxu0 0.0
  %2495 = vmatpush1.msra.mxu0 0.0
  %2496 = vmatprep.subr.mxu0 0.0
  %2497 = vmatpush1.msra.mxu0 0.0
  %2498 = vmatprep.subr.mxu0 0.0
  %2499 = vmatpush1.msra.mxu0 0.0
  %2500 = vmatprep.subr.mxu0 0.0
  %2501 = vmatpush1.msra.mxu0 0.0
  %2502 = vmatprep.subr.mxu0 0.0
  %2503 = vmatpush1.msra.mxu0 0.0
  %2504 = vmatprep.mubr.f32.mxu0 0.0
  %2505 = vmatmul.mubr.f32.gmra.mrb[0].mxu0 %v2435
  %v2506 = vpop.f32.mrb[0].mxu0
  %v2507 = vadd.f32 0.0, %v2506
  %v2508 = vpop.f32.mrb[0].mxu0
  %2509 = vmatprep.mubr.f32.mxu0 0.0
  %2510 = vmatmul.mubr.f32.gmra.mrb[0].mxu0 %v2438
  %v2511 = vpop.f32.mrb[0].mxu0
  %v2512 = vadd.f32 0.0, %v2511
  %v2513 = vpop.f32.mrb[0].mxu0
  %2514 = vdwg.mxu0
  %v2516 = vsel %vm787, %v751, 0
  %v2519 = vsel %vm787, %v752, 0
  %2521 = vmatprep.subr.mxu0 0.0
  %2522 = vmatpush1.msra.mxu0 %v539
  %2523 = vmatprep.subr.mxu0 0.0
  %2524 = vmatpush1.msra.mxu0 %v544
  %2525 = vmatprep.subr.mxu0 0.0
  %2526 = vmatpush1.msra.mxu0 0.0
  %2527 = vmatprep.subr.mxu0 0.0
  %2528 = vmatpush1.msra.mxu0 0.0
  %2529 = vmatprep.subr.mxu0 0.0
  %2530 = vmatpush1.msra.mxu0 0.0
  %2531 = vmatprep.subr.mxu0 0.0
  %2532 = vmatpush1.msra.mxu0 0.0
  %2533 = vmatprep.subr.mxu0 0.0
  %2534 = vmatpush1.msra.mxu0 0.0
  %2535 = vmatprep.subr.mxu0 0.0
  %2536 = vmatpush1.msra.mxu0 0.0
  %2537 = vmatprep.subr.mxu0 0.0
  %2538 = vmatpush1.msra.mxu0 0.0
  %2539 = vmatprep.subr.mxu0 0.0
  %2540 = vmatpush1.msra.mxu0 0.0
  %2541 = vmatprep.subr.mxu0 0.0
  %2542 = vmatpush1.msra.mxu0 0.0
  %2543 = vmatprep.subr.mxu0 0.0
  %2544 = vmatpush1.msra.mxu0 0.0
  %2545 = vmatprep.subr.mxu0 0.0
  %2546 = vmatpush1.msra.mxu0 0.0
  %2547 = vmatprep.subr.mxu0 0.0
  %2548 = vmatpush1.msra.mxu0 0.0
  %2549 = vmatprep.subr.mxu0 0.0
  %2550 = vmatpush1.msra.mxu0 0.0
  %2551 = vmatprep.subr.mxu0 0.0
  %2552 = vmatpush1.msra.mxu0 0.0
  %2553 = vmatprep.subr.mxu0 0.0
  %2554 = vmatpush1.msra.mxu0 0.0
  %2555 = vmatprep.subr.mxu0 0.0
  %2556 = vmatpush1.msra.mxu0 0.0
  %2557 = vmatprep.subr.mxu0 0.0
  %2558 = vmatpush1.msra.mxu0 0.0
  %2559 = vmatprep.subr.mxu0 0.0
  %2560 = vmatpush1.msra.mxu0 0.0
  %2561 = vmatprep.subr.mxu0 0.0
  %2562 = vmatpush1.msra.mxu0 0.0
  %2563 = vmatprep.subr.mxu0 0.0
  %2564 = vmatpush1.msra.mxu0 0.0
  %2565 = vmatprep.subr.mxu0 0.0
  %2566 = vmatpush1.msra.mxu0 0.0
  %2567 = vmatprep.subr.mxu0 0.0
  %2568 = vmatpush1.msra.mxu0 0.0
  %2569 = vmatprep.subr.mxu0 0.0
  %2570 = vmatpush1.msra.mxu0 0.0
  %2571 = vmatprep.subr.mxu0 0.0
  %2572 = vmatpush1.msra.mxu0 0.0
  %2573 = vmatprep.subr.mxu0 0.0
  %2574 = vmatpush1.msra.mxu0 0.0
  %2575 = vmatprep.subr.mxu0 0.0
  %2576 = vmatpush1.msra.mxu0 0.0
  %2577 = vmatprep.subr.mxu0 0.0
  %2578 = vmatpush1.msra.mxu0 0.0
  %2579 = vmatprep.subr.mxu0 0.0
  %2580 = vmatpush1.msra.mxu0 0.0
  %2581 = vmatprep.subr.mxu0 0.0
  %2582 = vmatpush1.msra.mxu0 0.0
  %2583 = vmatprep.subr.mxu0 0.0
  %2584 = vmatpush1.msra.mxu0 0.0
  %2585 = vmatprep.mubr.f32.mxu0 0.0
  %2586 = vmatmul.mubr.f32.gmra.mrb[0].mxu0 %v2516
  %v2587 = vpop.f32.mrb[0].mxu0
  %v2588 = vadd.f32 0.0, %v2587
  %v2589 = vpop.f32.mrb[0].mxu0
  %2590 = vmatprep.mubr.f32.mxu0 0.0
  %2591 = vmatmul.mubr.f32.gmra.mrb[0].mxu0 %v2519
  %v2592 = vpop.f32.mrb[0].mxu0
  %v2593 = vadd.f32 0.0, %v2592
  %v2594 = vpop.f32.mrb[0].mxu0
  %2595 = vdwg.mxu0
  %v2597 = vsel %vm787, %v753, 0
  %v2600 = vsel %vm787, %v754, 0
  %2602 = vmatprep.subr.mxu0 0.0
  %2603 = vmatpush1.msra.mxu0 %v549
  %2604 = vmatprep.subr.mxu0 0.0
  %2605 = vmatpush1.msra.mxu0 %v554
  %2606 = vmatprep.subr.mxu0 0.0
  %2607 = vmatpush1.msra.mxu0 0.0
  %2608 = vmatprep.subr.mxu0 0.0
  %2609 = vmatpush1.msra.mxu0 0.0
  %2610 = vmatprep.subr.mxu0 0.0
  %2611 = vmatpush1.msra.mxu0 0.0
  %2612 = vmatprep.subr.mxu0 0.0
  %2613 = vmatpush1.msra.mxu0 0.0
  %2614 = vmatprep.subr.mxu0 0.0
  %2615 = vmatpush1.msra.mxu0 0.0
  %2616 = vmatprep.subr.mxu0 0.0
  %2617 = vmatpush1.msra.mxu0 0.0
  %2618 = vmatprep.subr.mxu0 0.0
  %2619 = vmatpush1.msra.mxu0 0.0
  %2620 = vmatprep.subr.mxu0 0.0
  %2621 = vmatpush1.msra.mxu0 0.0
  %2622 = vmatprep.subr.mxu0 0.0
  %2623 = vmatpush1.msra.mxu0 0.0
  %2624 = vmatprep.subr.mxu0 0.0
  %2625 = vmatpush1.msra.mxu0 0.0
  %2626 = vmatprep.subr.mxu0 0.0
  %2627 = vmatpush1.msra.mxu0 0.0
  %2628 = vmatprep.subr.mxu0 0.0
  %2629 = vmatpush1.msra.mxu0 0.0
  %2630 = vmatprep.subr.mxu0 0.0
  %2631 = vmatpush1.msra.mxu0 0.0
  %2632 = vmatprep.subr.mxu0 0.0
  %2633 = vmatpush1.msra.mxu0 0.0
  %2634 = vmatprep.subr.mxu0 0.0
  %2635 = vmatpush1.msra.mxu0 0.0
  %2636 = vmatprep.subr.mxu0 0.0
  %2637 = vmatpush1.msra.mxu0 0.0
  %2638 = vmatprep.subr.mxu0 0.0
  %2639 = vmatpush1.msra.mxu0 0.0
  %2640 = vmatprep.subr.mxu0 0.0
  %2641 = vmatpush1.msra.mxu0 0.0
  %2642 = vmatprep.subr.mxu0 0.0
  %2643 = vmatpush1.msra.mxu0 0.0
  %2644 = vmatprep.subr.mxu0 0.0
  %2645 = vmatpush1.msra.mxu0 0.0
  %2646 = vmatprep.subr.mxu0 0.0
  %2647 = vmatpush1.msra.mxu0 0.0
  %2648 = vmatprep.subr.mxu0 0.0
  %2649 = vmatpush1.msra.mxu0 0.0
  %2650 = vmatprep.subr.mxu0 0.0
  %2651 = vmatpush1.msra.mxu0 0.0
  %2652 = vmatprep.subr.mxu0 0.0
  %2653 = vmatpush1.msra.mxu0 0.0
  %2654 = vmatprep.subr.mxu0 0.0
  %2655 = vmatpush1.msra.mxu0 0.0
  %2656 = vmatprep.subr.mxu0 0.0
  %2657 = vmatpush1.msra.mxu0 0.0
  %2658 = vmatprep.subr.mxu0 0.0
  %2659 = vmatpush1.msra.mxu0 0.0
  %2660 = vmatprep.subr.mxu0 0.0
  %2661 = vmatpush1.msra.mxu0 0.0
  %2662 = vmatprep.subr.mxu0 0.0
  %2663 = vmatpush1.msra.mxu0 0.0
  %2664 = vmatprep.subr.mxu0 0.0
  %2665 = vmatpush1.msra.mxu0 0.0
  %2666 = vmatprep.mubr.f32.mxu0 0.0
  %2667 = vmatmul.mubr.f32.gmra.mrb[0].mxu0 %v2597
  %v2668 = vpop.f32.mrb[0].mxu0
  %v2669 = vadd.f32 0.0, %v2668
  %v2670 = vpop.f32.mrb[0].mxu0
  %2671 = vmatprep.mubr.f32.mxu0 0.0
  %2672 = vmatmul.mubr.f32.gmra.mrb[0].mxu0 %v2600
  %v2673 = vpop.f32.mrb[0].mxu0
  %v2674 = vadd.f32 0.0, %v2673
  %v2675 = vpop.f32.mrb[0].mxu0
  %2676 = vdwg.mxu0
  %v2678 = vsel %vm787, %v755, 0
  %v2681 = vsel %vm787, %v756, 0
  %2683 = vmatprep.subr.mxu0 0.0
  %2684 = vmatpush1.msra.mxu0 %v559
  %2685 = vmatprep.subr.mxu0 0.0
  %2686 = vmatpush1.msra.mxu0 %v564
  %2687 = vmatprep.subr.mxu0 0.0
  %2688 = vmatpush1.msra.mxu0 0.0
  %2689 = vmatprep.subr.mxu0 0.0
  %2690 = vmatpush1.msra.mxu0 0.0
  %2691 = vmatprep.subr.mxu0 0.0
  %2692 = vmatpush1.msra.mxu0 0.0
  %2693 = vmatprep.subr.mxu0 0.0
  %2694 = vmatpush1.msra.mxu0 0.0
  %2695 = vmatprep.subr.mxu0 0.0
  %2696 = vmatpush1.msra.mxu0 0.0
  %2697 = vmatprep.subr.mxu0 0.0
  %2698 = vmatpush1.msra.mxu0 0.0
  %2699 = vmatprep.subr.mxu0 0.0
  %2700 = vmatpush1.msra.mxu0 0.0
  %2701 = vmatprep.subr.mxu0 0.0
  %2702 = vmatpush1.msra.mxu0 0.0
  %2703 = vmatprep.subr.mxu0 0.0
  %2704 = vmatpush1.msra.mxu0 0.0
  %2705 = vmatprep.subr.mxu0 0.0
  %2706 = vmatpush1.msra.mxu0 0.0
  %2707 = vmatprep.subr.mxu0 0.0
  %2708 = vmatpush1.msra.mxu0 0.0
  %2709 = vmatprep.subr.mxu0 0.0
  %2710 = vmatpush1.msra.mxu0 0.0
  %2711 = vmatprep.subr.mxu0 0.0
  %2712 = vmatpush1.msra.mxu0 0.0
  %2713 = vmatprep.subr.mxu0 0.0
  %2714 = vmatpush1.msra.mxu0 0.0
  %2715 = vmatprep.subr.mxu0 0.0
  %2716 = vmatpush1.msra.mxu0 0.0
  %2717 = vmatprep.subr.mxu0 0.0
  %2718 = vmatpush1.msra.mxu0 0.0
  %2719 = vmatprep.subr.mxu0 0.0
  %2720 = vmatpush1.msra.mxu0 0.0
  %2721 = vmatprep.subr.mxu0 0.0
  %2722 = vmatpush1.msra.mxu0 0.0
  %2723 = vmatprep.subr.mxu0 0.0
  %2724 = vmatpush1.msra.mxu0 0.0
  %2725 = vmatprep.subr.mxu0 0.0
  %2726 = vmatpush1.msra.mxu0 0.0
  %2727 = vmatprep.subr.mxu0 0.0
  %2728 = vmatpush1.msra.mxu0 0.0
  %2729 = vmatprep.subr.mxu0 0.0
  %2730 = vmatpush1.msra.mxu0 0.0
  %2731 = vmatprep.subr.mxu0 0.0
  %2732 = vmatpush1.msra.mxu0 0.0
  %2733 = vmatprep.subr.mxu0 0.0
  %2734 = vmatpush1.msra.mxu0 0.0
  %2735 = vmatprep.subr.mxu0 0.0
  %2736 = vmatpush1.msra.mxu0 0.0
  %2737 = vmatprep.subr.mxu0 0.0
  %2738 = vmatpush1.msra.mxu0 0.0
  %2739 = vmatprep.subr.mxu0 0.0
  %2740 = vmatpush1.msra.mxu0 0.0
  %2741 = vmatprep.subr.mxu0 0.0
  %2742 = vmatpush1.msra.mxu0 0.0
  %2743 = vmatprep.subr.mxu0 0.0
  %2744 = vmatpush1.msra.mxu0 0.0
  %2745 = vmatprep.subr.mxu0 0.0
  %2746 = vmatpush1.msra.mxu0 0.0
  %2747 = vmatprep.mubr.f32.mxu0 0.0
  %2748 = vmatmul.mubr.f32.gmra.mrb[0].mxu0 %v2678
  %v2749 = vpop.f32.mrb[0].mxu0
  %v2750 = vadd.f32 0.0, %v2749
  %v2751 = vpop.f32.mrb[0].mxu0
  %2752 = vmatprep.mubr.f32.mxu0 0.0
  %2753 = vmatmul.mubr.f32.gmra.mrb[0].mxu0 %v2681
  %v2754 = vpop.f32.mrb[0].mxu0
  %v2755 = vadd.f32 0.0, %v2754
  %v2756 = vpop.f32.mrb[0].mxu0
  %2757 = vdwg.mxu0
  %v2759 = vsel %vm787, %v757, 0
  %v2762 = vsel %vm787, %v758, 0
  %2764 = vmatprep.subr.mxu0 0.0
  %2765 = vmatpush1.msra.mxu0 %v569
  %2766 = vmatprep.subr.mxu0 0.0
  %2767 = vmatpush1.msra.mxu0 %v574
  %2768 = vmatprep.subr.mxu0 0.0
  %2769 = vmatpush1.msra.mxu0 0.0
  %2770 = vmatprep.subr.mxu0 0.0
  %2771 = vmatpush1.msra.mxu0 0.0
  %2772 = vmatprep.subr.mxu0 0.0
  %2773 = vmatpush1.msra.mxu0 0.0
  %2774 = vmatprep.subr.mxu0 0.0
  %2775 = vmatpush1.msra.mxu0 0.0
  %2776 = vmatprep.subr.mxu0 0.0
  %2777 = vmatpush1.msra.mxu0 0.0
  %2778 = vmatprep.subr.mxu0 0.0
  %2779 = vmatpush1.msra.mxu0 0.0
  %2780 = vmatprep.subr.mxu0 0.0
  %2781 = vmatpush1.msra.mxu0 0.0
  %2782 = vmatprep.subr.mxu0 0.0
  %2783 = vmatpush1.msra.mxu0 0.0
  %2784 = vmatprep.subr.mxu0 0.0
  %2785 = vmatpush1.msra.mxu0 0.0
  %2786 = vmatprep.subr.mxu0 0.0
  %2787 = vmatpush1.msra.mxu0 0.0
  %2788 = vmatprep.subr.mxu0 0.0
  %2789 = vmatpush1.msra.mxu0 0.0
  %2790 = vmatprep.subr.mxu0 0.0
  %2791 = vmatpush1.msra.mxu0 0.0
  %2792 = vmatprep.subr.mxu0 0.0
  %2793 = vmatpush1.msra.mxu0 0.0
  %2794 = vmatprep.subr.mxu0 0.0
  %2795 = vmatpush1.msra.mxu0 0.0
  %2796 = vmatprep.subr.mxu0 0.0
  %2797 = vmatpush1.msra.mxu0 0.0
  %2798 = vmatprep.subr.mxu0 0.0
  %2799 = vmatpush1.msra.mxu0 0.0
  %2800 = vmatprep.subr.mxu0 0.0
  %2801 = vmatpush1.msra.mxu0 0.0
  %2802 = vmatprep.subr.mxu0 0.0
  %2803 = vmatpush1.msra.mxu0 0.0
  %2804 = vmatprep.subr.mxu0 0.0
  %2805 = vmatpush1.msra.mxu0 0.0
  %2806 = vmatprep.subr.mxu0 0.0
  %2807 = vmatpush1.msra.mxu0 0.0
  %2808 = vmatprep.subr.mxu0 0.0
  %2809 = vmatpush1.msra.mxu0 0.0
  %2810 = vmatprep.subr.mxu0 0.0
  %2811 = vmatpush1.msra.mxu0 0.0
  %2812 = vmatprep.subr.mxu0 0.0
  %2813 = vmatpush1.msra.mxu0 0.0
  %2814 = vmatprep.subr.mxu0 0.0
  %2815 = vmatpush1.msra.mxu0 0.0
  %2816 = vmatprep.subr.mxu0 0.0
  %2817 = vmatpush1.msra.mxu0 0.0
  %2818 = vmatprep.subr.mxu0 0.0
  %2819 = vmatpush1.msra.mxu0 0.0
  %2820 = vmatprep.subr.mxu0 0.0
  %2821 = vmatpush1.msra.mxu0 0.0
  %2822 = vmatprep.subr.mxu0 0.0
  %2823 = vmatpush1.msra.mxu0 0.0
  %2824 = vmatprep.subr.mxu0 0.0
  %2825 = vmatpush1.msra.mxu0 0.0
  %2826 = vmatprep.subr.mxu0 0.0
  %2827 = vmatpush1.msra.mxu0 0.0
  %2828 = vmatprep.mubr.f32.mxu0 0.0
  %2829 = vmatmul.mubr.f32.gmra.mrb[0].mxu0 %v2759
  %v2830 = vpop.f32.mrb[0].mxu0
  %v2831 = vadd.f32 0.0, %v2830
  %v2832 = vpop.f32.mrb[0].mxu0
  %2833 = vmatprep.mubr.f32.mxu0 0.0
  %2834 = vmatmul.mubr.f32.gmra.mrb[0].mxu0 %v2762
  %v2835 = vpop.f32.mrb[0].mxu0
  %v2836 = vadd.f32 0.0, %v2835
  %v2837 = vpop.f32.mrb[0].mxu0
  %2838 = vdwg.mxu0
  %v2840 = vsel %vm787, %v759, 0
  %v2843 = vsel %vm787, %v760, 0
  %2845 = vmatprep.subr.mxu0 0.0
  %2846 = vmatpush1.msra.mxu0 %v579
  %2847 = vmatprep.subr.mxu0 0.0
  %2848 = vmatpush1.msra.mxu0 %v584
  %2849 = vmatprep.subr.mxu0 0.0
  %2850 = vmatpush1.msra.mxu0 0.0
  %2851 = vmatprep.subr.mxu0 0.0
  %2852 = vmatpush1.msra.mxu0 0.0
  %2853 = vmatprep.subr.mxu0 0.0
  %2854 = vmatpush1.msra.mxu0 0.0
  %2855 = vmatprep.subr.mxu0 0.0
  %2856 = vmatpush1.msra.mxu0 0.0
  %2857 = vmatprep.subr.mxu0 0.0
  %2858 = vmatpush1.msra.mxu0 0.0
  %2859 = vmatprep.subr.mxu0 0.0
  %2860 = vmatpush1.msra.mxu0 0.0
  %2861 = vmatprep.subr.mxu0 0.0
  %2862 = vmatpush1.msra.mxu0 0.0
  %2863 = vmatprep.subr.mxu0 0.0
  %2864 = vmatpush1.msra.mxu0 0.0
  %2865 = vmatprep.subr.mxu0 0.0
  %2866 = vmatpush1.msra.mxu0 0.0
  %2867 = vmatprep.subr.mxu0 0.0
  %2868 = vmatpush1.msra.mxu0 0.0
  %2869 = vmatprep.subr.mxu0 0.0
  %2870 = vmatpush1.msra.mxu0 0.0
  %2871 = vmatprep.subr.mxu0 0.0
  %2872 = vmatpush1.msra.mxu0 0.0
  %2873 = vmatprep.subr.mxu0 0.0
  %2874 = vmatpush1.msra.mxu0 0.0
  %2875 = vmatprep.subr.mxu0 0.0
  %2876 = vmatpush1.msra.mxu0 0.0
  %2877 = vmatprep.subr.mxu0 0.0
  %2878 = vmatpush1.msra.mxu0 0.0
  %2879 = vmatprep.subr.mxu0 0.0
  %2880 = vmatpush1.msra.mxu0 0.0
  %2881 = vmatprep.subr.mxu0 0.0
  %2882 = vmatpush1.msra.mxu0 0.0
  %2883 = vmatprep.subr.mxu0 0.0
  %2884 = vmatpush1.msra.mxu0 0.0
  %2885 = vmatprep.subr.mxu0 0.0
  %2886 = vmatpush1.msra.mxu0 0.0
  %2887 = vmatprep.subr.mxu0 0.0
  %2888 = vmatpush1.msra.mxu0 0.0
  %2889 = vmatprep.subr.mxu0 0.0
  %2890 = vmatpush1.msra.mxu0 0.0
  %2891 = vmatprep.subr.mxu0 0.0
  %2892 = vmatpush1.msra.mxu0 0.0
  %2893 = vmatprep.subr.mxu0 0.0
  %2894 = vmatpush1.msra.mxu0 0.0
  %2895 = vmatprep.subr.mxu0 0.0
  %2896 = vmatpush1.msra.mxu0 0.0
  %2897 = vmatprep.subr.mxu0 0.0
  %2898 = vmatpush1.msra.mxu0 0.0
  %2899 = vmatprep.subr.mxu0 0.0
  %2900 = vmatpush1.msra.mxu0 0.0
  %2901 = vmatprep.subr.mxu0 0.0
  %2902 = vmatpush1.msra.mxu0 0.0
  %2903 = vmatprep.subr.mxu0 0.0
  %2904 = vmatpush1.msra.mxu0 0.0
  %2905 = vmatprep.subr.mxu0 0.0
  %2906 = vmatpush1.msra.mxu0 0.0
  %2907 = vmatprep.subr.mxu0 0.0
  %2908 = vmatpush1.msra.mxu0 0.0
  %2909 = vmatprep.mubr.f32.mxu0 0.0
  %2910 = vmatmul.mubr.f32.gmra.mrb[0].mxu0 %v2840
  %v2911 = vpop.f32.mrb[0].mxu0
  %v2912 = vadd.f32 0.0, %v2911
  %v2913 = vpop.f32.mrb[0].mxu0
  %2914 = vmatprep.mubr.f32.mxu0 0.0
  %2915 = vmatmul.mubr.f32.gmra.mrb[0].mxu0 %v2843
  %v2916 = vpop.f32.mrb[0].mxu0
  %v2917 = vadd.f32 0.0, %v2916
  %v2918 = vpop.f32.mrb[0].mxu0
  %2919 = vdwg.mxu0
  %v2921 = vsel %vm787, %v761, 0
  %v2924 = vsel %vm787, %v762, 0
  %2926 = vmatprep.subr.mxu0 0.0
  %2927 = vmatpush1.msra.mxu0 %v589
  %2928 = vmatprep.subr.mxu0 0.0
  %2929 = vmatpush1.msra.mxu0 %v594
  %2930 = vmatprep.subr.mxu0 0.0
  %2931 = vmatpush1.msra.mxu0 0.0
  %2932 = vmatprep.subr.mxu0 0.0
  %2933 = vmatpush1.msra.mxu0 0.0
  %2934 = vmatprep.subr.mxu0 0.0
  %2935 = vmatpush1.msra.mxu0 0.0
  %2936 = vmatprep.subr.mxu0 0.0
  %2937 = vmatpush1.msra.mxu0 0.0
  %2938 = vmatprep.subr.mxu0 0.0
  %2939 = vmatpush1.msra.mxu0 0.0
  %2940 = vmatprep.subr.mxu0 0.0
  %2941 = vmatpush1.msra.mxu0 0.0
  %2942 = vmatprep.subr.mxu0 0.0
  %2943 = vmatpush1.msra.mxu0 0.0
  %2944 = vmatprep.subr.mxu0 0.0
  %2945 = vmatpush1.msra.mxu0 0.0
  %2946 = vmatprep.subr.mxu0 0.0
  %2947 = vmatpush1.msra.mxu0 0.0
  %2948 = vmatprep.subr.mxu0 0.0
  %2949 = vmatpush1.msra.mxu0 0.0
  %2950 = vmatprep.subr.mxu0 0.0
  %2951 = vmatpush1.msra.mxu0 0.0
  %2952 = vmatprep.subr.mxu0 0.0
  %2953 = vmatpush1.msra.mxu0 0.0
  %2954 = vmatprep.subr.mxu0 0.0
  %2955 = vmatpush1.msra.mxu0 0.0
  %2956 = vmatprep.subr.mxu0 0.0
  %2957 = vmatpush1.msra.mxu0 0.0
  %2958 = vmatprep.subr.mxu0 0.0
  %2959 = vmatpush1.msra.mxu0 0.0
  %2960 = vmatprep.subr.mxu0 0.0
  %2961 = vmatpush1.msra.mxu0 0.0
  %2962 = vmatprep.subr.mxu0 0.0
  %2963 = vmatpush1.msra.mxu0 0.0
  %2964 = vmatprep.subr.mxu0 0.0
  %2965 = vmatpush1.msra.mxu0 0.0
  %2966 = vmatprep.subr.mxu0 0.0
  %2967 = vmatpush1.msra.mxu0 0.0
  %2968 = vmatprep.subr.mxu0 0.0
  %2969 = vmatpush1.msra.mxu0 0.0
  %2970 = vmatprep.subr.mxu0 0.0
  %2971 = vmatpush1.msra.mxu0 0.0
  %2972 = vmatprep.subr.mxu0 0.0
  %2973 = vmatpush1.msra.mxu0 0.0
  %2974 = vmatprep.subr.mxu0 0.0
  %2975 = vmatpush1.msra.mxu0 0.0
  %2976 = vmatprep.subr.mxu0 0.0
  %2977 = vmatpush1.msra.mxu0 0.0
  %2978 = vmatprep.subr.mxu0 0.0
  %2979 = vmatpush1.msra.mxu0 0.0
  %2980 = vmatprep.subr.mxu0 0.0
  %2981 = vmatpush1.msra.mxu0 0.0
  %2982 = vmatprep.subr.mxu0 0.0
  %2983 = vmatpush1.msra.mxu0 0.0
  %2984 = vmatprep.subr.mxu0 0.0
  %2985 = vmatpush1.msra.mxu0 0.0
  %2986 = vmatprep.subr.mxu0 0.0
  %2987 = vmatpush1.msra.mxu0 0.0
  %2988 = vmatprep.subr.mxu0 0.0
  %2989 = vmatpush1.msra.mxu0 0.0
  %2990 = vmatprep.mubr.f32.mxu0 0.0
  %2991 = vmatmul.mubr.f32.gmra.mrb[0].mxu0 %v2921
  %v2992 = vpop.f32.mrb[0].mxu0
  %v2993 = vadd.f32 0.0, %v2992
  %v2994 = vpop.f32.mrb[0].mxu0
  %2995 = vmatprep.mubr.f32.mxu0 0.0
  %2996 = vmatmul.mubr.f32.gmra.mrb[0].mxu0 %v2924
  %v2997 = vpop.f32.mrb[0].mxu0
  %v2998 = vadd.f32 0.0, %v2997
  %v2999 = vpop.f32.mrb[0].mxu0
  %3000 = vdwg.mxu0
  %v3002 = vsel %vm787, %v763, 0
  %v3005 = vsel %vm787, %v764, 0
  %3007 = vmatprep.subr.mxu0 0.0
  %3008 = vmatpush1.msra.mxu0 %v599
  %3009 = vmatprep.subr.mxu0 0.0
  %3010 = vmatpush1.msra.mxu0 %v604
  %3011 = vmatprep.subr.mxu0 0.0
  %3012 = vmatpush1.msra.mxu0 0.0
  %3013 = vmatprep.subr.mxu0 0.0
  %3014 = vmatpush1.msra.mxu0 0.0
  %3015 = vmatprep.subr.mxu0 0.0
  %3016 = vmatpush1.msra.mxu0 0.0
  %3017 = vmatprep.subr.mxu0 0.0
  %3018 = vmatpush1.msra.mxu0 0.0
  %3019 = vmatprep.subr.mxu0 0.0
  %3020 = vmatpush1.msra.mxu0 0.0
  %3021 = vmatprep.subr.mxu0 0.0
  %3022 = vmatpush1.msra.mxu0 0.0
  %3023 = vmatprep.subr.mxu0 0.0
  %3024 = vmatpush1.msra.mxu0 0.0
  %3025 = vmatprep.subr.mxu0 0.0
  %3026 = vmatpush1.msra.mxu0 0.0
  %3027 = vmatprep.subr.mxu0 0.0
  %3028 = vmatpush1.msra.mxu0 0.0
  %3029 = vmatprep.subr.mxu0 0.0
  %3030 = vmatpush1.msra.mxu0 0.0
  %3031 = vmatprep.subr.mxu0 0.0
  %3032 = vmatpush1.msra.mxu0 0.0
  %3033 = vmatprep.subr.mxu0 0.0
  %3034 = vmatpush1.msra.mxu0 0.0
  %3035 = vmatprep.subr.mxu0 0.0
  %3036 = vmatpush1.msra.mxu0 0.0
  %3037 = vmatprep.subr.mxu0 0.0
  %3038 = vmatpush1.msra.mxu0 0.0
  %3039 = vmatprep.subr.mxu0 0.0
  %3040 = vmatpush1.msra.mxu0 0.0
  %3041 = vmatprep.subr.mxu0 0.0
  %3042 = vmatpush1.msra.mxu0 0.0
  %3043 = vmatprep.subr.mxu0 0.0
  %3044 = vmatpush1.msra.mxu0 0.0
  %3045 = vmatprep.subr.mxu0 0.0
  %3046 = vmatpush1.msra.mxu0 0.0
  %3047 = vmatprep.subr.mxu0 0.0
  %3048 = vmatpush1.msra.mxu0 0.0
  %3049 = vmatprep.subr.mxu0 0.0
  %3050 = vmatpush1.msra.mxu0 0.0
  %3051 = vmatprep.subr.mxu0 0.0
  %3052 = vmatpush1.msra.mxu0 0.0
  %3053 = vmatprep.subr.mxu0 0.0
  %3054 = vmatpush1.msra.mxu0 0.0
  %3055 = vmatprep.subr.mxu0 0.0
  %3056 = vmatpush1.msra.mxu0 0.0
  %3057 = vmatprep.subr.mxu0 0.0
  %3058 = vmatpush1.msra.mxu0 0.0
  %3059 = vmatprep.subr.mxu0 0.0
  %3060 = vmatpush1.msra.mxu0 0.0
  %3061 = vmatprep.subr.mxu0 0.0
  %3062 = vmatpush1.msra.mxu0 0.0
  %3063 = vmatprep.subr.mxu0 0.0
  %3064 = vmatpush1.msra.mxu0 0.0
  %3065 = vmatprep.subr.mxu0 0.0
  %3066 = vmatpush1.msra.mxu0 0.0
  %3067 = vmatprep.subr.mxu0 0.0
  %3068 = vmatpush1.msra.mxu0 0.0
  %3069 = vmatprep.subr.mxu0 0.0
  %3070 = vmatpush1.msra.mxu0 0.0
  %3071 = vmatprep.mubr.f32.mxu0 0.0
  %3072 = vmatmul.mubr.f32.gmra.mrb[0].mxu0 %v3002
  %v3073 = vpop.f32.mrb[0].mxu0
  %v3074 = vadd.f32 0.0, %v3073
  %v3075 = vpop.f32.mrb[0].mxu0
  %3076 = vmatprep.mubr.f32.mxu0 0.0
  %3077 = vmatmul.mubr.f32.gmra.mrb[0].mxu0 %v3005
  %v3078 = vpop.f32.mrb[0].mxu0
  %v3079 = vadd.f32 0.0, %v3078
  %v3080 = vpop.f32.mrb[0].mxu0
  %3081 = vdwg.mxu0
  %v3083 = vsel %vm787, %v765, 0
  %v3086 = vsel %vm787, %v766, 0
  %3088 = vmatprep.subr.mxu0 0.0
  %3089 = vmatpush1.msra.mxu0 %v609
  %3090 = vmatprep.subr.mxu0 0.0
  %3091 = vmatpush1.msra.mxu0 %v614
  %3092 = vmatprep.subr.mxu0 0.0
  %3093 = vmatpush1.msra.mxu0 0.0
  %3094 = vmatprep.subr.mxu0 0.0
  %3095 = vmatpush1.msra.mxu0 0.0
  %3096 = vmatprep.subr.mxu0 0.0
  %3097 = vmatpush1.msra.mxu0 0.0
  %3098 = vmatprep.subr.mxu0 0.0
  %3099 = vmatpush1.msra.mxu0 0.0
  %3100 = vmatprep.subr.mxu0 0.0
  %3101 = vmatpush1.msra.mxu0 0.0
  %3102 = vmatprep.subr.mxu0 0.0
  %3103 = vmatpush1.msra.mxu0 0.0
  %3104 = vmatprep.subr.mxu0 0.0
  %3105 = vmatpush1.msra.mxu0 0.0
  %3106 = vmatprep.subr.mxu0 0.0
  %3107 = vmatpush1.msra.mxu0 0.0
  %3108 = vmatprep.subr.mxu0 0.0
  %3109 = vmatpush1.msra.mxu0 0.0
  %3110 = vmatprep.subr.mxu0 0.0
  %3111 = vmatpush1.msra.mxu0 0.0
  %3112 = vmatprep.subr.mxu0 0.0
  %3113 = vmatpush1.msra.mxu0 0.0
  %3114 = vmatprep.subr.mxu0 0.0
  %3115 = vmatpush1.msra.mxu0 0.0
  %3116 = vmatprep.subr.mxu0 0.0
  %3117 = vmatpush1.msra.mxu0 0.0
  %3118 = vmatprep.subr.mxu0 0.0
  %3119 = vmatpush1.msra.mxu0 0.0
  %3120 = vmatprep.subr.mxu0 0.0
  %3121 = vmatpush1.msra.mxu0 0.0
  %3122 = vmatprep.subr.mxu0 0.0
  %3123 = vmatpush1.msra.mxu0 0.0
  %3124 = vmatprep.subr.mxu0 0.0
  %3125 = vmatpush1.msra.mxu0 0.0
  %3126 = vmatprep.subr.mxu0 0.0
  %3127 = vmatpush1.msra.mxu0 0.0
  %3128 = vmatprep.subr.mxu0 0.0
  %3129 = vmatpush1.msra.mxu0 0.0
  %3130 = vmatprep.subr.mxu0 0.0
  %3131 = vmatpush1.msra.mxu0 0.0
  %3132 = vmatprep.subr.mxu0 0.0
  %3133 = vmatpush1.msra.mxu0 0.0
  %3134 = vmatprep.subr.mxu0 0.0
  %3135 = vmatpush1.msra.mxu0 0.0
  %3136 = vmatprep.subr.mxu0 0.0
  %3137 = vmatpush1.msra.mxu0 0.0
  %3138 = vmatprep.subr.mxu0 0.0
  %3139 = vmatpush1.msra.mxu0 0.0
  %3140 = vmatprep.subr.mxu0 0.0
  %3141 = vmatpush1.msra.mxu0 0.0
  %3142 = vmatprep.subr.mxu0 0.0
  %3143 = vmatpush1.msra.mxu0 0.0
  %3144 = vmatprep.subr.mxu0 0.0
  %3145 = vmatpush1.msra.mxu0 0.0
  %3146 = vmatprep.subr.mxu0 0.0
  %3147 = vmatpush1.msra.mxu0 0.0
  %3148 = vmatprep.subr.mxu0 0.0
  %3149 = vmatpush1.msra.mxu0 0.0
  %3150 = vmatprep.subr.mxu0 0.0
  %3151 = vmatpush1.msra.mxu0 0.0
  %3152 = vmatprep.mubr.f32.mxu0 0.0
  %3153 = vmatmul.mubr.f32.gmra.mrb[0].mxu0 %v3083
  %v3154 = vpop.f32.mrb[0].mxu0
  %v3155 = vadd.f32 0.0, %v3154
  %v3156 = vpop.f32.mrb[0].mxu0
  %3157 = vmatprep.mubr.f32.mxu0 0.0
  %3158 = vmatmul.mubr.f32.gmra.mrb[0].mxu0 %v3086
  %v3159 = vpop.f32.mrb[0].mxu0
  %v3160 = vadd.f32 0.0, %v3159
  %v3161 = vpop.f32.mrb[0].mxu0
  %3162 = vdwg.mxu0
  %v3164 = vsel %vm787, %v767, 0
  %v3167 = vsel %vm787, %v768, 0
  %3169 = vmatprep.subr.mxu0 0.0
  %3170 = vmatpush1.msra.mxu0 %v619
  %3171 = vmatprep.subr.mxu0 0.0
  %3172 = vmatpush1.msra.mxu0 %v624
  %3173 = vmatprep.subr.mxu0 0.0
  %3174 = vmatpush1.msra.mxu0 0.0
  %3175 = vmatprep.subr.mxu0 0.0
  %3176 = vmatpush1.msra.mxu0 0.0
  %3177 = vmatprep.subr.mxu0 0.0
  %3178 = vmatpush1.msra.mxu0 0.0
  %3179 = vmatprep.subr.mxu0 0.0
  %3180 = vmatpush1.msra.mxu0 0.0
  %3181 = vmatprep.subr.mxu0 0.0
  %3182 = vmatpush1.msra.mxu0 0.0
  %3183 = vmatprep.subr.mxu0 0.0
  %3184 = vmatpush1.msra.mxu0 0.0
  %3185 = vmatprep.subr.mxu0 0.0
  %3186 = vmatpush1.msra.mxu0 0.0
  %3187 = vmatprep.subr.mxu0 0.0
  %3188 = vmatpush1.msra.mxu0 0.0
  %3189 = vmatprep.subr.mxu0 0.0
  %3190 = vmatpush1.msra.mxu0 0.0
  %3191 = vmatprep.subr.mxu0 0.0
  %3192 = vmatpush1.msra.mxu0 0.0
  %3193 = vmatprep.subr.mxu0 0.0
  %3194 = vmatpush1.msra.mxu0 0.0
  %3195 = vmatprep.subr.mxu0 0.0
  %3196 = vmatpush1.msra.mxu0 0.0
  %3197 = vmatprep.subr.mxu0 0.0
  %3198 = vmatpush1.msra.mxu0 0.0
  %3199 = vmatprep.subr.mxu0 0.0
  %3200 = vmatpush1.msra.mxu0 0.0
  %3201 = vmatprep.subr.mxu0 0.0
  %3202 = vmatpush1.msra.mxu0 0.0
  %3203 = vmatprep.subr.mxu0 0.0
  %3204 = vmatpush1.msra.mxu0 0.0
  %3205 = vmatprep.subr.mxu0 0.0
  %3206 = vmatpush1.msra.mxu0 0.0
  %3207 = vmatprep.subr.mxu0 0.0
  %3208 = vmatpush1.msra.mxu0 0.0
  %3209 = vmatprep.subr.mxu0 0.0
  %3210 = vmatpush1.msra.mxu0 0.0
  %3211 = vmatprep.subr.mxu0 0.0
  %3212 = vmatpush1.msra.mxu0 0.0
  %3213 = vmatprep.subr.mxu0 0.0
  %3214 = vmatpush1.msra.mxu0 0.0
  %3215 = vmatprep.subr.mxu0 0.0
  %3216 = vmatpush1.msra.mxu0 0.0
  %3217 = vmatprep.subr.mxu0 0.0
  %3218 = vmatpush1.msra.mxu0 0.0
  %3219 = vmatprep.subr.mxu0 0.0
  %3220 = vmatpush1.msra.mxu0 0.0
  %3221 = vmatprep.subr.mxu0 0.0
  %3222 = vmatpush1.msra.mxu0 0.0
  %3223 = vmatprep.subr.mxu0 0.0
  %3224 = vmatpush1.msra.mxu0 0.0
  %3225 = vmatprep.subr.mxu0 0.0
  %3226 = vmatpush1.msra.mxu0 0.0
  %3227 = vmatprep.subr.mxu0 0.0
  %3228 = vmatpush1.msra.mxu0 0.0
  %3229 = vmatprep.subr.mxu0 0.0
  %3230 = vmatpush1.msra.mxu0 0.0
  %3231 = vmatprep.subr.mxu0 0.0
  %3232 = vmatpush1.msra.mxu0 0.0
  %3233 = vmatprep.mubr.f32.mxu0 0.0
  %3234 = vmatmul.mubr.f32.gmra.mrb[0].mxu0 %v3164
  %v3235 = vpop.f32.mrb[0].mxu0
  %v3236 = vadd.f32 0.0, %v3235
  %v3237 = vpop.f32.mrb[0].mxu0
  %3238 = vmatprep.mubr.f32.mxu0 0.0
  %3239 = vmatmul.mubr.f32.gmra.mrb[0].mxu0 %v3167
  %v3240 = vpop.f32.mrb[0].mxu0
  %v3241 = vadd.f32 0.0, %v3240
  %v3242 = vpop.f32.mrb[0].mxu0
  %3243 = vdwg.mxu0
  %v3245 = vsel %vm787, %v769, 0
  %v3248 = vsel %vm787, %v770, 0
  %3250 = vmatprep.subr.mxu0 0.0
  %3251 = vmatpush1.msra.mxu0 %v629
  %3252 = vmatprep.subr.mxu0 0.0
  %3253 = vmatpush1.msra.mxu0 %v634
  %3254 = vmatprep.subr.mxu0 0.0
  %3255 = vmatpush1.msra.mxu0 0.0
  %3256 = vmatprep.subr.mxu0 0.0
  %3257 = vmatpush1.msra.mxu0 0.0
  %3258 = vmatprep.subr.mxu0 0.0
  %3259 = vmatpush1.msra.mxu0 0.0
  %3260 = vmatprep.subr.mxu0 0.0
  %3261 = vmatpush1.msra.mxu0 0.0
  %3262 = vmatprep.subr.mxu0 0.0
  %3263 = vmatpush1.msra.mxu0 0.0
  %3264 = vmatprep.subr.mxu0 0.0
  %3265 = vmatpush1.msra.mxu0 0.0
  %3266 = vmatprep.subr.mxu0 0.0
  %3267 = vmatpush1.msra.mxu0 0.0
  %3268 = vmatprep.subr.mxu0 0.0
  %3269 = vmatpush1.msra.mxu0 0.0
  %3270 = vmatprep.subr.mxu0 0.0
  %3271 = vmatpush1.msra.mxu0 0.0
  %3272 = vmatprep.subr.mxu0 0.0
  %3273 = vmatpush1.msra.mxu0 0.0
  %3274 = vmatprep.subr.mxu0 0.0
  %3275 = vmatpush1.msra.mxu0 0.0
  %3276 = vmatprep.subr.mxu0 0.0
  %3277 = vmatpush1.msra.mxu0 0.0
  %3278 = vmatprep.subr.mxu0 0.0
  %3279 = vmatpush1.msra.mxu0 0.0
  %3280 = vmatprep.subr.mxu0 0.0
  %3281 = vmatpush1.msra.mxu0 0.0
  %3282 = vmatprep.subr.mxu0 0.0
  %3283 = vmatpush1.msra.mxu0 0.0
  %3284 = vmatprep.subr.mxu0 0.0
  %3285 = vmatpush1.msra.mxu0 0.0
  %3286 = vmatprep.subr.mxu0 0.0
  %3287 = vmatpush1.msra.mxu0 0.0
  %3288 = vmatprep.subr.mxu0 0.0
  %3289 = vmatpush1.msra.mxu0 0.0
  %3290 = vmatprep.subr.mxu0 0.0
  %3291 = vmatpush1.msra.mxu0 0.0
  %3292 = vmatprep.subr.mxu0 0.0
  %3293 = vmatpush1.msra.mxu0 0.0
  %3294 = vmatprep.subr.mxu0 0.0
  %3295 = vmatpush1.msra.mxu0 0.0
  %3296 = vmatprep.subr.mxu0 0.0
  %3297 = vmatpush1.msra.mxu0 0.0
  %3298 = vmatprep.subr.mxu0 0.0
  %3299 = vmatpush1.msra.mxu0 0.0
  %3300 = vmatprep.subr.mxu0 0.0
  %3301 = vmatpush1.msra.mxu0 0.0
  %3302 = vmatprep.subr.mxu0 0.0
  %3303 = vmatpush1.msra.mxu0 0.0
  %3304 = vmatprep.subr.mxu0 0.0
  %3305 = vmatpush1.msra.mxu0 0.0
  %3306 = vmatprep.subr.mxu0 0.0
  %3307 = vmatpush1.msra.mxu0 0.0
  %3308 = vmatprep.subr.mxu0 0.0
  %3309 = vmatpush1.msra.mxu0 0.0
  %3310 = vmatprep.subr.mxu0 0.0
  %3311 = vmatpush1.msra.mxu0 0.0
  %3312 = vmatprep.subr.mxu0 0.0
  %3313 = vmatpush1.msra.mxu0 0.0
  %3314 = vmatprep.mubr.f32.mxu0 0.0
  %3315 = vmatmul.mubr.f32.gmra.mrb[0].mxu0 %v3245
  %v3316 = vpop.f32.mrb[0].mxu0
  %v3317 = vadd.f32 0.0, %v3316
  %v3318 = vpop.f32.mrb[0].mxu0
  %3319 = vmatprep.mubr.f32.mxu0 0.0
  %3320 = vmatmul.mubr.f32.gmra.mrb[0].mxu0 %v3248
  %v3321 = vpop.f32.mrb[0].mxu0
  %v3322 = vadd.f32 0.0, %v3321
  %v3323 = vpop.f32.mrb[0].mxu0
  %3324 = vdwg.mxu0
  %v3326 = vsel %vm787, %v771, 0
  %v3329 = vsel %vm787, %v772, 0
  %3331 = vmatprep.subr.mxu0 0.0
  %3332 = vmatpush1.msra.mxu0 %v639
  %3333 = vmatprep.subr.mxu0 0.0
  %3334 = vmatpush1.msra.mxu0 %v644
  %3335 = vmatprep.subr.mxu0 0.0
  %3336 = vmatpush1.msra.mxu0 0.0
  %3337 = vmatprep.subr.mxu0 0.0
  %3338 = vmatpush1.msra.mxu0 0.0
  %3339 = vmatprep.subr.mxu0 0.0
  %3340 = vmatpush1.msra.mxu0 0.0
  %3341 = vmatprep.subr.mxu0 0.0
  %3342 = vmatpush1.msra.mxu0 0.0
  %3343 = vmatprep.subr.mxu0 0.0
  %3344 = vmatpush1.msra.mxu0 0.0
  %3345 = vmatprep.subr.mxu0 0.0
  %3346 = vmatpush1.msra.mxu0 0.0
  %3347 = vmatprep.subr.mxu0 0.0
  %3348 = vmatpush1.msra.mxu0 0.0
  %3349 = vmatprep.subr.mxu0 0.0
  %3350 = vmatpush1.msra.mxu0 0.0
  %3351 = vmatprep.subr.mxu0 0.0
  %3352 = vmatpush1.msra.mxu0 0.0
  %3353 = vmatprep.subr.mxu0 0.0
  %3354 = vmatpush1.msra.mxu0 0.0
  %3355 = vmatprep.subr.mxu0 0.0
  %3356 = vmatpush1.msra.mxu0 0.0
  %3357 = vmatprep.subr.mxu0 0.0
  %3358 = vmatpush1.msra.mxu0 0.0
  %3359 = vmatprep.subr.mxu0 0.0
  %3360 = vmatpush1.msra.mxu0 0.0
  %3361 = vmatprep.subr.mxu0 0.0
  %3362 = vmatpush1.msra.mxu0 0.0
  %3363 = vmatprep.subr.mxu0 0.0
  %3364 = vmatpush1.msra.mxu0 0.0
  %3365 = vmatprep.subr.mxu0 0.0
  %3366 = vmatpush1.msra.mxu0 0.0
  %3367 = vmatprep.subr.mxu0 0.0
  %3368 = vmatpush1.msra.mxu0 0.0
  %3369 = vmatprep.subr.mxu0 0.0
  %3370 = vmatpush1.msra.mxu0 0.0
  %3371 = vmatprep.subr.mxu0 0.0
  %3372 = vmatpush1.msra.mxu0 0.0
  %3373 = vmatprep.subr.mxu0 0.0
  %3374 = vmatpush1.msra.mxu0 0.0
  %3375 = vmatprep.subr.mxu0 0.0
  %3376 = vmatpush1.msra.mxu0 0.0
  %3377 = vmatprep.subr.mxu0 0.0
  %3378 = vmatpush1.msra.mxu0 0.0
  %3379 = vmatprep.subr.mxu0 0.0
  %3380 = vmatpush1.msra.mxu0 0.0
  %3381 = vmatprep.subr.mxu0 0.0
  %3382 = vmatpush1.msra.mxu0 0.0
  %3383 = vmatprep.subr.mxu0 0.0
  %3384 = vmatpush1.msra.mxu0 0.0
  %3385 = vmatprep.subr.mxu0 0.0
  %3386 = vmatpush1.msra.mxu0 0.0
  %3387 = vmatprep.subr.mxu0 0.0
  %3388 = vmatpush1.msra.mxu0 0.0
  %3389 = vmatprep.subr.mxu0 0.0
  %3390 = vmatpush1.msra.mxu0 0.0
  %3391 = vmatprep.subr.mxu0 0.0
  %3392 = vmatpush1.msra.mxu0 0.0
  %3393 = vmatprep.subr.mxu0 0.0
  %3394 = vmatpush1.msra.mxu0 0.0
  %3395 = vmatprep.mubr.f32.mxu0 0.0
  %3396 = vmatmul.mubr.f32.gmra.mrb[0].mxu0 %v3326
  %v3397 = vpop.f32.mrb[0].mxu0
  %v3398 = vadd.f32 0.0, %v3397
  %v3399 = vpop.f32.mrb[0].mxu0
  %3400 = vmatprep.mubr.f32.mxu0 0.0
  %3401 = vmatmul.mubr.f32.gmra.mrb[0].mxu0 %v3329
  %v3402 = vpop.f32.mrb[0].mxu0
  %v3403 = vadd.f32 0.0, %v3402
  %v3404 = vpop.f32.mrb[0].mxu0
  %3405 = vdwg.mxu0
  %v3407 = vsel %vm787, %v773, 0
  %v3410 = vsel %vm787, %v774, 0
  %3412 = vmatprep.subr.mxu0 0.0
  %3413 = vmatpush1.msra.mxu0 %v649
  %3414 = vmatprep.subr.mxu0 0.0
  %3415 = vmatpush1.msra.mxu0 %v654
  %3416 = vmatprep.subr.mxu0 0.0
  %3417 = vmatpush1.msra.mxu0 0.0
  %3418 = vmatprep.subr.mxu0 0.0
  %3419 = vmatpush1.msra.mxu0 0.0
  %3420 = vmatprep.subr.mxu0 0.0
  %3421 = vmatpush1.msra.mxu0 0.0
  %3422 = vmatprep.subr.mxu0 0.0
  %3423 = vmatpush1.msra.mxu0 0.0
  %3424 = vmatprep.subr.mxu0 0.0
  %3425 = vmatpush1.msra.mxu0 0.0
  %3426 = vmatprep.subr.mxu0 0.0
  %3427 = vmatpush1.msra.mxu0 0.0
  %3428 = vmatprep.subr.mxu0 0.0
  %3429 = vmatpush1.msra.mxu0 0.0
  %3430 = vmatprep.subr.mxu0 0.0
  %3431 = vmatpush1.msra.mxu0 0.0
  %3432 = vmatprep.subr.mxu0 0.0
  %3433 = vmatpush1.msra.mxu0 0.0
  %3434 = vmatprep.subr.mxu0 0.0
  %3435 = vmatpush1.msra.mxu0 0.0
  %3436 = vmatprep.subr.mxu0 0.0
  %3437 = vmatpush1.msra.mxu0 0.0
  %3438 = vmatprep.subr.mxu0 0.0
  %3439 = vmatpush1.msra.mxu0 0.0
  %3440 = vmatprep.subr.mxu0 0.0
  %3441 = vmatpush1.msra.mxu0 0.0
  %3442 = vmatprep.subr.mxu0 0.0
  %3443 = vmatpush1.msra.mxu0 0.0
  %3444 = vmatprep.subr.mxu0 0.0
  %3445 = vmatpush1.msra.mxu0 0.0
  %3446 = vmatprep.subr.mxu0 0.0
  %3447 = vmatpush1.msra.mxu0 0.0
  %3448 = vmatprep.subr.mxu0 0.0
  %3449 = vmatpush1.msra.mxu0 0.0
  %3450 = vmatprep.subr.mxu0 0.0
  %3451 = vmatpush1.msra.mxu0 0.0
  %3452 = vmatprep.subr.mxu0 0.0
  %3453 = vmatpush1.msra.mxu0 0.0
  %3454 = vmatprep.subr.mxu0 0.0
  %3455 = vmatpush1.msra.mxu0 0.0
  %3456 = vmatprep.subr.mxu0 0.0
  %3457 = vmatpush1.msra.mxu0 0.0
  %3458 = vmatprep.subr.mxu0 0.0
  %3459 = vmatpush1.msra.mxu0 0.0
  %3460 = vmatprep.subr.mxu0 0.0
  %3461 = vmatpush1.msra.mxu0 0.0
  %3462 = vmatprep.subr.mxu0 0.0
  %3463 = vmatpush1.msra.mxu0 0.0
  %3464 = vmatprep.subr.mxu0 0.0
  %3465 = vmatpush1.msra.mxu0 0.0
  %3466 = vmatprep.subr.mxu0 0.0
  %3467 = vmatpush1.msra.mxu0 0.0
  %3468 = vmatprep.subr.mxu0 0.0
  %3469 = vmatpush1.msra.mxu0 0.0
  %3470 = vmatprep.subr.mxu0 0.0
  %3471 = vmatpush1.msra.mxu0 0.0
  %3472 = vmatprep.subr.mxu0 0.0
  %3473 = vmatpush1.msra.mxu0 0.0
  %3474 = vmatprep.subr.mxu0 0.0
  %3475 = vmatpush1.msra.mxu0 0.0
  %3476 = vmatprep.mubr.f32.mxu0 0.0
  %3477 = vmatmul.mubr.f32.gmra.mrb[0].mxu0 %v3407
  %v3478 = vpop.f32.mrb[0].mxu0
  %v3479 = vadd.f32 0.0, %v3478
  %v3480 = vpop.f32.mrb[0].mxu0
  %3481 = vmatprep.mubr.f32.mxu0 0.0
  %3482 = vmatmul.mubr.f32.gmra.mrb[0].mxu0 %v3410
  %v3483 = vpop.f32.mrb[0].mxu0
  %v3484 = vadd.f32 0.0, %v3483
  %v3485 = vpop.f32.mrb[0].mxu0
  %3486 = vdwg.mxu0
  %v3488 = vsel %vm787, %v775, 0
  %v3491 = vsel %vm787, %v776, 0
  %3493 = vmatprep.subr.mxu0 0.0
  %3494 = vmatpush1.msra.mxu0 %v659
  %3495 = vmatprep.subr.mxu0 0.0
  %3496 = vmatpush1.msra.mxu0 %v664
  %3497 = vmatprep.subr.mxu0 0.0
  %3498 = vmatpush1.msra.mxu0 0.0
  %3499 = vmatprep.subr.mxu0 0.0
  %3500 = vmatpush1.msra.mxu0 0.0
  %3501 = vmatprep.subr.mxu0 0.0
  %3502 = vmatpush1.msra.mxu0 0.0
  %3503 = vmatprep.subr.mxu0 0.0
  %3504 = vmatpush1.msra.mxu0 0.0
  %3505 = vmatprep.subr.mxu0 0.0
  %3506 = vmatpush1.msra.mxu0 0.0
  %3507 = vmatprep.subr.mxu0 0.0
  %3508 = vmatpush1.msra.mxu0 0.0
  %3509 = vmatprep.subr.mxu0 0.0
  %3510 = vmatpush1.msra.mxu0 0.0
  %3511 = vmatprep.subr.mxu0 0.0
  %3512 = vmatpush1.msra.mxu0 0.0
  %3513 = vmatprep.subr.mxu0 0.0
  %3514 = vmatpush1.msra.mxu0 0.0
  %3515 = vmatprep.subr.mxu0 0.0
  %3516 = vmatpush1.msra.mxu0 0.0
  %3517 = vmatprep.subr.mxu0 0.0
  %3518 = vmatpush1.msra.mxu0 0.0
  %3519 = vmatprep.subr.mxu0 0.0
  %3520 = vmatpush1.msra.mxu0 0.0
  %3521 = vmatprep.subr.mxu0 0.0
  %3522 = vmatpush1.msra.mxu0 0.0
  %3523 = vmatprep.subr.mxu0 0.0
  %3524 = vmatpush1.msra.mxu0 0.0
  %3525 = vmatprep.subr.mxu0 0.0
  %3526 = vmatpush1.msra.mxu0 0.0
  %3527 = vmatprep.subr.mxu0 0.0
  %3528 = vmatpush1.msra.mxu0 0.0
  %3529 = vmatprep.subr.mxu0 0.0
  %3530 = vmatpush1.msra.mxu0 0.0
  %3531 = vmatprep.subr.mxu0 0.0
  %3532 = vmatpush1.msra.mxu0 0.0
  %3533 = vmatprep.subr.mxu0 0.0
  %3534 = vmatpush1.msra.mxu0 0.0
  %3535 = vmatprep.subr.mxu0 0.0
  %3536 = vmatpush1.msra.mxu0 0.0
  %3537 = vmatprep.subr.mxu0 0.0
  %3538 = vmatpush1.msra.mxu0 0.0
  %3539 = vmatprep.subr.mxu0 0.0
  %3540 = vmatpush1.msra.mxu0 0.0
  %3541 = vmatprep.subr.mxu0 0.0
  %3542 = vmatpush1.msra.mxu0 0.0
  %3543 = vmatprep.subr.mxu0 0.0
  %3544 = vmatpush1.msra.mxu0 0.0
  %3545 = vmatprep.subr.mxu0 0.0
  %3546 = vmatpush1.msra.mxu0 0.0
  %3547 = vmatprep.subr.mxu0 0.0
  %3548 = vmatpush1.msra.mxu0 0.0
  %3549 = vmatprep.subr.mxu0 0.0
  %3550 = vmatpush1.msra.mxu0 0.0
  %3551 = vmatprep.subr.mxu0 0.0
  %3552 = vmatpush1.msra.mxu0 0.0
  %3553 = vmatprep.subr.mxu0 0.0
  %3554 = vmatpush1.msra.mxu0 0.0
  %3555 = vmatprep.subr.mxu0 0.0
  %3556 = vmatpush1.msra.mxu0 0.0
  %3557 = vmatprep.mubr.f32.mxu0 0.0
  %3558 = vmatmul.mubr.f32.gmra.mrb[0].mxu0 %v3488
  %v3559 = vpop.f32.mrb[0].mxu0
  %v3560 = vadd.f32 0.0, %v3559
  %v3561 = vpop.f32.mrb[0].mxu0
  %3562 = vmatprep.mubr.f32.mxu0 0.0
  %3563 = vmatmul.mubr.f32.gmra.mrb[0].mxu0 %v3491
  %v3564 = vpop.f32.mrb[0].mxu0
  %v3565 = vadd.f32 0.0, %v3564
  %v3566 = vpop.f32.mrb[0].mxu0
  %3567 = vdwg.mxu0
  %v3569 = vsel %vm787, %v777, 0
  %v3572 = vsel %vm787, %v778, 0
  %3574 = vmatprep.subr.mxu0 0.0
  %3575 = vmatpush1.msra.mxu0 %v669
  %3576 = vmatprep.subr.mxu0 0.0
  %3577 = vmatpush1.msra.mxu0 %v674
  %3578 = vmatprep.subr.mxu0 0.0
  %3579 = vmatpush1.msra.mxu0 0.0
  %3580 = vmatprep.subr.mxu0 0.0
  %3581 = vmatpush1.msra.mxu0 0.0
  %3582 = vmatprep.subr.mxu0 0.0
  %3583 = vmatpush1.msra.mxu0 0.0
  %3584 = vmatprep.subr.mxu0 0.0
  %3585 = vmatpush1.msra.mxu0 0.0
  %3586 = vmatprep.subr.mxu0 0.0
  %3587 = vmatpush1.msra.mxu0 0.0
  %3588 = vmatprep.subr.mxu0 0.0
  %3589 = vmatpush1.msra.mxu0 0.0
  %3590 = vmatprep.subr.mxu0 0.0
  %3591 = vmatpush1.msra.mxu0 0.0
  %3592 = vmatprep.subr.mxu0 0.0
  %3593 = vmatpush1.msra.mxu0 0.0
  %3594 = vmatprep.subr.mxu0 0.0
  %3595 = vmatpush1.msra.mxu0 0.0
  %3596 = vmatprep.subr.mxu0 0.0
  %3597 = vmatpush1.msra.mxu0 0.0
  %3598 = vmatprep.subr.mxu0 0.0
  %3599 = vmatpush1.msra.mxu0 0.0
  %3600 = vmatprep.subr.mxu0 0.0
  %3601 = vmatpush1.msra.mxu0 0.0
  %3602 = vmatprep.subr.mxu0 0.0
  %3603 = vmatpush1.msra.mxu0 0.0
  %3604 = vmatprep.subr.mxu0 0.0
  %3605 = vmatpush1.msra.mxu0 0.0
  %3606 = vmatprep.subr.mxu0 0.0
  %3607 = vmatpush1.msra.mxu0 0.0
  %3608 = vmatprep.subr.mxu0 0.0
  %3609 = vmatpush1.msra.mxu0 0.0
  %3610 = vmatprep.subr.mxu0 0.0
  %3611 = vmatpush1.msra.mxu0 0.0
  %3612 = vmatprep.subr.mxu0 0.0
  %3613 = vmatpush1.msra.mxu0 0.0
  %3614 = vmatprep.subr.mxu0 0.0
  %3615 = vmatpush1.msra.mxu0 0.0
  %3616 = vmatprep.subr.mxu0 0.0
  %3617 = vmatpush1.msra.mxu0 0.0
  %3618 = vmatprep.subr.mxu0 0.0
  %3619 = vmatpush1.msra.mxu0 0.0
  %3620 = vmatprep.subr.mxu0 0.0
  %3621 = vmatpush1.msra.mxu0 0.0
  %3622 = vmatprep.subr.mxu0 0.0
  %3623 = vmatpush1.msra.mxu0 0.0
  %3624 = vmatprep.subr.mxu0 0.0
  %3625 = vmatpush1.msra.mxu0 0.0
  %3626 = vmatprep.subr.mxu0 0.0
  %3627 = vmatpush1.msra.mxu0 0.0
  %3628 = vmatprep.subr.mxu0 0.0
  %3629 = vmatpush1.msra.mxu0 0.0
  %3630 = vmatprep.subr.mxu0 0.0
  %3631 = vmatpush1.msra.mxu0 0.0
  %3632 = vmatprep.subr.mxu0 0.0
  %3633 = vmatpush1.msra.mxu0 0.0
  %3634 = vmatprep.subr.mxu0 0.0
  %3635 = vmatpush1.msra.mxu0 0.0
  %3636 = vmatprep.subr.mxu0 0.0
  %3637 = vmatpush1.msra.mxu0 0.0
  %3638 = vmatprep.mubr.f32.mxu0 0.0
  %3639 = vmatmul.mubr.f32.gmra.mrb[0].mxu0 %v3569
  %v3640 = vpop.f32.mrb[0].mxu0
  %v3641 = vadd.f32 0.0, %v3640
  %v3642 = vpop.f32.mrb[0].mxu0
  %3643 = vmatprep.mubr.f32.mxu0 0.0
  %3644 = vmatmul.mubr.f32.gmra.mrb[0].mxu0 %v3572
  %v3645 = vpop.f32.mrb[0].mxu0
  %v3646 = vadd.f32 0.0, %v3645
  %v3647 = vpop.f32.mrb[0].mxu0
  %3648 = vdwg.mxu0
  %v3650 = vsel %vm787, %v779, 0
  %v3653 = vsel %vm787, %v780, 0
  %3655 = vmatprep.subr.mxu0 0.0
  %3656 = vmatpush1.msra.mxu0 %v679
  %3657 = vmatprep.subr.mxu0 0.0
  %3658 = vmatpush1.msra.mxu0 %v684
  %3659 = vmatprep.subr.mxu0 0.0
  %3660 = vmatpush1.msra.mxu0 0.0
  %3661 = vmatprep.subr.mxu0 0.0
  %3662 = vmatpush1.msra.mxu0 0.0
  %3663 = vmatprep.subr.mxu0 0.0
  %3664 = vmatpush1.msra.mxu0 0.0
  %3665 = vmatprep.subr.mxu0 0.0
  %3666 = vmatpush1.msra.mxu0 0.0
  %3667 = vmatprep.subr.mxu0 0.0
  %3668 = vmatpush1.msra.mxu0 0.0
  %3669 = vmatprep.subr.mxu0 0.0
  %3670 = vmatpush1.msra.mxu0 0.0
  %3671 = vmatprep.subr.mxu0 0.0
  %3672 = vmatpush1.msra.mxu0 0.0
  %3673 = vmatprep.subr.mxu0 0.0
  %3674 = vmatpush1.msra.mxu0 0.0
  %3675 = vmatprep.subr.mxu0 0.0
  %3676 = vmatpush1.msra.mxu0 0.0
  %3677 = vmatprep.subr.mxu0 0.0
  %3678 = vmatpush1.msra.mxu0 0.0
  %3679 = vmatprep.subr.mxu0 0.0
  %3680 = vmatpush1.msra.mxu0 0.0
  %3681 = vmatprep.subr.mxu0 0.0
  %3682 = vmatpush1.msra.mxu0 0.0
  %3683 = vmatprep.subr.mxu0 0.0
  %3684 = vmatpush1.msra.mxu0 0.0
  %3685 = vmatprep.subr.mxu0 0.0
  %3686 = vmatpush1.msra.mxu0 0.0
  %3687 = vmatprep.subr.mxu0 0.0
  %3688 = vmatpush1.msra.mxu0 0.0
  %3689 = vmatprep.subr.mxu0 0.0
  %3690 = vmatpush1.msra.mxu0 0.0
  %3691 = vmatprep.subr.mxu0 0.0
  %3692 = vmatpush1.msra.mxu0 0.0
  %3693 = vmatprep.subr.mxu0 0.0
  %3694 = vmatpush1.msra.mxu0 0.0
  %3695 = vmatprep.subr.mxu0 0.0
  %3696 = vmatpush1.msra.mxu0 0.0
  %3697 = vmatprep.subr.mxu0 0.0
  %3698 = vmatpush1.msra.mxu0 0.0
  %3699 = vmatprep.subr.mxu0 0.0
  %3700 = vmatpush1.msra.mxu0 0.0
  %3701 = vmatprep.subr.mxu0 0.0
  %3702 = vmatpush1.msra.mxu0 0.0
  %3703 = vmatprep.subr.mxu0 0.0
  %3704 = vmatpush1.msra.mxu0 0.0
  %3705 = vmatprep.subr.mxu0 0.0
  %3706 = vmatpush1.msra.mxu0 0.0
  %3707 = vmatprep.subr.mxu0 0.0
  %3708 = vmatpush1.msra.mxu0 0.0
  %3709 = vmatprep.subr.mxu0 0.0
  %3710 = vmatpush1.msra.mxu0 0.0
  %3711 = vmatprep.subr.mxu0 0.0
  %3712 = vmatpush1.msra.mxu0 0.0
  %3713 = vmatprep.subr.mxu0 0.0
  %3714 = vmatpush1.msra.mxu0 0.0
  %3715 = vmatprep.subr.mxu0 0.0
  %3716 = vmatpush1.msra.mxu0 0.0
  %3717 = vmatprep.subr.mxu0 0.0
  %3718 = vmatpush1.msra.mxu0 0.0
  %3719 = vmatprep.mubr.f32.mxu0 0.0
  %3720 = vmatmul.mubr.f32.gmra.mrb[0].mxu0 %v3650
  %v3721 = vpop.f32.mrb[0].mxu0
  %v3722 = vadd.f32 0.0, %v3721
  %v3723 = vpop.f32.mrb[0].mxu0
  %3724 = vmatprep.mubr.f32.mxu0 0.0
  %3725 = vmatmul.mubr.f32.gmra.mrb[0].mxu0 %v3653
  %v3726 = vpop.f32.mrb[0].mxu0
  %v3727 = vadd.f32 0.0, %v3726
  %v3728 = vpop.f32.mrb[0].mxu0
  %3729 = vdwg.mxu0
  %v3731 = vsel %vm787, %v781, 0
  %v3734 = vsel %vm787, %v782, 0
  %3736 = vmatprep.subr.mxu0 0.0
  %3737 = vmatpush1.msra.mxu0 %v689
  %3738 = vmatprep.subr.mxu0 0.0
  %3739 = vmatpush1.msra.mxu0 %v694
  %3740 = vmatprep.subr.mxu0 0.0
  %3741 = vmatpush1.msra.mxu0 0.0
  %3742 = vmatprep.subr.mxu0 0.0
  %3743 = vmatpush1.msra.mxu0 0.0
  %3744 = vmatprep.subr.mxu0 0.0
  %3745 = vmatpush1.msra.mxu0 0.0
  %3746 = vmatprep.subr.mxu0 0.0
  %3747 = vmatpush1.msra.mxu0 0.0
  %3748 = vmatprep.subr.mxu0 0.0
  %3749 = vmatpush1.msra.mxu0 0.0
  %3750 = vmatprep.subr.mxu0 0.0
  %3751 = vmatpush1.msra.mxu0 0.0
  %3752 = vmatprep.subr.mxu0 0.0
  %3753 = vmatpush1.msra.mxu0 0.0
  %3754 = vmatprep.subr.mxu0 0.0
  %3755 = vmatpush1.msra.mxu0 0.0
  %3756 = vmatprep.subr.mxu0 0.0
  %3757 = vmatpush1.msra.mxu0 0.0
  %3758 = vmatprep.subr.mxu0 0.0
  %3759 = vmatpush1.msra.mxu0 0.0
  %3760 = vmatprep.subr.mxu0 0.0
  %3761 = vmatpush1.msra.mxu0 0.0
  %3762 = vmatprep.subr.mxu0 0.0
  %3763 = vmatpush1.msra.mxu0 0.0
  %3764 = vmatprep.subr.mxu0 0.0
  %3765 = vmatpush1.msra.mxu0 0.0
  %3766 = vmatprep.subr.mxu0 0.0
  %3767 = vmatpush1.msra.mxu0 0.0
  %3768 = vmatprep.subr.mxu0 0.0
  %3769 = vmatpush1.msra.mxu0 0.0
  %3770 = vmatprep.subr.mxu0 0.0
  %3771 = vmatpush1.msra.mxu0 0.0
  %3772 = vmatprep.subr.mxu0 0.0
  %3773 = vmatpush1.msra.mxu0 0.0
  %3774 = vmatprep.subr.mxu0 0.0
  %3775 = vmatpush1.msra.mxu0 0.0
  %3776 = vmatprep.subr.mxu0 0.0
  %3777 = vmatpush1.msra.mxu0 0.0
  %3778 = vmatprep.subr.mxu0 0.0
  %3779 = vmatpush1.msra.mxu0 0.0
  %3780 = vmatprep.subr.mxu0 0.0
  %3781 = vmatpush1.msra.mxu0 0.0
  %3782 = vmatprep.subr.mxu0 0.0
  %3783 = vmatpush1.msra.mxu0 0.0
  %3784 = vmatprep.subr.mxu0 0.0
  %3785 = vmatpush1.msra.mxu0 0.0
  %3786 = vmatprep.subr.mxu0 0.0
  %3787 = vmatpush1.msra.mxu0 0.0
  %3788 = vmatprep.subr.mxu0 0.0
  %3789 = vmatpush1.msra.mxu0 0.0
  %3790 = vmatprep.subr.mxu0 0.0
  %3791 = vmatpush1.msra.mxu0 0.0
  %3792 = vmatprep.subr.mxu0 0.0
  %3793 = vmatpush1.msra.mxu0 0.0
  %3794 = vmatprep.subr.mxu0 0.0
  %3795 = vmatpush1.msra.mxu0 0.0
  %3796 = vmatprep.subr.mxu0 0.0
  %3797 = vmatpush1.msra.mxu0 0.0
  %3798 = vmatprep.subr.mxu0 0.0
  %3799 = vmatpush1.msra.mxu0 0.0
  %3800 = vmatprep.mubr.f32.mxu0 0.0
  %3801 = vmatmul.mubr.f32.gmra.mrb[0].mxu0 %v3731
  %v3802 = vpop.f32.mrb[0].mxu0
  %v3803 = vadd.f32 0.0, %v3802
  %v3804 = vpop.f32.mrb[0].mxu0
  %3805 = vmatprep.mubr.f32.mxu0 0.0
  %3806 = vmatmul.mubr.f32.gmra.mrb[0].mxu0 %v3734
  %v3807 = vpop.f32.mrb[0].mxu0
  %v3808 = vadd.f32 0.0, %v3807
  %v3809 = vpop.f32.mrb[0].mxu0
  %3810 = vdwg.mxu0
  %v3812 = vsel %vm787, %v783, 0
  %v3815 = vsel %vm787, %v784, 0
  %3817 = vmatprep.subr.mxu0 0.0
  %3818 = vmatpush1.msra.mxu0 %v699
  %3819 = vmatprep.subr.mxu0 0.0
  %3820 = vmatpush1.msra.mxu0 %v704
  %3821 = vmatprep.subr.mxu0 0.0
  %3822 = vmatpush1.msra.mxu0 0.0
  %3823 = vmatprep.subr.mxu0 0.0
  %3824 = vmatpush1.msra.mxu0 0.0
  %3825 = vmatprep.subr.mxu0 0.0
  %3826 = vmatpush1.msra.mxu0 0.0
  %3827 = vmatprep.subr.mxu0 0.0
  %3828 = vmatpush1.msra.mxu0 0.0
  %3829 = vmatprep.subr.mxu0 0.0
  %3830 = vmatpush1.msra.mxu0 0.0
  %3831 = vmatprep.subr.mxu0 0.0
  %3832 = vmatpush1.msra.mxu0 0.0
  %3833 = vmatprep.subr.mxu0 0.0
  %3834 = vmatpush1.msra.mxu0 0.0
  %3835 = vmatprep.subr.mxu0 0.0
  %3836 = vmatpush1.msra.mxu0 0.0
  %3837 = vmatprep.subr.mxu0 0.0
  %3838 = vmatpush1.msra.mxu0 0.0
  %3839 = vmatprep.subr.mxu0 0.0
  %3840 = vmatpush1.msra.mxu0 0.0
  %3841 = vmatprep.subr.mxu0 0.0
  %3842 = vmatpush1.msra.mxu0 0.0
  %3843 = vmatprep.subr.mxu0 0.0
  %3844 = vmatpush1.msra.mxu0 0.0
  %3845 = vmatprep.subr.mxu0 0.0
  %3846 = vmatpush1.msra.mxu0 0.0
  %3847 = vmatprep.subr.mxu0 0.0
  %3848 = vmatpush1.msra.mxu0 0.0
  %3849 = vmatprep.subr.mxu0 0.0
  %3850 = vmatpush1.msra.mxu0 0.0
  %3851 = vmatprep.subr.mxu0 0.0
  %3852 = vmatpush1.msra.mxu0 0.0
  %3853 = vmatprep.subr.mxu0 0.0
  %3854 = vmatpush1.msra.mxu0 0.0
  %3855 = vmatprep.subr.mxu0 0.0
  %3856 = vmatpush1.msra.mxu0 0.0
  %3857 = vmatprep.subr.mxu0 0.0
  %3858 = vmatpush1.msra.mxu0 0.0
  %3859 = vmatprep.subr.mxu0 0.0
  %3860 = vmatpush1.msra.mxu0 0.0
  %3861 = vmatprep.subr.mxu0 0.0
  %3862 = vmatpush1.msra.mxu0 0.0
  %3863 = vmatprep.subr.mxu0 0.0
  %3864 = vmatpush1.msra.mxu0 0.0
  %3865 = vmatprep.subr.mxu0 0.0
  %3866 = vmatpush1.msra.mxu0 0.0
  %3867 = vmatprep.subr.mxu0 0.0
  %3868 = vmatpush1.msra.mxu0 0.0
  %3869 = vmatprep.subr.mxu0 0.0
  %3870 = vmatpush1.msra.mxu0 0.0
  %3871 = vmatprep.subr.mxu0 0.0
  %3872 = vmatpush1.msra.mxu0 0.0
  %3873 = vmatprep.subr.mxu0 0.0
  %3874 = vmatpush1.msra.mxu0 0.0
  %3875 = vmatprep.subr.mxu0 0.0
  %3876 = vmatpush1.msra.mxu0 0.0
  %3877 = vmatprep.subr.mxu0 0.0
  %3878 = vmatpush1.msra.mxu0 0.0
  %3879 = vmatprep.subr.mxu0 0.0
  %3880 = vmatpush1.msra.mxu0 0.0
  %3881 = vmatprep.mubr.f32.mxu0 0.0
  %3882 = vmatmul.mubr.f32.gmra.mrb[0].mxu0 %v3812
  %v3883 = vpop.f32.mrb[0].mxu0
  %v3884 = vadd.f32 0.0, %v3883
  %v3885 = vpop.f32.mrb[0].mxu0
  %3886 = vmatprep.mubr.f32.mxu0 0.0
  %3887 = vmatmul.mubr.f32.gmra.mrb[0].mxu0 %v3815
  %v3888 = vpop.f32.mrb[0].mxu0
  %v3889 = vadd.f32 0.0, %v3888
  %v3890 = vpop.f32.mrb[0].mxu0
  %3891 = vdwg.mxu0
  %v3893 = vsel %vm787, %v785, 0
  %v3896 = vsel %vm787, %v786, 0
  %3898 = vmatprep.subr.mxu0 0.0
  %3899 = vmatpush1.msra.mxu0 %v709
  %3900 = vmatprep.subr.mxu0 0.0
  %3901 = vmatpush1.msra.mxu0 %v714
  %3902 = vmatprep.subr.mxu0 0.0
  %3903 = vmatpush1.msra.mxu0 0.0
  %3904 = vmatprep.subr.mxu0 0.0
  %3905 = vmatpush1.msra.mxu0 0.0
  %3906 = vmatprep.subr.mxu0 0.0
  %3907 = vmatpush1.msra.mxu0 0.0
  %3908 = vmatprep.subr.mxu0 0.0
  %3909 = vmatpush1.msra.mxu0 0.0
  %3910 = vmatprep.subr.mxu0 0.0
  %3911 = vmatpush1.msra.mxu0 0.0
  %3912 = vmatprep.subr.mxu0 0.0
  %3913 = vmatpush1.msra.mxu0 0.0
  %3914 = vmatprep.subr.mxu0 0.0
  %3915 = vmatpush1.msra.mxu0 0.0
  %3916 = vmatprep.subr.mxu0 0.0
  %3917 = vmatpush1.msra.mxu0 0.0
  %3918 = vmatprep.subr.mxu0 0.0
  %3919 = vmatpush1.msra.mxu0 0.0
  %3920 = vmatprep.subr.mxu0 0.0
  %3921 = vmatpush1.msra.mxu0 0.0
  %3922 = vmatprep.subr.mxu0 0.0
  %3923 = vmatpush1.msra.mxu0 0.0
  %3924 = vmatprep.subr.mxu0 0.0
  %3925 = vmatpush1.msra.mxu0 0.0
  %3926 = vmatprep.subr.mxu0 0.0
  %3927 = vmatpush1.msra.mxu0 0.0
  %3928 = vmatprep.subr.mxu0 0.0
  %3929 = vmatpush1.msra.mxu0 0.0
  %3930 = vmatprep.subr.mxu0 0.0
  %3931 = vmatpush1.msra.mxu0 0.0
  %3932 = vmatprep.subr.mxu0 0.0
  %3933 = vmatpush1.msra.mxu0 0.0
  %3934 = vmatprep.subr.mxu0 0.0
  %3935 = vmatpush1.msra.mxu0 0.0
  %3936 = vmatprep.subr.mxu0 0.0
  %3937 = vmatpush1.msra.mxu0 0.0
  %3938 = vmatprep.subr.mxu0 0.0
  %3939 = vmatpush1.msra.mxu0 0.0
  %3940 = vmatprep.subr.mxu0 0.0
  %3941 = vmatpush1.msra.mxu0 0.0
  %3942 = vmatprep.subr.mxu0 0.0
  %3943 = vmatpush1.msra.mxu0 0.0
  %3944 = vmatprep.subr.mxu0 0.0
  %3945 = vmatpush1.msra.mxu0 0.0
  %3946 = vmatprep.subr.mxu0 0.0
  %3947 = vmatpush1.msra.mxu0 0.0
  %3948 = vmatprep.subr.mxu0 0.0
  %3949 = vmatpush1.msra.mxu0 0.0
  %3950 = vmatprep.subr.mxu0 0.0
  %3951 = vmatpush1.msra.mxu0 0.0
  %3952 = vmatprep.subr.mxu0 0.0
  %3953 = vmatpush1.msra.mxu0 0.0
  %3954 = vmatprep.subr.mxu0 0.0
  %3955 = vmatpush1.msra.mxu0 0.0
  %3956 = vmatprep.subr.mxu0 0.0
  %3957 = vmatpush1.msra.mxu0 0.0
  %3958 = vmatprep.subr.mxu0 0.0
  %3959 = vmatpush1.msra.mxu0 0.0
  %3960 = vmatprep.subr.mxu0 0.0
  %3961 = vmatpush1.msra.mxu0 0.0
  %3962 = vmatprep.mubr.f32.mxu0 0.0
  %3963 = vmatmul.mubr.f32.gmra.mrb[0].mxu0 %v3893
  %v3964 = vpop.f32.mrb[0].mxu0
  %v3965 = vadd.f32 0.0, %v3964
  %v3966 = vpop.f32.mrb[0].mxu0
  %3967 = vmatprep.mubr.f32.mxu0 0.0
  %3968 = vmatmul.mubr.f32.gmra.mrb[0].mxu0 %v3896
  %v3969 = vpop.f32.mrb[0].mxu0
  %v3970 = vadd.f32 0.0, %v3969
  %v3971 = vpop.f32.mrb[0].mxu0
  %3972 = vdwg.mxu0
  %v3973 = vmul.f32 %v1211, %v1068
  %v3974 = vmul.f32 %v1216, %v1069
  %v3975 = vmul.f32 %v1292, %v1070
  %v3976 = vmul.f32 %v1297, %v1071
  %v3977 = vmul.f32 %v1373, %v1072
  %v3978 = vmul.f32 %v1378, %v1073
  %v3979 = vmul.f32 %v1454, %v1074
  %v3980 = vmul.f32 %v1459, %v1075
  %v3981 = vmul.f32 %v1535, %v1076
  %v3982 = vmul.f32 %v1540, %v1077
  %v3983 = vmul.f32 %v1616, %v1078
  %v3984 = vmul.f32 %v1621, %v1079
  %v3985 = vmul.f32 %v1697, %v1080
  %v3986 = vmul.f32 %v1702, %v1081
  %v3987 = vmul.f32 %v1778, %v1082
  %v3988 = vmul.f32 %v1783, %v1083
  %v3989 = vmul.f32 %v1859, %v1084
  %v3990 = vmul.f32 %v1864, %v1085
  %v3991 = vmul.f32 %v1940, %v1086
  %v3992 = vmul.f32 %v1945, %v1087
  %v3993 = vmul.f32 %v2021, %v1088
  %v3994 = vmul.f32 %v2026, %v1089
  %v3995 = vmul.f32 %v2102, %v1090
  %v3996 = vmul.f32 %v2107, %v1091
  %v3997 = vmul.f32 %v2183, %v1092
  %v3998 = vmul.f32 %v2188, %v1093
  %v3999 = vmul.f32 %v2264, %v1094
  %v4000 = vmul.f32 %v2269, %v1095
  %v4001 = vmul.f32 %v2345, %v1096
  %v4002 = vmul.f32 %v2350, %v1097
  %v4003 = vmul.f32 %v2426, %v1098
  %v4004 = vmul.f32 %v2431, %v1099
  %v4005 = vmul.f32 %v2507, %v1100
  %v4006 = vmul.f32 %v2512, %v1101
  %v4007 = vmul.f32 %v2588, %v1102
  %v4008 = vmul.f32 %v2593, %v1103
  %v4009 = vmul.f32 %v2669, %v1104
  %v4010 = vmul.f32 %v2674, %v1105
  %v4011 = vmul.f32 %v2750, %v1106
  %v4012 = vmul.f32 %v2755, %v1107
  %v4013 = vmul.f32 %v2831, %v1108
  %v4014 = vmul.f32 %v2836, %v1109
  %v4015 = vmul.f32 %v2912, %v1110
  %v4016 = vmul.f32 %v2917, %v1111
  %v4017 = vmul.f32 %v2993, %v1112
  %v4018 = vmul.f32 %v2998, %v1113
  %v4019 = vmul.f32 %v3074, %v1114
  %v4020 = vmul.f32 %v3079, %v1115
  %v4021 = vmul.f32 %v3155, %v1116
  %v4022 = vmul.f32 %v3160, %v1117
  %v4023 = vmul.f32 %v3236, %v1118
  %v4024 = vmul.f32 %v3241, %v1119
  %v4025 = vmul.f32 %v3317, %v1120
  %v4026 = vmul.f32 %v3322, %v1121
  %v4027 = vmul.f32 %v3398, %v1122
  %v4028 = vmul.f32 %v3403, %v1123
  %v4029 = vmul.f32 %v3479, %v1124
  %v4030 = vmul.f32 %v3484, %v1125
  %v4031 = vmul.f32 %v3560, %v1126
  %v4032 = vmul.f32 %v3565, %v1127
  %v4033 = vmul.f32 %v3641, %v1128
  %v4034 = vmul.f32 %v3646, %v1129
  %v4035 = vmul.f32 %v3722, %v1130
  %v4036 = vmul.f32 %v3727, %v1131
  %v4037 = vmul.f32 %v3803, %v1132
  %v4038 = vmul.f32 %v3808, %v1133
  %v4039 = vmul.f32 %v3884, %v1134
  %v4040 = vmul.f32 %v3889, %v1135
  %v4041 = vmul.f32 %v3965, %v1136
  %v4042 = vmul.f32 %v3970, %v1137
  %v4043 = vld [vmem:[%s3] sm:$0x1]
  %v4045 = vlaneseq
  %v4046 = vshrl.u32 %v4045, 7
  %v4047 = vsub.s32 0, %v4046
  %v4048 = vrot.slane %v4043, %v4047
  %v4050 = vadd.f32 %v3973, %v4048
  %v4051 = vadd.f32 %v3974, %v4048
  %v4052 = vadd.f32 %v3975, %v4048
  %v4053 = vadd.f32 %v3976, %v4048
  %v4054 = vadd.f32 %v3977, %v4048
  %v4055 = vadd.f32 %v3978, %v4048
  %v4056 = vadd.f32 %v3979, %v4048
  %v4057 = vadd.f32 %v3980, %v4048
  %v4058 = vadd.f32 %v3981, %v4048
  %v4059 = vadd.f32 %v3982, %v4048
  %v4060 = vadd.f32 %v3983, %v4048
  %v4061 = vadd.f32 %v3984, %v4048
  %v4062 = vadd.f32 %v3985, %v4048
  %v4063 = vadd.f32 %v3986, %v4048
  %v4064 = vadd.f32 %v3987, %v4048
  %v4065 = vadd.f32 %v3988, %v4048
  %v4066 = vadd.f32 %v3989, %v4048
  %v4067 = vadd.f32 %v3990, %v4048
  %v4068 = vadd.f32 %v3991, %v4048
  %v4069 = vadd.f32 %v3992, %v4048
  %v4070 = vadd.f32 %v3993, %v4048
  %v4071 = vadd.f32 %v3994, %v4048
  %v4072 = vadd.f32 %v3995, %v4048
  %v4073 = vadd.f32 %v3996, %v4048
  %v4074 = vadd.f32 %v3997, %v4048
  %v4075 = vadd.f32 %v3998, %v4048
  %v4076 = vadd.f32 %v3999, %v4048
  %v4077 = vadd.f32 %v4000, %v4048
  %v4078 = vadd.f32 %v4001, %v4048
  %v4079 = vadd.f32 %v4002, %v4048
  %v4080 = vadd.f32 %v4003, %v4048
  %v4081 = vadd.f32 %v4004, %v4048
  %v4082 = vadd.f32 %v4005, %v4048
  %v4083 = vadd.f32 %v4006, %v4048
  %v4084 = vadd.f32 %v4007, %v4048
  %v4085 = vadd.f32 %v4008, %v4048
  %v4086 = vadd.f32 %v4009, %v4048
  %v4087 = vadd.f32 %v4010, %v4048
  %v4088 = vadd.f32 %v4011, %v4048
  %v4089 = vadd.f32 %v4012, %v4048
  %v4090 = vadd.f32 %v4013, %v4048
  %v4091 = vadd.f32 %v4014, %v4048
  %v4092 = vadd.f32 %v4015, %v4048
  %v4093 = vadd.f32 %v4016, %v4048
  %v4094 = vadd.f32 %v4017, %v4048
  %v4095 = vadd.f32 %v4018, %v4048
  %v4096 = vadd.f32 %v4019, %v4048
  %v4097 = vadd.f32 %v4020, %v4048
  %v4098 = vadd.f32 %v4021, %v4048
  %v4099 = vadd.f32 %v4022, %v4048
  %v4100 = vadd.f32 %v4023, %v4048
  %v4101 = vadd.f32 %v4024, %v4048
  %v4102 = vadd.f32 %v4025, %v4048
  %v4103 = vadd.f32 %v4026, %v4048
  %v4104 = vadd.f32 %v4027, %v4048
  %v4105 = vadd.f32 %v4028, %v4048
  %v4106 = vadd.f32 %v4029, %v4048
  %v4107 = vadd.f32 %v4030, %v4048
  %v4108 = vadd.f32 %v4031, %v4048
  %v4109 = vadd.f32 %v4032, %v4048
  %v4110 = vadd.f32 %v4033, %v4048
  %v4111 = vadd.f32 %v4034, %v4048
  %v4112 = vadd.f32 %v4035, %v4048
  %v4113 = vadd.f32 %v4036, %v4048
  %v4114 = vadd.f32 %v4037, %v4048
  %v4115 = vadd.f32 %v4038, %v4048
  %v4116 = vadd.f32 %v4039, %v4048
  %v4117 = vadd.f32 %v4040, %v4048
  %v4118 = vadd.f32 %v4041, %v4048
  %v4119 = vadd.f32 %v4042, %v4048
  %vm4120 = vcmp.ge.f32.partialorder %v4050, 0.0
  %vm4121 = vcmp.ge.f32.partialorder %v4051, 0.0
  %vm4122 = vcmp.ge.f32.partialorder %v4052, 0.0
  %vm4123 = vcmp.ge.f32.partialorder %v4053, 0.0
  %vm4124 = vcmp.ge.f32.partialorder %v4054, 0.0
  %vm4125 = vcmp.ge.f32.partialorder %v4055, 0.0
  %vm4126 = vcmp.ge.f32.partialorder %v4056, 0.0
  %vm4127 = vcmp.ge.f32.partialorder %v4057, 0.0
  %vm4128 = vcmp.ge.f32.partialorder %v4058, 0.0
  %vm4129 = vcmp.ge.f32.partialorder %v4059, 0.0
  %vm4130 = vcmp.ge.f32.partialorder %v4060, 0.0
  %vm4131 = vcmp.ge.f32.partialorder %v4061, 0.0
  %vm4132 = vcmp.ge.f32.partialorder %v4062, 0.0
  %vm4133 = vcmp.ge.f32.partialorder %v4063, 0.0
  %vm4134 = vcmp.ge.f32.partialorder %v4064, 0.0
  %vm4135 = vcmp.ge.f32.partialorder %v4065, 0.0
  %vm4136 = vcmp.ge.f32.partialorder %v4066, 0.0
  %vm4137 = vcmp.ge.f32.partialorder %v4067, 0.0
  %vm4138 = vcmp.ge.f32.partialorder %v4068, 0.0
  %vm4139 = vcmp.ge.f32.partialorder %v4069, 0.0
  %vm4140 = vcmp.ge.f32.partialorder %v4070, 0.0
  %vm4141 = vcmp.ge.f32.partialorder %v4071, 0.0
  %vm4142 = vcmp.ge.f32.partialorder %v4072, 0.0
  %vm4143 = vcmp.ge.f32.partialorder %v4073, 0.0
  %vm4144 = vcmp.ge.f32.partialorder %v4074, 0.0
  %vm4145 = vcmp.ge.f32.partialorder %v4075, 0.0
  %vm4146 = vcmp.ge.f32.partialorder %v4076, 0.0
  %vm4147 = vcmp.ge.f32.partialorder %v4077, 0.0
  %vm4148 = vcmp.ge.f32.partialorder %v4078, 0.0
  %vm4149 = vcmp.ge.f32.partialorder %v4079, 0.0
  %vm4150 = vcmp.ge.f32.partialorder %v4080, 0.0
  %vm4151 = vcmp.ge.f32.partialorder %v4081, 0.0
  %vm4152 = vcmp.ge.f32.partialorder %v4082, 0.0
  %vm4153 = vcmp.ge.f32.partialorder %v4083, 0.0
  %vm4154 = vcmp.ge.f32.partialorder %v4084, 0.0
  %vm4155 = vcmp.ge.f32.partialorder %v4085, 0.0
  %vm4156 = vcmp.ge.f32.partialorder %v4086, 0.0
  %vm4157 = vcmp.ge.f32.partialorder %v4087, 0.0
  %vm4158 = vcmp.ge.f32.partialorder %v4088, 0.0
  %vm4159 = vcmp.ge.f32.partialorder %v4089, 0.0
  %vm4160 = vcmp.ge.f32.partialorder %v4090, 0.0
  %vm4161 = vcmp.ge.f32.partialorder %v4091, 0.0
  %vm4162 = vcmp.ge.f32.partialorder %v4092, 0.0
  %vm4163 = vcmp.ge.f32.partialorder %v4093, 0.0
  %vm4164 = vcmp.ge.f32.partialorder %v4094, 0.0
  %vm4165 = vcmp.ge.f32.partialorder %v4095, 0.0
  %vm4166 = vcmp.ge.f32.partialorder %v4096, 0.0
  %vm4167 = vcmp.ge.f32.partialorder %v4097, 0.0
  %vm4168 = vcmp.ge.f32.partialorder %v4098, 0.0
  %vm4169 = vcmp.ge.f32.partialorder %v4099, 0.0
  %vm4170 = vcmp.ge.f32.partialorder %v4100, 0.0
  %vm4171 = vcmp.ge.f32.partialorder %v4101, 0.0
  %vm4172 = vcmp.ge.f32.partialorder %v4102, 0.0
  %vm4173 = vcmp.ge.f32.partialorder %v4103, 0.0
  %vm4174 = vcmp.ge.f32.partialorder %v4104, 0.0
  %vm4175 = vcmp.ge.f32.partialorder %v4105, 0.0
  %vm4176 = vcmp.ge.f32.partialorder %v4106, 0.0
  %vm4177 = vcmp.ge.f32.partialorder %v4107, 0.0
  %vm4178 = vcmp.ge.f32.partialorder %v4108, 0.0
  %vm4179 = vcmp.ge.f32.partialorder %v4109, 0.0
  %vm4180 = vcmp.ge.f32.partialorder %v4110, 0.0
  %vm4181 = vcmp.ge.f32.partialorder %v4111, 0.0
  %vm4182 = vcmp.ge.f32.partialorder %v4112, 0.0
  %vm4183 = vcmp.ge.f32.partialorder %v4113, 0.0
  %vm4184 = vcmp.ge.f32.partialorder %v4114, 0.0
  %vm4185 = vcmp.ge.f32.partialorder %v4115, 0.0
  %vm4186 = vcmp.ge.f32.partialorder %v4116, 0.0
  %vm4187 = vcmp.ge.f32.partialorder %v4117, 0.0
  %vm4188 = vcmp.ge.f32.partialorder %v4118, 0.0
  %vm4189 = vcmp.ge.f32.partialorder %v4119, 0.0
  %v4190 = vmul.f32 %v4050, 0.01
  %v4191 = vmul.f32 %v4051, 0.01
  %v4192 = vmul.f32 %v4052, 0.01
  %v4193 = vmul.f32 %v4053, 0.01
  %v4194 = vmul.f32 %v4054, 0.01
  %v4195 = vmul.f32 %v4055, 0.01
  %v4196 = vmul.f32 %v4056, 0.01
  %v4197 = vmul.f32 %v4057, 0.01
  %v4198 = vmul.f32 %v4058, 0.01
  %v4199 = vmul.f32 %v4059, 0.01
  %v4200 = vmul.f32 %v4060, 0.01
  %v4201 = vmul.f32 %v4061, 0.01
  %v4202 = vmul.f32 %v4062, 0.01
  %v4203 = vmul.f32 %v4063, 0.01
  %v4204 = vmul.f32 %v4064, 0.01
  %v4205 = vmul.f32 %v4065, 0.01
  %v4206 = vmul.f32 %v4066, 0.01
  %v4207 = vmul.f32 %v4067, 0.01
  %v4208 = vmul.f32 %v4068, 0.01
  %v4209 = vmul.f32 %v4069, 0.01
  %v4210 = vmul.f32 %v4070, 0.01
  %v4211 = vmul.f32 %v4071, 0.01
  %v4212 = vmul.f32 %v4072, 0.01
  %v4213 = vmul.f32 %v4073, 0.01
  %v4214 = vmul.f32 %v4074, 0.01
  %v4215 = vmul.f32 %v4075, 0.01
  %v4216 = vmul.f32 %v4076, 0.01
  %v4217 = vmul.f32 %v4077, 0.01
  %v4218 = vmul.f32 %v4078, 0.01
  %v4219 = vmul.f32 %v4079, 0.01
  %v4220 = vmul.f32 %v4080, 0.01
  %v4221 = vmul.f32 %v4081, 0.01
  %v4222 = vmul.f32 %v4082, 0.01
  %v4223 = vmul.f32 %v4083, 0.01
  %v4224 = vmul.f32 %v4084, 0.01
  %v4225 = vmul.f32 %v4085, 0.01
  %v4226 = vmul.f32 %v4086, 0.01
  %v4227 = vmul.f32 %v4087, 0.01
  %v4228 = vmul.f32 %v4088, 0.01
  %v4229 = vmul.f32 %v4089, 0.01
  %v4230 = vmul.f32 %v4090, 0.01
  %v4231 = vmul.f32 %v4091, 0.01
  %v4232 = vmul.f32 %v4092, 0.01
  %v4233 = vmul.f32 %v4093, 0.01
  %v4234 = vmul.f32 %v4094, 0.01
  %v4235 = vmul.f32 %v4095, 0.01
  %v4236 = vmul.f32 %v4096, 0.01
  %v4237 = vmul.f32 %v4097, 0.01
  %v4238 = vmul.f32 %v4098, 0.01
  %v4239 = vmul.f32 %v4099, 0.01
  %v4240 = vmul.f32 %v4100, 0.01
  %v4241 = vmul.f32 %v4101, 0.01
  %v4242 = vmul.f32 %v4102, 0.01
  %v4243 = vmul.f32 %v4103, 0.01
  %v4244 = vmul.f32 %v4104, 0.01
  %v4245 = vmul.f32 %v4105, 0.01
  %v4246 = vmul.f32 %v4106, 0.01
  %v4247 = vmul.f32 %v4107, 0.01
  %v4248 = vmul.f32 %v4108, 0.01
  %v4249 = vmul.f32 %v4109, 0.01
  %v4250 = vmul.f32 %v4110, 0.01
  %v4251 = vmul.f32 %v4111, 0.01
  %v4252 = vmul.f32 %v4112, 0.01
  %v4253 = vmul.f32 %v4113, 0.01
  %v4254 = vmul.f32 %v4114, 0.01
  %v4255 = vmul.f32 %v4115, 0.01
  %v4256 = vmul.f32 %v4116, 0.01
  %v4257 = vmul.f32 %v4117, 0.01
  %v4258 = vmul.f32 %v4118, 0.01
  %v4259 = vmul.f32 %v4119, 0.01
  %v4260 = vsel %vm4120, %v4050, %v4190
  %v4261 = vsel %vm4121, %v4051, %v4191
  %v4262 = vsel %vm4122, %v4052, %v4192
  %v4263 = vsel %vm4123, %v4053, %v4193
  %v4264 = vsel %vm4124, %v4054, %v4194
  %v4265 = vsel %vm4125, %v4055, %v4195
  %v4266 = vsel %vm4126, %v4056, %v4196
  %v4267 = vsel %vm4127, %v4057, %v4197
  %v4268 = vsel %vm4128, %v4058, %v4198
  %v4269 = vsel %vm4129, %v4059, %v4199
  %v4270 = vsel %vm4130, %v4060, %v4200
  %v4271 = vsel %vm4131, %v4061, %v4201
  %v4272 = vsel %vm4132, %v4062, %v4202
  %v4273 = vsel %vm4133, %v4063, %v4203
  %v4274 = vsel %vm4134, %v4064, %v4204
  %v4275 = vsel %vm4135, %v4065, %v4205
  %v4276 = vsel %vm4136, %v4066, %v4206
  %v4277 = vsel %vm4137, %v4067, %v4207
  %v4278 = vsel %vm4138, %v4068, %v4208
  %v4279 = vsel %vm4139, %v4069, %v4209
  %v4280 = vsel %vm4140, %v4070, %v4210
  %v4281 = vsel %vm4141, %v4071, %v4211
  %v4282 = vsel %vm4142, %v4072, %v4212
  %v4283 = vsel %vm4143, %v4073, %v4213
  %v4284 = vsel %vm4144, %v4074, %v4214
  %v4285 = vsel %vm4145, %v4075, %v4215
  %v4286 = vsel %vm4146, %v4076, %v4216
  %v4287 = vsel %vm4147, %v4077, %v4217
  %v4288 = vsel %vm4148, %v4078, %v4218
  %v4289 = vsel %vm4149, %v4079, %v4219
  %v4290 = vsel %vm4150, %v4080, %v4220
  %v4291 = vsel %vm4151, %v4081, %v4221
  %v4292 = vsel %vm4152, %v4082, %v4222
  %v4293 = vsel %vm4153, %v4083, %v4223
  %v4294 = vsel %vm4154, %v4084, %v4224
  %v4295 = vsel %vm4155, %v4085, %v4225
  %v4296 = vsel %vm4156, %v4086, %v4226
  %v4297 = vsel %vm4157, %v4087, %v4227
  %v4298 = vsel %vm4158, %v4088, %v4228
  %v4299 = vsel %vm4159, %v4089, %v4229
  %v4300 = vsel %vm4160, %v4090, %v4230
  %v4301 = vsel %vm4161, %v4091, %v4231
  %v4302 = vsel %vm4162, %v4092, %v4232
  %v4303 = vsel %vm4163, %v4093, %v4233
  %v4304 = vsel %vm4164, %v4094, %v4234
  %v4305 = vsel %vm4165, %v4095, %v4235
  %v4306 = vsel %vm4166, %v4096, %v4236
  %v4307 = vsel %vm4167, %v4097, %v4237
  %v4308 = vsel %vm4168, %v4098, %v4238
  %v4309 = vsel %vm4169, %v4099, %v4239
  %v4310 = vsel %vm4170, %v4100, %v4240
  %v4311 = vsel %vm4171, %v4101, %v4241
  %v4312 = vsel %vm4172, %v4102, %v4242
  %v4313 = vsel %vm4173, %v4103, %v4243
  %v4314 = vsel %vm4174, %v4104, %v4244
  %v4315 = vsel %vm4175, %v4105, %v4245
  %v4316 = vsel %vm4176, %v4106, %v4246
  %v4317 = vsel %vm4177, %v4107, %v4247
  %v4318 = vsel %vm4178, %v4108, %v4248
  %v4319 = vsel %vm4179, %v4109, %v4249
  %v4320 = vsel %vm4180, %v4110, %v4250
  %v4321 = vsel %vm4181, %v4111, %v4251
  %v4322 = vsel %vm4182, %v4112, %v4252
  %v4323 = vsel %vm4183, %v4113, %v4253
  %v4324 = vsel %vm4184, %v4114, %v4254
  %v4325 = vsel %vm4185, %v4115, %v4255
  %v4326 = vsel %vm4186, %v4116, %v4256
  %v4327 = vsel %vm4187, %v4117, %v4257
  %v4328 = vsel %vm4188, %v4118, %v4258
  %v4329 = vsel %vm4189, %v4119, %v4259
  %4330 = vst.msk [vmem:[%s4] sm:$0xff] %vm91, %v4260
  %4331 = vst.msk [vmem:[%s4 + $0x8] sm:$0xff] %vm91, %v4261
  %4332 = vst.msk [vmem:[%s4 + $0x10] sm:$0xff] %vm91, %v4262
  %4333 = vst.msk [vmem:[%s4 + $0x18] sm:$0xff] %vm91, %v4263
  %4334 = vst.msk [vmem:[%s4 + $0x20] sm:$0xff] %vm91, %v4264
  %4335 = vst.msk [vmem:[%s4 + $0x28] sm:$0xff] %vm91, %v4265
  %4336 = vst.msk [vmem:[%s4 + $0x30] sm:$0xff] %vm91, %v4266
  %4337 = vst.msk [vmem:[%s4 + $0x38] sm:$0xff] %vm91, %v4267
  %4338 = vst.msk [vmem:[%s4 + $0x40] sm:$0xff] %vm91, %v4268
  %4339 = vst.msk [vmem:[%s4 + $0x48] sm:$0xff] %vm91, %v4269
  %4340 = vst.msk [vmem:[%s4 + $0x50] sm:$0xff] %vm91, %v4270
  %4341 = vst.msk [vmem:[%s4 + $0x58] sm:$0xff] %vm91, %v4271
  %4342 = vst.msk [vmem:[%s4 + $0x60] sm:$0xff] %vm91, %v4272
  %4343 = vst.msk [vmem:[%s4 + $0x68] sm:$0xff] %vm91, %v4273
  %4344 = vst.msk [vmem:[%s4 + $0x70] sm:$0xff] %vm91, %v4274
  %4345 = vst.msk [vmem:[%s4 + $0x78] sm:$0xff] %vm91, %v4275
  %4346 = vst.msk [vmem:[%s4 + $0x80] sm:$0xff] %vm91, %v4276
  %4347 = vst.msk [vmem:[%s4 + $0x88] sm:$0xff] %vm91, %v4277
  %4348 = vst.msk [vmem:[%s4 + $0x90] sm:$0xff] %vm91, %v4278
  %4349 = vst.msk [vmem:[%s4 + $0x98] sm:$0xff] %vm91, %v4279
  %4350 = vst.msk [vmem:[%s4 + $0xa0] sm:$0xff] %vm91, %v4280
  %4351 = vst.msk [vmem:[%s4 + $0xa8] sm:$0xff] %vm91, %v4281
  %4352 = vst.msk [vmem:[%s4 + $0xb0] sm:$0xff] %vm91, %v4282
  %4353 = vst.msk [vmem:[%s4 + $0xb8] sm:$0xff] %vm91, %v4283
  %4354 = vst.msk [vmem:[%s4 + $0xc0] sm:$0xff] %vm91, %v4284
  %4355 = vst.msk [vmem:[%s4 + $0xc8] sm:$0xff] %vm91, %v4285
  %4356 = vst.msk [vmem:[%s4 + $0xd0] sm:$0xff] %vm91, %v4286
  %4357 = vst.msk [vmem:[%s4 + $0xd8] sm:$0xff] %vm91, %v4287
  %4358 = vst.msk [vmem:[%s4 + $0xe0] sm:$0xff] %vm91, %v4288
  %4359 = vst.msk [vmem:[%s4 + $0xe8] sm:$0xff] %vm91, %v4289
  %4360 = vst.msk [vmem:[%s4 + $0xf0] sm:$0xff] %vm91, %v4290
  %4361 = vst.msk [vmem:[%s4 + $0xf8] sm:$0xff] %vm91, %v4291
  %4362 = vst.msk [vmem:[%s4 + $0x100] sm:$0xff] %vm91, %v4292
  %4363 = vst.msk [vmem:[%s4 + $0x108] sm:$0xff] %vm91, %v4293
  %4364 = vst.msk [vmem:[%s4 + $0x110] sm:$0xff] %vm91, %v4294
  %4365 = vst.msk [vmem:[%s4 + $0x118] sm:$0xff] %vm91, %v4295
  %4366 = vst.msk [vmem:[%s4 + $0x120] sm:$0xff] %vm91, %v4296
  %4367 = vst.msk [vmem:[%s4 + $0x128] sm:$0xff] %vm91, %v4297
  %4368 = vst.msk [vmem:[%s4 + $0x130] sm:$0xff] %vm91, %v4298
  %4369 = vst.msk [vmem:[%s4 + $0x138] sm:$0xff] %vm91, %v4299
  %4370 = vst.msk [vmem:[%s4 + $0x140] sm:$0xff] %vm91, %v4300
  %4371 = vst.msk [vmem:[%s4 + $0x148] sm:$0xff] %vm91, %v4301
  %4372 = vst.msk [vmem:[%s4 + $0x150] sm:$0xff] %vm91, %v4302
  %4373 = vst.msk [vmem:[%s4 + $0x158] sm:$0xff] %vm91, %v4303
  %4374 = vst.msk [vmem:[%s4 + $0x160] sm:$0xff] %vm91, %v4304
  %4375 = vst.msk [vmem:[%s4 + $0x168] sm:$0xff] %vm91, %v4305
  %4376 = vst.msk [vmem:[%s4 + $0x170] sm:$0xff] %vm91, %v4306
  %4377 = vst.msk [vmem:[%s4 + $0x178] sm:$0xff] %vm91, %v4307
  %4378 = vst.msk [vmem:[%s4 + $0x180] sm:$0xff] %vm91, %v4308
  %4379 = vst.msk [vmem:[%s4 + $0x188] sm:$0xff] %vm91, %v4309
  %4380 = vst.msk [vmem:[%s4 + $0x190] sm:$0xff] %vm91, %v4310
  %4381 = vst.msk [vmem:[%s4 + $0x198] sm:$0xff] %vm91, %v4311
  %4382 = vst.msk [vmem:[%s4 + $0x1a0] sm:$0xff] %vm91, %v4312
  %4383 = vst.msk [vmem:[%s4 + $0x1a8] sm:$0xff] %vm91, %v4313
  %4384 = vst.msk [vmem:[%s4 + $0x1b0] sm:$0xff] %vm91, %v4314
  %4385 = vst.msk [vmem:[%s4 + $0x1b8] sm:$0xff] %vm91, %v4315
  %4386 = vst.msk [vmem:[%s4 + $0x1c0] sm:$0xff] %vm91, %v4316
  %4387 = vst.msk [vmem:[%s4 + $0x1c8] sm:$0xff] %vm91, %v4317
  %4388 = vst.msk [vmem:[%s4 + $0x1d0] sm:$0xff] %vm91, %v4318
  %4389 = vst.msk [vmem:[%s4 + $0x1d8] sm:$0xff] %vm91, %v4319
  %4390 = vst.msk [vmem:[%s4 + $0x1e0] sm:$0xff] %vm91, %v4320
  %4391 = vst.msk [vmem:[%s4 + $0x1e8] sm:$0xff] %vm91, %v4321
  %4392 = vst.msk [vmem:[%s4 + $0x1f0] sm:$0xff] %vm91, %v4322
  %4393 = vst.msk [vmem:[%s4 + $0x1f8] sm:$0xff] %vm91, %v4323
  %4394 = vst.msk [vmem:[%s4 + $0x200] sm:$0xff] %vm91, %v4324
  %4395 = vst.msk [vmem:[%s4 + $0x208] sm:$0xff] %vm91, %v4325
  %4396 = vst.msk [vmem:[%s4 + $0x210] sm:$0xff] %vm91, %v4326
  %4397 = vst.msk [vmem:[%s4 + $0x218] sm:$0xff] %vm91, %v4327
  %4398 = vst.msk [vmem:[%s4 + $0x220] sm:$0xff] %vm91, %v4328
  %4399 = vst.msk [vmem:[%s4 + $0x228] sm:$0xff] %vm91, %v4329
  // Predicated region
  $region18: #{tpu_custom_call.1} parent=0 // pred_check
    _
  $region19: #{tpu_custom_call.1} parent=0 // pred_check_branch
    %4401 = sbr.rel (0) target = $region21
  $region20: #{tpu_custom_call.1} parent=0 // pred_region
    _
  $region21: #{tpu_custom_call.1} parent=0 // pred_fallthru
    _
  // Predicated region
  $region22: #{tpu_custom_call.1} parent=0 // pred_check
    _
  $region23: #{tpu_custom_call.1} parent=0 // pred_check_branch
    %4403 = sbr.rel (0) target = $region25
  $region24: #{tpu_custom_call.1} parent=0 // pred_region
    _
  $region25: #{tpu_custom_call.1} parent=0 // pred_fallthru
    _

</llo_original>
